<compile_context>
chip_gen: v7x
topology: tpu7x:2x2x1
jax: 0.10.0
libtpu: 0.0.40
codegen_flags: <defaults>
</compile_context>

<pallas_src>
import functools

import jax
import jax.numpy as jnp
from jax.experimental import pallas as pl
from jax.experimental.pallas import tpu as pltpu

_BN_EPS = 1e-5
_LANE = 128
_PAD_ROWS = 8          # zero guard rows around the flat padded activation


def _round_up(v, m):
    return (v + m - 1) // m * m


# ---------------------------------------------------------------------------
# Fused kernel: conv1 (single K=9*Cin matmul) + shift + ReLU  ->
#               conv2 (9 contiguous-window tap matmuls) + shift + ReLU
# ---------------------------------------------------------------------------

def _double_conv_kernel(xcol_ref, mask_ref, w1_ref, s1_ref, w2_ref, s2_ref,
                        o_ref, *, W):
    """One batch image per grid step.

    xcol_ref : (1, (H+2)*(W+2), K1p) bf16  im2col of the input for conv1
    mask_ref : ((H+2)*(W+2), 1)      f32   1.0 on interior rows, 0.0 on the
                                           zero-padding ring of the activation
    w1_ref   : (K1p, C1p)            bf16  BN1-folded conv1 weights
    s1_ref   : (1, C1p)              f32   BN1-folded shift
    w2_ref   : (9, C1p, Cout)        bf16  BN2-folded conv2 weights (tap-major)
    s2_ref   : (1, Cout)             f32   BN2-folded shift
    o_ref    : (1, H*(W+2), Cout)    f32   output in padded-width row-major
                                           order (wrapper drops the 2 pad cols)
    """
    P = W + 2
    HP = o_ref.shape[1]            # H * (W+2)
    c1p = w1_ref.shape[-1]

    # ---- conv1: one MXU matmul over every padded position -----------------
    h = jnp.dot(xcol_ref[0], w1_ref[...], preferred_element_type=jnp.float32)
    # Folded-BN shift + ReLU (f32), then zero the padding ring so it acts as
    # conv2's zero padding.
    h = jnp.maximum(h + s1_ref[...], 0.0) * mask_ref[...]

    # Flat zero-padded activation with guard rows: every 3x3 tap of conv2 is a
    # contiguous row-window (no concatenate / column slice / reshape copies).
    zpad = jnp.zeros((_PAD_ROWS, c1p), jnp.bfloat16)
    hp = jnp.concatenate([zpad, h.astype(jnp.bfloat16), zpad], axis=0)

    # ---- conv2: 9 tap matmuls, f32 accumulator initialized from the shift --
    acc = jnp.broadcast_to(s2_ref[...], (HP, o_ref.shape[2]))
    for dy in range(3):
        for dx in range(3):
            off = _PAD_ROWS + dy * P + dx - 1
            acc = acc + jnp.dot(hp[off:off + HP, :], w2_ref[dy * 3 + dx],
                                preferred_element_type=jnp.float32)

    o_ref[0] = jnp.maximum(acc, 0.0).astype(o_ref.dtype)


# ---------------------------------------------------------------------------
# Wrapper: NCHW in -> NCHW out, grid over batch
# ---------------------------------------------------------------------------

def double_conv(x_nchw, params):
    """Eval-mode DoubleConv forward. x_nchw: (N, Cin, H, W) -> (N, Cout, H, W)."""
    w1, s1, w2, s2 = params["w1"], params["s1"], params["w2"], params["s2"]
    N, Cin, H, W = x_nchw.shape
    P, R = W + 2, H + 2
    k1p = w1.shape[0]
    cout = w2.shape[-1]

    x = jnp.transpose(x_nchw, (0, 2, 3, 1)).astype(jnp.bfloat16)   # NHWC bf16

    # im2col of the small-Cin input for conv1, over ALL padded positions of
    # the conv1 output (the pad ring is masked to zero inside the kernel).
    # TODO(synk): for large in_channels this 9x input blow-up should be
    # replaced by in-kernel halo taps; with Cin=4 it is negligible.
    xp2 = jnp.pad(x, ((0, 0), (2, 2), (2, 2), (0, 0)))
    cols = [xp2[:, dy:dy + R, dx:dx + P, :]
            for dy in range(3) for dx in range(3)]
    x_col = jnp.concatenate(cols, axis=-1).reshape(N, R * P, 9 * Cin)
    x_col = jnp.pad(x_col, ((0, 0), (0, 0), (0, k1p - 9 * Cin)))   # dense K

    row_in = (jnp.arange(R) >= 1) & (jnp.arange(R) <= H)
    col_in = (jnp.arange(P) >= 1) & (jnp.arange(P) <= W)
    mask = (row_in[:, None] & col_in[None, :]).astype(jnp.float32)
    mask = mask.reshape(R * P, 1)

    # TODO(synk): for large H*W add a row-band grid axis with 2-row halo
    # recompute of conv1; one full image per step only fits small images.
    y = pl.pallas_call(
        functools.partial(_double_conv_kernel, W=W),
        out_shape=jax.ShapeDtypeStruct((N, H * P, cout), jnp.float32),
        grid=(N,),
        in_specs=[
            pl.BlockSpec((1, R * P, k1p), lambda n: (n, 0, 0)),
            # The blocks below are grid-invariant (fetched once, stay resident).
            # TODO(synk): at large channel counts single-buffer them
            # (pipeline_mode=pl.Buffered(1)) to halve their VMEM footprint.
            pl.BlockSpec((R * P, 1), lambda n: (0, 0)),
            pl.BlockSpec((k1p, w1.shape[1]), lambda n: (0, 0)),
            pl.BlockSpec((1, s1.shape[1]), lambda n: (0, 0)),
            pl.BlockSpec((9, w2.shape[1], cout), lambda n: (0, 0, 0)),
            pl.BlockSpec((1, cout), lambda n: (0, 0)),
        ],
        out_specs=pl.BlockSpec((1, H * P, cout), lambda n: (n, 0, 0)),
        compiler_params=pltpu.CompilerParams(
            dimension_semantics=("parallel",),
            vmem_limit_bytes=32 * 1024 * 1024,
        ),
    )(x_col, mask, w1, s1, w2, s2)

    # Drop the 2 padded output columns; back to NCHW like the PyTorch module.
    y = y.reshape(N, H, P, cout)[:, :, 1:W + 1, :]
    return jnp.transpose(y, (0, 3, 1, 2))


# ---------------------------------------------------------------------------
# Parameter prep: fold eval-mode BatchNorm into the conv weights, pad lanes
# ---------------------------------------------------------------------------

def fold_bn(w_hwio, gamma, beta, mean, var):
    scale = gamma / jnp.sqrt(var + _BN_EPS)                 # (Cout,)
    return w_hwio * scale[None, None, None, :], beta - mean * scale


def prepare_double_conv_params(raw):
    cin, cout = raw["w1"].shape[2], raw["w1"].shape[3]
    k1p = _round_up(9 * cin, _LANE)       # conv1 contraction dim (lane-dense)
    c1p = _round_up(cout, _LANE)          # intermediate channels (conv2 K)

    w1, s1 = fold_bn(raw["w1"], *raw["bn1"])
    w1 = jnp.pad(w1.reshape(9 * cin, cout),
                 ((0, k1p - 9 * cin), (0, c1p - cout)))
    s1 = jnp.pad(s1, (0, c1p - cout)).reshape(1, c1p)

    w2, s2 = fold_bn(raw["w2"], *raw["bn2"])
    w2 = jnp.pad(w2.reshape(9, cout, cout), ((0, 0), (0, c1p - cout), (0, 0)))
    s2 = s2.reshape(1, cout)

    return {"w1": w1.astype(jnp.bfloat16), "s1": s1.astype(jnp.float32),
            "w2": w2.astype(jnp.bfloat16), "s2": s2.astype(jnp.float32)}


def _bn_params(key, c):
    kg, kb, km, kv = jax.random.split(key, 4)
    gamma = 1.0 + 0.1 * jax.random.normal(kg, (c,), jnp.float32)
    beta = 0.1 * jax.random.normal(kb, (c,), jnp.float32)
    mean = 0.1 * jax.random.normal(km, (c,), jnp.float32)
    var = jax.random.uniform(kv, (c,), jnp.float32, 0.5, 1.5)
    return gamma, beta, mean, var


def init_raw_params(key, in_channels, out_channels):
    kw1, kw2, kb1, kb2 = jax.random.split(key, 4)
    w1 = (jax.random.normal(kw1, (3, 3, in_channels, out_channels), jnp.float32)
          * (2.0 / (9 * in_channels)) ** 0.5)
    w2 = (jax.random.normal(kw2, (3, 3, out_channels, out_channels), jnp.float32)
          * (2.0 / (9 * out_channels)) ** 0.5)
    return {"w1": w1, "bn1": _bn_params(kb1, out_channels),
            "w2": w2, "bn2": _bn_params(kb2, out_channels)}


# ---------------------------------------------------------------------------
# References
# ---------------------------------------------------------------------------

def _conv_ref(x, w, shift):
    y = jax.lax.conv_general_dilated(
        x, w, (1, 1), ((1, 1), (1, 1)),
        dimension_numbers=("NHWC", "HWIO", "NHWC"),
        precision=jax.lax.Precision.HIGHEST)
    return jnp.maximum(y + shift, 0.0)


def double_conv_reference(x_nchw, params, *, in_channels, out_channels):
    """Pure-JAX reference using the same bf16-rounded operands as the kernel."""
    w1 = params["w1"][:9 * in_channels, :out_channels].astype(jnp.float32)
    w1 = w1.reshape(3, 3, in_channels, out_channels)
    s1 = params["s1"][:, :out_channels]
    w2 = params["w2"][:, :out_channels, :].astype(jnp.float32)
    w2 = w2.reshape(3, 3, out_channels, out_channels)
    s2 = params["s2"]

    x = jnp.transpose(x_nchw, (0, 2, 3, 1))
    x = x.astype(jnp.bfloat16).astype(jnp.float32)
    h = _conv_ref(x, w1, s1).astype(jnp.bfloat16).astype(jnp.float32)
    y = _conv_ref(h, w2, s2)
    return jnp.transpose(y, (0, 3, 1, 2))


def double_conv_f32_reference(x_nchw, raw):
    """Unmodified f32 reference: conv -> BN(eps) -> ReLU, twice."""
    def block(x, w, bn):
        gamma, beta, mean, var = bn
        y = jax.lax.conv_general_dilated(
            x, w, (1, 1), ((1, 1), (1, 1)),
            dimension_numbers=("NHWC", "HWIO", "NHWC"),
            precision=jax.lax.Precision.HIGHEST)
        y = (y - mean) * (gamma / jnp.sqrt(var + _BN_EPS)) + beta
        return jnp.maximum(y, 0.0)

    x = jnp.transpose(x_nchw, (0, 2, 3, 1)).astype(jnp.float32)
    y = block(block(x, raw["w1"], raw["bn1"]), raw["w2"], raw["bn2"])
    return jnp.transpose(y, (0, 3, 1, 2))


if __name__ == "__main__":
    key = jax.random.PRNGKey(0)
    kp, kx = jax.random.split(key)

    N, CIN, H, W = 2, 4, 16, 16
    COUT = 64

    raw = init_raw_params(kp, CIN, COUT)
    params = prepare_double_conv_params(raw)
    x = jax.random.normal(kx, (N, CIN, H, W), jnp.float32)

    fwd = jax.jit(double_conv)
    y = jax.block_until_ready(fwd(x, params))

    assert y.shape == (N, COUT, H, W), y.shape
    assert bool(jnp.all(jnp.isfinite(y)))

    # Tight check vs. a reference built from the same bf16-rounded operands.
    y_ref = double_conv_reference(x, params, in_channels=CIN,
                                  out_channels=COUT)
    err = float(jnp.max(jnp.abs(y - y_ref)))
    assert err < 2e-2, f"max abs error vs matched reference = {err}"

    # Sanity check vs. the unmodified f32 DoubleConv (conv+BN+ReLU twice).
    y32 = double_conv_f32_reference(x, raw)
    scale = float(jnp.max(jnp.abs(y32)))
    err32 = float(jnp.max(jnp.abs(y - y32)))
    assert err32 < 0.1 * scale, f"f32-reference deviation {err32} (scale {scale})"

    print("KERNEL_OK")
</pallas_src>

<mosaic_0001>
module attributes {stable_mosaic.version = 11 : i64} {
  func.func @_double_conv_kernel(%arg0: i32, %arg1: memref<1x324x128xbf16, #tpu.memory_space<vmem>>, %arg2: memref<324x1xf32, #tpu.memory_space<vmem>>, %arg3: memref<128x128xbf16, #tpu.memory_space<vmem>>, %arg4: memref<1x128xf32, #tpu.memory_space<vmem>>, %arg5: memref<9x128x64xbf16, #tpu.memory_space<vmem>>, %arg6: memref<1x64xf32, #tpu.memory_space<vmem>>, %arg7: memref<1x288x64xf32, #tpu.memory_space<vmem>>) attributes {dimension_semantics = [#tpu.dimension_semantics<parallel>], iteration_bounds = array<i64: 2>, scalar_prefetch = 0 : i64, scratch_operands = 0 : i64, tpu.core_type = #tpu.core_type<tc>, window_params = [{transform_indices = @transform_0, window_bounds = array<i64: 1, 324, 128>}, {pipeline_mode = #tpu.pipeline_mode<synchronous>, transform_indices = @transform_1, window_bounds = array<i64: 324, 1>}, {pipeline_mode = #tpu.pipeline_mode<synchronous>, transform_indices = @transform_2, window_bounds = array<i64: 128, 128>}, {pipeline_mode = #tpu.pipeline_mode<synchronous>, transform_indices = @transform_3, window_bounds = array<i64: 1, 128>}, {pipeline_mode = #tpu.pipeline_mode<synchronous>, transform_indices = @transform_4, window_bounds = array<i64: 9, 128, 64>}, {pipeline_mode = #tpu.pipeline_mode<synchronous>, transform_indices = @transform_5, window_bounds = array<i64: 1, 64>}, {transform_indices = @transform_6, window_bounds = array<i64: 1, 288, 64>}]} {
    %c0 = arith.constant 0 : index
    %c0_0 = arith.constant 0 : index
    %c0_1 = arith.constant 0 : index
    %0 = vector.load %arg1[%c0, %c0_0, %c0_1] : memref<1x324x128xbf16, #tpu.memory_space<vmem>>, vector<1x324x128xbf16>
    %1 = vector.shape_cast %0 : vector<1x324x128xbf16> to vector<324x128xbf16>
    %c0_2 = arith.constant 0 : index
    %c0_3 = arith.constant 0 : index
    %2 = vector.load %arg3[%c0_2, %c0_3] : memref<128x128xbf16, #tpu.memory_space<vmem>>, vector<128x128xbf16>
    %cst = arith.constant dense<0.000000e+00> : vector<324x128xf32>
    %3 = tpu.matmul %1, %2, %cst {dimension_numbers = #tpu.dot_dimension_numbers<[1], [0], [0], [1], [0, 0, 1, 1], [], []>} : vector<324x128xbf16>, vector<128x128xbf16>, vector<324x128xf32> -> vector<324x128xf32>
    %c0_4 = arith.constant 0 : index
    %c0_5 = arith.constant 0 : index
    %4 = vector.load %arg4[%c0_4, %c0_5] : memref<1x128xf32, #tpu.memory_space<vmem>>, vector<1x128xf32>
    %5 = vector.broadcast %4 : vector<1x128xf32> to vector<324x128xf32>
    %6 = arith.addf %3, %5 : vector<324x128xf32>
    %cst_6 = arith.constant 0.000000e+00 : f32
    %7 = vector.broadcast %cst_6 : f32 to vector<324x128xf32>
    %8 = arith.maximumf %6, %7 : vector<324x128xf32>
    %c0_7 = arith.constant 0 : index
    %c0_8 = arith.constant 0 : index
    %9 = vector.load %arg2[%c0_7, %c0_8] : memref<324x1xf32, #tpu.memory_space<vmem>>, vector<324x1xf32>
    %10 = vector.broadcast %9 : vector<324x1xf32> to vector<324x128xf32>
    %11 = arith.mulf %8, %10 : vector<324x128xf32>
    %cst_9 = arith.constant 0.000000e+00 : bf16
    %12 = vector.broadcast %cst_9 : bf16 to vector<8x128xbf16>
    %13 = arith.truncf %11 : vector<324x128xf32> to vector<324x128xbf16>
    %14 = tpu.concatenate %12, %13, %12 in 0 : vector<8x128xbf16>, vector<324x128xbf16>, vector<8x128xbf16> -> vector<340x128xbf16>
    %c0_10 = arith.constant 0 : index
    %c0_11 = arith.constant 0 : index
    %15 = vector.load %arg6[%c0_10, %c0_11] : memref<1x64xf32, #tpu.memory_space<vmem>>, vector<1x64xf32>
    %16 = vector.shape_cast %15 : vector<1x64xf32> to vector<1x64xf32>
    %17 = vector.broadcast %16 : vector<1x64xf32> to vector<288x64xf32>
    %18 = vector.extract_strided_slice %14 {offsets = [7, 0], sizes = [288, 128], strides = [1, 1]} : vector<340x128xbf16> to vector<288x128xbf16>
    %c0_12 = arith.constant 0 : index
    %c0_13 = arith.constant 0 : index
    %c0_14 = arith.constant 0 : index
    %19 = vector.load %arg5[%c0_12, %c0_13, %c0_14] : memref<9x128x64xbf16, #tpu.memory_space<vmem>>, vector<1x128x64xbf16>
    %20 = vector.shape_cast %19 : vector<1x128x64xbf16> to vector<128x64xbf16>
    %cst_15 = arith.constant dense<0.000000e+00> : vector<288x64xf32>
    %21 = tpu.matmul %18, %20, %cst_15 {dimension_numbers = #tpu.dot_dimension_numbers<[1], [0], [0], [1], [0, 0, 1, 1], [], []>} : vector<288x128xbf16>, vector<128x64xbf16>, vector<288x64xf32> -> vector<288x64xf32>
    %22 = arith.addf %17, %21 : vector<288x64xf32>
    %23 = vector.extract_strided_slice %14 {offsets = [8, 0], sizes = [288, 128], strides = [1, 1]} : vector<340x128xbf16> to vector<288x128xbf16>
    %c1 = arith.constant 1 : index
    %c0_16 = arith.constant 0 : index
    %c0_17 = arith.constant 0 : index
    %24 = vector.load %arg5[%c1, %c0_16, %c0_17] : memref<9x128x64xbf16, #tpu.memory_space<vmem>>, vector<1x128x64xbf16>
    %25 = vector.shape_cast %24 : vector<1x128x64xbf16> to vector<128x64xbf16>
    %cst_18 = arith.constant dense<0.000000e+00> : vector<288x64xf32>
    %26 = tpu.matmul %23, %25, %cst_18 {dimension_numbers = #tpu.dot_dimension_numbers<[1], [0], [0], [1], [0, 0, 1, 1], [], []>} : vector<288x128xbf16>, vector<128x64xbf16>, vector<288x64xf32> -> vector<288x64xf32>
    %27 = arith.addf %22, %26 : vector<288x64xf32>
    %28 = vector.extract_strided_slice %14 {offsets = [9, 0], sizes = [288, 128], strides = [1, 1]} : vector<340x128xbf16> to vector<288x128xbf16>
    %c2 = arith.constant 2 : index
    %c0_19 = arith.constant 0 : index
    %c0_20 = arith.constant 0 : index
    %29 = vector.load %arg5[%c2, %c0_19, %c0_20] : memref<9x128x64xbf16, #tpu.memory_space<vmem>>, vector<1x128x64xbf16>
    %30 = vector.shape_cast %29 : vector<1x128x64xbf16> to vector<128x64xbf16>
    %cst_21 = arith.constant dense<0.000000e+00> : vector<288x64xf32>
    %31 = tpu.matmul %28, %30, %cst_21 {dimension_numbers = #tpu.dot_dimension_numbers<[1], [0], [0], [1], [0, 0, 1, 1], [], []>} : vector<288x128xbf16>, vector<128x64xbf16>, vector<288x64xf32> -> vector<288x64xf32>
    %32 = arith.addf %27, %31 : vector<288x64xf32>
    %33 = vector.extract_strided_slice %14 {offsets = [25, 0], sizes = [288, 128], strides = [1, 1]} : vector<340x128xbf16> to vector<288x128xbf16>
    %c3 = arith.constant 3 : index
    %c0_22 = arith.constant 0 : index
    %c0_23 = arith.constant 0 : index
    %34 = vector.load %arg5[%c3, %c0_22, %c0_23] : memref<9x128x64xbf16, #tpu.memory_space<vmem>>, vector<1x128x64xbf16>
    %35 = vector.shape_cast %34 : vector<1x128x64xbf16> to vector<128x64xbf16>
    %cst_24 = arith.constant dense<0.000000e+00> : vector<288x64xf32>
    %36 = tpu.matmul %33, %35, %cst_24 {dimension_numbers = #tpu.dot_dimension_numbers<[1], [0], [0], [1], [0, 0, 1, 1], [], []>} : vector<288x128xbf16>, vector<128x64xbf16>, vector<288x64xf32> -> vector<288x64xf32>
    %37 = arith.addf %32, %36 : vector<288x64xf32>
    %38 = vector.extract_strided_slice %14 {offsets = [26, 0], sizes = [288, 128], strides = [1, 1]} : vector<340x128xbf16> to vector<288x128xbf16>
    %c4 = arith.constant 4 : index
    %c0_25 = arith.constant 0 : index
    %c0_26 = arith.constant 0 : index
    %39 = vector.load %arg5[%c4, %c0_25, %c0_26] : memref<9x128x64xbf16, #tpu.memory_space<vmem>>, vector<1x128x64xbf16>
    %40 = vector.shape_cast %39 : vector<1x128x64xbf16> to vector<128x64xbf16>
    %cst_27 = arith.constant dense<0.000000e+00> : vector<288x64xf32>
    %41 = tpu.matmul %38, %40, %cst_27 {dimension_numbers = #tpu.dot_dimension_numbers<[1], [0], [0], [1], [0, 0, 1, 1], [], []>} : vector<288x128xbf16>, vector<128x64xbf16>, vector<288x64xf32> -> vector<288x64xf32>
    %42 = arith.addf %37, %41 : vector<288x64xf32>
    %43 = vector.extract_strided_slice %14 {offsets = [27, 0], sizes = [288, 128], strides = [1, 1]} : vector<340x128xbf16> to vector<288x128xbf16>
    %c5 = arith.constant 5 : index
    %c0_28 = arith.constant 0 : index
    %c0_29 = arith.constant 0 : index
    %44 = vector.load %arg5[%c5, %c0_28, %c0_29] : memref<9x128x64xbf16, #tpu.memory_space<vmem>>, vector<1x128x64xbf16>
    %45 = vector.shape_cast %44 : vector<1x128x64xbf16> to vector<128x64xbf16>
    %cst_30 = arith.constant dense<0.000000e+00> : vector<288x64xf32>
    %46 = tpu.matmul %43, %45, %cst_30 {dimension_numbers = #tpu.dot_dimension_numbers<[1], [0], [0], [1], [0, 0, 1, 1], [], []>} : vector<288x128xbf16>, vector<128x64xbf16>, vector<288x64xf32> -> vector<288x64xf32>
    %47 = arith.addf %42, %46 : vector<288x64xf32>
    %48 = vector.extract_strided_slice %14 {offsets = [43, 0], sizes = [288, 128], strides = [1, 1]} : vector<340x128xbf16> to vector<288x128xbf16>
    %c6 = arith.constant 6 : index
    %c0_31 = arith.constant 0 : index
    %c0_32 = arith.constant 0 : index
    %49 = vector.load %arg5[%c6, %c0_31, %c0_32] : memref<9x128x64xbf16, #tpu.memory_space<vmem>>, vector<1x128x64xbf16>
    %50 = vector.shape_cast %49 : vector<1x128x64xbf16> to vector<128x64xbf16>
    %cst_33 = arith.constant dense<0.000000e+00> : vector<288x64xf32>
    %51 = tpu.matmul %48, %50, %cst_33 {dimension_numbers = #tpu.dot_dimension_numbers<[1], [0], [0], [1], [0, 0, 1, 1], [], []>} : vector<288x128xbf16>, vector<128x64xbf16>, vector<288x64xf32> -> vector<288x64xf32>
    %52 = arith.addf %47, %51 : vector<288x64xf32>
    %53 = vector.extract_strided_slice %14 {offsets = [44, 0], sizes = [288, 128], strides = [1, 1]} : vector<340x128xbf16> to vector<288x128xbf16>
    %c7 = arith.constant 7 : index
    %c0_34 = arith.constant 0 : index
    %c0_35 = arith.constant 0 : index
    %54 = vector.load %arg5[%c7, %c0_34, %c0_35] : memref<9x128x64xbf16, #tpu.memory_space<vmem>>, vector<1x128x64xbf16>
    %55 = vector.shape_cast %54 : vector<1x128x64xbf16> to vector<128x64xbf16>
    %cst_36 = arith.constant dense<0.000000e+00> : vector<288x64xf32>
    %56 = tpu.matmul %53, %55, %cst_36 {dimension_numbers = #tpu.dot_dimension_numbers<[1], [0], [0], [1], [0, 0, 1, 1], [], []>} : vector<288x128xbf16>, vector<128x64xbf16>, vector<288x64xf32> -> vector<288x64xf32>
    %57 = arith.addf %52, %56 : vector<288x64xf32>
    %58 = vector.extract_strided_slice %14 {offsets = [45, 0], sizes = [288, 128], strides = [1, 1]} : vector<340x128xbf16> to vector<288x128xbf16>
    %c8 = arith.constant 8 : index
    %c0_37 = arith.constant 0 : index
    %c0_38 = arith.constant 0 : index
    %59 = vector.load %arg5[%c8, %c0_37, %c0_38] : memref<9x128x64xbf16, #tpu.memory_space<vmem>>, vector<1x128x64xbf16>
    %60 = vector.shape_cast %59 : vector<1x128x64xbf16> to vector<128x64xbf16>
    %cst_39 = arith.constant dense<0.000000e+00> : vector<288x64xf32>
    %61 = tpu.matmul %58, %60, %cst_39 {dimension_numbers = #tpu.dot_dimension_numbers<[1], [0], [0], [1], [0, 0, 1, 1], [], []>} : vector<288x128xbf16>, vector<128x64xbf16>, vector<288x64xf32> -> vector<288x64xf32>
    %62 = arith.addf %57, %61 : vector<288x64xf32>
    %cst_40 = arith.constant 0.000000e+00 : f32
    %63 = vector.broadcast %cst_40 : f32 to vector<288x64xf32>
    %64 = arith.maximumf %62, %63 : vector<288x64xf32>
    %c0_41 = arith.constant 0 : index
    %c0_42 = arith.constant 0 : index
    %c0_43 = arith.constant 0 : index
    %65 = vector.load %arg7[%c0_41, %c0_42, %c0_43] : memref<1x288x64xf32, #tpu.memory_space<vmem>>, vector<1x288x64xf32>
    %66 = vector.shape_cast %65 : vector<1x288x64xf32> to vector<288x64xf32>
    %67 = vector.shape_cast %64 : vector<288x64xf32> to vector<1x288x64xf32>
    tpu.vector_store %arg7[%c0_41, %c0_42, %c0_43], %67 {strides = array<i32>} : memref<1x288x64xf32, #tpu.memory_space<vmem>>, vector<1x288x64xf32>,
    return
  }
  func.func @transform_0(%arg0: i32) -> (i32, i32, i32) {
    %c0_i32 = arith.constant 0 : i32
    %c0_i32_0 = arith.constant 0 : i32
    %c0_i32_1 = arith.constant 0 : i32
    return %arg0, %c0_i32, %c0_i32_0 : i32, i32, i32
  }
  func.func @transform_1(%arg0: i32) -> (i32, i32) {
    %c0_i32 = arith.constant 0 : i32
    %c0_i32_0 = arith.constant 0 : i32
    %c0_i32_1 = arith.constant 0 : i32
    return %c0_i32, %c0_i32_0 : i32, i32
  }
  func.func @transform_2(%arg0: i32) -> (i32, i32) {
    %c0_i32 = arith.constant 0 : i32
    %c0_i32_0 = arith.constant 0 : i32
    %c0_i32_1 = arith.constant 0 : i32
    return %c0_i32, %c0_i32_0 : i32, i32
  }
  func.func @transform_3(%arg0: i32) -> (i32, i32) {
    %c0_i32 = arith.constant 0 : i32
    %c0_i32_0 = arith.constant 0 : i32
    %c0_i32_1 = arith.constant 0 : i32
    return %c0_i32, %c0_i32_0 : i32, i32
  }
  func.func @transform_4(%arg0: i32) -> (i32, i32, i32) {
    %c0_i32 = arith.constant 0 : i32
    %c0_i32_0 = arith.constant 0 : i32
    %c0_i32_1 = arith.constant 0 : i32
    %c0_i32_2 = arith.constant 0 : i32
    return %c0_i32, %c0_i32_0, %c0_i32_1 : i32, i32, i32
  }
  func.func @transform_5(%arg0: i32) -> (i32, i32) {
    %c0_i32 = arith.constant 0 : i32
    %c0_i32_0 = arith.constant 0 : i32
    %c0_i32_1 = arith.constant 0 : i32
    return %c0_i32, %c0_i32_0 : i32, i32
  }
  func.func @transform_6(%arg0: i32) -> (i32, i32, i32) {
    %c0_i32 = arith.constant 0 : i32
    %c0_i32_0 = arith.constant 0 : i32
    %c0_i32_1 = arith.constant 0 : i32
    return %arg0, %c0_i32, %c0_i32_0 : i32, i32, i32
  }
}

</mosaic_0001>

<llo_original>
// kernel: double_conv.1
$region0: #{double_conv.1}
  #allocation0 [shape = 'u32[]', space=smem, size = 0x4, offset = 0x4, fixed_abs, tag = 'smem constant byte address 0x4 - core index']
  #allocation1 [shape = 'u32[144,128]{1,0:T(1,128)}', space=vmem, size = 0x12000, scoped, tag = 'internal scratch']
  %s0 = inlined_call_operand.vmem [shape: bf16[2,324,128], index: 0, kind: input, shape index: {}]
  %s1 = inlined_call_operand.vmem [shape: f32[324,1], index: 1, kind: input, shape index: {}]
  %s2 = inlined_call_operand.vmem [shape: bf16[128,128], index: 2, kind: input, shape index: {}]
  %s3 = inlined_call_operand.vmem [shape: f32[1,128], index: 3, kind: input, shape index: {}]
  %s4 = inlined_call_operand.vmem [shape: bf16[9,128,64], index: 4, kind: input, shape index: {}]
  %s5 = inlined_call_operand.vmem [shape: f32[1,64], index: 5, kind: input, shape index: {}]
  %s6 = inlined_call_operand.vmem [shape: f32[2,288,64], index: 6, kind: output, shape index: {}]
  %s7 = sld [smem:[#allocation0]]
  $region57: #{double_conv.1} parent=0
    _
  %s9 = ssub.s32 1, %s7
  %s10 = scalar_select 0, %s9, %s7
  loop: start=0, step=1, limit=4
  $region2: #{double_conv.1} parent=0 // loop_pre_header
    _
  $region3: #{double_conv.1} parent=0 // loop_header
    %s12 = sphi 0, %s16
    %p13 = scmp.ge.s32.totalorder %s12, 4
    %s22 = sphi 0, %s24
    %s25 = sphi 0, %s22
    %s26 = sphi 0, %s25
    %s42 = sphi 0, %s26
    %s46 = sphi 0, %s46
    %s48 = sphi 0, %s46
    %s49 = sphi 0, %s48
    %s63 = sphi 0, %s49
    %s67 = sphi 0, %s67
    %s69 = sphi 0, %s67
    %s70 = sphi 0, %s69
    %s84 = sphi 0, %s70
    %s88 = sphi 0, %s88
    %s90 = sphi 0, %s88
    %s91 = sphi 0, %s90
    %s105 = sphi 0, %s91
    %s109 = sphi 0, %s109
    %s111 = sphi 0, %s109
    %s112 = sphi 0, %s111
    %s126 = sphi 0, %s112
    %s130 = sphi 0, %s130
    %s132 = sphi 0, %s130
    %s133 = sphi 0, %s132
    %s147 = sphi 0, %s133
    %s153 = sphi 0, %s155
    %s156 = sphi 0, %s153
    %s157 = sphi 0, %s156
    %s173 = sphi 0, %s157
  $region4: #{double_conv.1} parent=0 // loop_header_branch
    %15 = sbr.rel (%p13) target = $region8
  $region5: #{double_conv.1} parent=0 // loop_body
    %s17 = ssub.s32 %s12, 1
    %s18 = ssub.s32 %s12, 2
    %s19 = sadd.s32 %s12, 1
    %s20 = ssub.s32 %s12, %s19
    %p21 = scmp.eq.s32.totalorder %s20, 0
    %s23 = sadd.s32 %s22, 1
    %s24 = scalar_select %p21, %s22, %s23
    %p27 = pneg %p21
    %p28 = scmp.eq.s32.totalorder %s12, 1
    %p29 = por %p27, %p28
    %p30 = scmp.ne.s32.totalorder %s22, %s25
    %p31 = scmp.eq.s32.totalorder %s12, 0
    %p32 = por %p30, %p31
    %p33 = scmp.ne.s32.totalorder %s22, %s25
    %p34 = scmp.eq.s32.totalorder %s17, 1
    %p35 = por %p33, %p34
    %p36 = scmp.ne.s32.totalorder %s25, %s26
    %p37 = scmp.eq.s32.totalorder %s17, 0
    %p38 = por %p36, %p37
    %p39 = scmp.ne.s32.totalorder %s25, %s26
    %p40 = scmp.eq.s32.totalorder %s18, 1
    %p41 = por %p39, %p40
    %p43 = scmp.ne.s32.totalorder %s26, %s42
    %p44 = scmp.eq.s32.totalorder %s18, 0
    %p45 = por %p43, %p44
    %s47 = sadd.s32 %s46, 1
    %p50 = scmp.eq.s32.totalorder %s12, 1
    %p51 = scmp.ne.s32.totalorder %s46, %s48
    %p52 = scmp.eq.s32.totalorder %s12, 0
    %p53 = por %p51, %p52
    %p54 = scmp.ne.s32.totalorder %s46, %s48
    %p55 = scmp.eq.s32.totalorder %s17, 1
    %p56 = por %p54, %p55
    %p57 = scmp.ne.s32.totalorder %s48, %s49
    %p58 = scmp.eq.s32.totalorder %s17, 0
    %p59 = por %p57, %p58
    %p60 = scmp.ne.s32.totalorder %s48, %s49
    %p61 = scmp.eq.s32.totalorder %s18, 1
    %p62 = por %p60, %p61
    %p64 = scmp.ne.s32.totalorder %s49, %s63
    %p65 = scmp.eq.s32.totalorder %s18, 0
    %p66 = por %p64, %p65
    %s68 = sadd.s32 %s67, 1
    %p71 = scmp.eq.s32.totalorder %s12, 1
    %p72 = scmp.ne.s32.totalorder %s67, %s69
    %p73 = scmp.eq.s32.totalorder %s12, 0
    %p74 = por %p72, %p73
    %p75 = scmp.ne.s32.totalorder %s67, %s69
    %p76 = scmp.eq.s32.totalorder %s17, 1
    %p77 = por %p75, %p76
    %p78 = scmp.ne.s32.totalorder %s69, %s70
    %p79 = scmp.eq.s32.totalorder %s17, 0
    %p80 = por %p78, %p79
    %p81 = scmp.ne.s32.totalorder %s69, %s70
    %p82 = scmp.eq.s32.totalorder %s18, 1
    %p83 = por %p81, %p82
    %p85 = scmp.ne.s32.totalorder %s70, %s84
    %p86 = scmp.eq.s32.totalorder %s18, 0
    %p87 = por %p85, %p86
    %s89 = sadd.s32 %s88, 1
    %p92 = scmp.eq.s32.totalorder %s12, 1
    %p93 = scmp.ne.s32.totalorder %s88, %s90
    %p94 = scmp.eq.s32.totalorder %s12, 0
    %p95 = por %p93, %p94
    %p96 = scmp.ne.s32.totalorder %s88, %s90
    %p97 = scmp.eq.s32.totalorder %s17, 1
    %p98 = por %p96, %p97
    %p99 = scmp.ne.s32.totalorder %s90, %s91
    %p100 = scmp.eq.s32.totalorder %s17, 0
    %p101 = por %p99, %p100
    %p102 = scmp.ne.s32.totalorder %s90, %s91
    %p103 = scmp.eq.s32.totalorder %s18, 1
    %p104 = por %p102, %p103
    %p106 = scmp.ne.s32.totalorder %s91, %s105
    %p107 = scmp.eq.s32.totalorder %s18, 0
    %p108 = por %p106, %p107
    %s110 = sadd.s32 %s109, 1
    %p113 = scmp.eq.s32.totalorder %s12, 1
    %p114 = scmp.ne.s32.totalorder %s109, %s111
    %p115 = scmp.eq.s32.totalorder %s12, 0
    %p116 = por %p114, %p115
    %p117 = scmp.ne.s32.totalorder %s109, %s111
    %p118 = scmp.eq.s32.totalorder %s17, 1
    %p119 = por %p117, %p118
    %p120 = scmp.ne.s32.totalorder %s111, %s112
    %p121 = scmp.eq.s32.totalorder %s17, 0
    %p122 = por %p120, %p121
    %p123 = scmp.ne.s32.totalorder %s111, %s112
    %p124 = scmp.eq.s32.totalorder %s18, 1
    %p125 = por %p123, %p124
    %p127 = scmp.ne.s32.totalorder %s112, %s126
    %p128 = scmp.eq.s32.totalorder %s18, 0
    %p129 = por %p127, %p128
    %s131 = sadd.s32 %s130, 1
    %p134 = scmp.eq.s32.totalorder %s12, 1
    %p135 = scmp.ne.s32.totalorder %s130, %s132
    %p136 = scmp.eq.s32.totalorder %s12, 0
    %p137 = por %p135, %p136
    %p138 = scmp.ne.s32.totalorder %s130, %s132
    %p139 = scmp.eq.s32.totalorder %s17, 1
    %p140 = por %p138, %p139
    %p141 = scmp.ne.s32.totalorder %s132, %s133
    %p142 = scmp.eq.s32.totalorder %s17, 0
    %p143 = por %p141, %p142
    %p144 = scmp.ne.s32.totalorder %s132, %s133
    %p145 = scmp.eq.s32.totalorder %s18, 1
    %p146 = por %p144, %p145
    %p148 = scmp.ne.s32.totalorder %s133, %s147
    %p149 = scmp.eq.s32.totalorder %s18, 0
    %p150 = por %p148, %p149
    %s151 = ssub.s32 %s12, %s19
    %p152 = scmp.eq.s32.totalorder %s151, 0
    %s154 = sadd.s32 %s153, 1
    %s155 = scalar_select %p152, %s153, %s154
    %p158 = pneg %p152
    %p159 = scmp.eq.s32.totalorder %s12, 1
    %p160 = por %p158, %p159
    %p161 = scmp.ne.s32.totalorder %s153, %s156
    %p162 = scmp.eq.s32.totalorder %s12, 0
    %p163 = por %p161, %p162
    %p164 = scmp.ne.s32.totalorder %s153, %s156
    %p165 = scmp.eq.s32.totalorder %s17, 1
    %p166 = por %p164, %p165
    %p167 = scmp.ne.s32.totalorder %s156, %s157
    %p168 = scmp.eq.s32.totalorder %s17, 0
    %p169 = por %p167, %p168
    %p170 = scmp.ne.s32.totalorder %s156, %s157
    %p171 = scmp.eq.s32.totalorder %s18, 1
    %p172 = por %p170, %p171
    %p174 = scmp.ne.s32.totalorder %s157, %s173
    %p175 = scmp.eq.s32.totalorder %s18, 0
    %p176 = por %p174, %p175
    %p177 = scmp.le.s32.totalorder 1, %s12
    %p178 = scmp.lt.s32.totalorder %s12, 3
    %p179 = pnand %p177, %p178
    %p180 = pneg %p179
    // Predicated region
    $region9: #{double_conv.1} parent=5 // pred_check
      _
    $region10: #{double_conv.1} parent=5 // pred_check_branch
      %182 = sbr.rel (%p179) target = $region12
    $region11: #{double_conv.1} parent=5 // pred_region
      %s183 = ssub.s32 %s12, 1
      // Predicated region
      $region13: #{double_conv.1} parent=11 // pred_check
        %p184 = pneg %p59
      $region14: #{double_conv.1} parent=11 // pred_check_branch
        %186 = sbr.rel (%p184) target = $region16
      $region15: #{double_conv.1} parent=11 // pred_region
        _
      $region16: #{double_conv.1} parent=11 // pred_fallthru
        _
      // Predicated region
      $region17: #{double_conv.1} parent=11 // pred_check
        %p187 = pneg %p80
      $region18: #{double_conv.1} parent=11 // pred_check_branch
        %189 = sbr.rel (%p187) target = $region20
      $region19: #{double_conv.1} parent=11 // pred_region
        _
      $region20: #{double_conv.1} parent=11 // pred_fallthru
        _
      // Predicated region
      $region21: #{double_conv.1} parent=11 // pred_check
        %p190 = pneg %p101
      $region22: #{double_conv.1} parent=11 // pred_check_branch
        %192 = sbr.rel (%p190) target = $region24
      $region23: #{double_conv.1} parent=11 // pred_region
        _
      $region24: #{double_conv.1} parent=11 // pred_fallthru
        _
      // Predicated region
      $region25: #{double_conv.1} parent=11 // pred_check
        %p193 = pneg %p122
      $region26: #{double_conv.1} parent=11 // pred_check_branch
        %195 = sbr.rel (%p193) target = $region28
      $region27: #{double_conv.1} parent=11 // pred_region
        _
      $region28: #{double_conv.1} parent=11 // pred_fallthru
        _
      // Predicated region
      $region29: #{double_conv.1} parent=11 // pred_check
        %p196 = pneg %p143
      $region30: #{double_conv.1} parent=11 // pred_check_branch
        %198 = sbr.rel (%p196) target = $region32
      $region31: #{double_conv.1} parent=11 // pred_region
        _
      $region32: #{double_conv.1} parent=11 // pred_fallthru
        _
    $region12: #{double_conv.1} parent=5 // pred_fallthru
      _
    %p199 = scmp.lt.s32.totalorder %s12, 2
    // Predicated region
    $region33: #{double_conv.1} parent=5 // pred_check
      %p200 = pneg %p199
    $region34: #{double_conv.1} parent=5 // pred_check_branch
      %202 = sbr.rel (%p200) target = $region36
    $region35: #{double_conv.1} parent=5 // pred_region
      // Predicated region
      $region37: #{double_conv.1} parent=35 // pred_check
        %p203 = pneg %p32
      $region38: #{double_conv.1} parent=35 // pred_check_branch
        %205 = sbr.rel (%p203) target = $region40
      $region39: #{double_conv.1} parent=35 // pred_region
        %p206 = scmp.lt.s32.totalorder %s12, 1
        %s207 = scalar_select %p206, %s12, 1
        %s208 = smul.addr %s207, 41
        %s209 = smul.addr %s208, 4
        %s210 = scalar_lea.vmem %s0, %s209
      $region40: #{double_conv.1} parent=35 // pred_fallthru
        _
    $region36: #{double_conv.1} parent=5 // pred_fallthru
      _
    %p211 = scmp.le.s32.totalorder 1, %s12
    %p212 = scmp.lt.s32.totalorder %s12, 3
    %p213 = pnand %p211, %p212
    %p214 = pneg %p213
    // Predicated region
    $region41: #{double_conv.1} parent=5 // pred_check
      _
    $region42: #{double_conv.1} parent=5 // pred_check_branch
      %216 = sbr.rel (%p213) target = $region44
    $region43: #{double_conv.1} parent=5 // pred_region
      %s217 = ssub.s32 %s12, 1
      %p218 = scmp.lt.s32.totalorder %s17, 1
      %s219 = scalar_select %p218, %s17, 1
      %s220 = smul.addr %s219, 41
      %s221 = smul.addr %s220, 4
      %s222 = scalar_lea.vmem %s0, %s221
      %p223 = pneg %p38
      %p224 = pneg %p35
      %p225 = pneg %p59
      %p226 = pneg %p56
      %p227 = pneg %p80
      %p228 = pneg %p77
      %p229 = pneg %p101
      %p230 = pneg %p98
      %p231 = pneg %p122
      %p232 = pneg %p119
      %p233 = pneg %p143
      %p234 = pneg %p140
      %p235 = pneg %p169
      %p236 = pneg %p166
      %p237 = scmp.lt.s32.totalorder %s17, 1
      %s238 = scalar_select %p237, %s17, 1
      %s239 = smul.addr %s238, 36
      %s240 = smul.addr %s239, 8
      %s241 = scalar_lea.vmem %s6, %s240
      %p242 = scmp.lt.s32.totalorder %s17, 1
      %s243 = scalar_select %p242, %s17, 1
      %s244 = smul.addr %s243, 41
      %s245 = smul.addr %s244, 4
      %s246 = scalar_lea.vmem %s0, %s245
      %p247 = scmp.lt.s32.totalorder %s17, 1
      %s248 = scalar_select %p247, %s17, 1
      %s249 = smul.addr %s248, 36
      %s250 = smul.addr %s249, 8
      %s251 = scalar_lea.vmem %s6, %s250
      %v253 = vld [vmem:[%s246] sm:$0xf]
      %v254 = vld [vmem:[%s246 + $0x4] sm:$0xf]
      %v255 = vld [vmem:[%s246 + $0x8] sm:$0xf]
      %v256 = vld [vmem:[%s246 + $0xc] sm:$0xf]
      %v257 = vld [vmem:[%s246 + $0x10] sm:$0xf]
      %v258 = vld [vmem:[%s246 + $0x14] sm:$0xf]
      %v259 = vld [vmem:[%s246 + $0x18] sm:$0xf]
      %v260 = vld [vmem:[%s246 + $0x1c] sm:$0xf]
      %v261 = vld [vmem:[%s246 + $0x20] sm:$0xf]
      %v262 = vld [vmem:[%s246 + $0x24] sm:$0xf]
      %v263 = vld [vmem:[%s246 + $0x28] sm:$0xf]
      %v264 = vld [vmem:[%s246 + $0x2c] sm:$0xf]
      %v265 = vld [vmem:[%s246 + $0x30] sm:$0xf]
      %v266 = vld [vmem:[%s246 + $0x34] sm:$0xf]
      %v267 = vld [vmem:[%s246 + $0x38] sm:$0xf]
      %v268 = vld [vmem:[%s246 + $0x3c] sm:$0xf]
      %v269 = vld [vmem:[%s246 + $0x40] sm:$0xf]
      %v270 = vld [vmem:[%s246 + $0x44] sm:$0xf]
      %v271 = vld [vmem:[%s246 + $0x48] sm:$0xf]
      %v272 = vld [vmem:[%s246 + $0x4c] sm:$0xf]
      %v273 = vld [vmem:[%s246 + $0x50] sm:$0xf]
      %v274 = vld [vmem:[%s246 + $0x54] sm:$0xf]
      %v275 = vld [vmem:[%s246 + $0x58] sm:$0xf]
      %v276 = vld [vmem:[%s246 + $0x5c] sm:$0xf]
      %v277 = vld [vmem:[%s246 + $0x60] sm:$0xf]
      %v278 = vld [vmem:[%s246 + $0x64] sm:$0xf]
      %v279 = vld [vmem:[%s246 + $0x68] sm:$0xf]
      %v280 = vld [vmem:[%s246 + $0x6c] sm:$0xf]
      %v281 = vld [vmem:[%s246 + $0x70] sm:$0xf]
      %v282 = vld [vmem:[%s246 + $0x74] sm:$0xf]
      %v283 = vld [vmem:[%s246 + $0x78] sm:$0xf]
      %v284 = vld [vmem:[%s246 + $0x7c] sm:$0xf]
      %v285 = vld [vmem:[%s246 + $0x80] sm:$0xf]
      %v286 = vld [vmem:[%s246 + $0x84] sm:$0xf]
      %v287 = vld [vmem:[%s246 + $0x88] sm:$0xf]
      %v288 = vld [vmem:[%s246 + $0x8c] sm:$0xf]
      %v289 = vld [vmem:[%s246 + $0x90] sm:$0xf]
      %v290 = vld [vmem:[%s246 + $0x94] sm:$0xf]
      %v291 = vld [vmem:[%s246 + $0x98] sm:$0xf]
      %v292 = vld [vmem:[%s246 + $0x9c] sm:$0xf]
      %v293 = vld [vmem:[%s246 + $0xa0] sm:$0x3]
      %v294 = vld [vmem:[%s2] sm:$0xf]
      %v295 = vld [vmem:[%s2 + $0x4] sm:$0xf]
      %v296 = vld [vmem:[%s2 + $0x8] sm:$0xf]
      %v297 = vld [vmem:[%s2 + $0xc] sm:$0xf]
      %v298 = vld [vmem:[%s2 + $0x10] sm:$0xf]
      %v299 = vld [vmem:[%s2 + $0x14] sm:$0xf]
      %v300 = vld [vmem:[%s2 + $0x18] sm:$0xf]
      %v301 = vld [vmem:[%s2 + $0x1c] sm:$0xf]
      %v302 = vld [vmem:[%s2 + $0x20] sm:$0xf]
      %v303 = vld [vmem:[%s2 + $0x24] sm:$0xf]
      %v304 = vld [vmem:[%s2 + $0x28] sm:$0xf]
      %v305 = vld [vmem:[%s2 + $0x2c] sm:$0xf]
      %v306 = vld [vmem:[%s2 + $0x30] sm:$0xf]
      %v307 = vld [vmem:[%s2 + $0x34] sm:$0xf]
      %v308 = vld [vmem:[%s2 + $0x38] sm:$0xf]
      %v309 = vld [vmem:[%s2 + $0x3c] sm:$0xf]
      %v310 = vld [vmem:[%s3] sm:$0x1]
      %v312 = vlaneseq
      %v313 = vshrl.u32 %v312, 7
      %v314 = vsub.s32 0, %v313
      %v315 = vrot.slane %v310, %v314
      %v358 = vunpack.c.l.b16 %v253
      %v359 = vunpack.c.l.b16 %v254
      %v360 = vunpack.c.l.b16 %v255
      %v361 = vunpack.c.l.b16 %v256
      %v362 = vunpack.c.l.b16 %v257
      %v363 = vunpack.c.l.b16 %v258
      %v364 = vunpack.c.l.b16 %v259
      %v365 = vunpack.c.l.b16 %v260
      %v366 = vunpack.c.l.b16 %v261
      %v367 = vunpack.c.l.b16 %v262
      %v368 = vunpack.c.l.b16 %v263
      %v369 = vunpack.c.l.b16 %v264
      %v370 = vunpack.c.l.b16 %v265
      %v371 = vunpack.c.l.b16 %v266
      %v372 = vunpack.c.l.b16 %v267
      %v373 = vunpack.c.l.b16 %v268
      %v374 = vunpack.c.l.b16 %v269
      %v375 = vunpack.c.l.b16 %v270
      %v376 = vunpack.c.l.b16 %v271
      %v377 = vunpack.c.l.b16 %v272
      %v378 = vunpack.c.l.b16 %v273
      %v379 = vunpack.c.l.b16 %v274
      %v380 = vunpack.c.l.b16 %v275
      %v381 = vunpack.c.l.b16 %v276
      %v382 = vunpack.c.l.b16 %v277
      %v383 = vunpack.c.l.b16 %v278
      %v384 = vunpack.c.l.b16 %v279
      %v385 = vunpack.c.l.b16 %v280
      %v386 = vunpack.c.l.b16 %v281
      %v387 = vunpack.c.l.b16 %v282
      %v388 = vunpack.c.l.b16 %v283
      %v389 = vunpack.c.l.b16 %v284
      %v390 = vunpack.c.l.b16 %v285
      %v391 = vunpack.c.l.b16 %v286
      %v392 = vunpack.c.l.b16 %v287
      %v393 = vunpack.c.l.b16 %v288
      %v394 = vunpack.c.l.b16 %v289
      %v395 = vunpack.c.l.b16 %v290
      %v396 = vunpack.c.l.b16 %v291
      %v397 = vunpack.c.l.b16 %v292
      %v398 = vunpack.c.l.b16 %v293
      %v399 = vpack.c.b16 %v359, %v358
      %v400 = vpack.c.b16 %v361, %v360
      %v401 = vpack.c.b16 %v363, %v362
      %v402 = vpack.c.b16 %v365, %v364
      %v403 = vpack.c.b16 %v367, %v366
      %v404 = vpack.c.b16 %v369, %v368
      %v405 = vpack.c.b16 %v371, %v370
      %v406 = vpack.c.b16 %v373, %v372
      %v407 = vpack.c.b16 %v375, %v374
      %v408 = vpack.c.b16 %v377, %v376
      %v409 = vpack.c.b16 %v379, %v378
      %v410 = vpack.c.b16 %v381, %v380
      %v411 = vpack.c.b16 %v383, %v382
      %v412 = vpack.c.b16 %v385, %v384
      %v413 = vpack.c.b16 %v387, %v386
      %v414 = vpack.c.b16 %v389, %v388
      %v415 = vpack.c.b16 %v391, %v390
      %v416 = vpack.c.b16 %v393, %v392
      %v417 = vpack.c.b16 %v395, %v394
      %v418 = vpack.c.b16 %v397, %v396
      %v419 = vpack.c.b16 %v398, %v398
      %v457 = vunpack.c.l.b16 %v294
      %v458 = vunpack.c.l.b16 %v295
      %v459 = vunpack.c.l.b16 %v296
      %v460 = vunpack.c.l.b16 %v297
      %v461 = vunpack.c.l.b16 %v298
      %v462 = vunpack.c.l.b16 %v299
      %v463 = vunpack.c.l.b16 %v300
      %v464 = vunpack.c.l.b16 %v301
      %v465 = vunpack.c.l.b16 %v302
      %v466 = vunpack.c.l.b16 %v303
      %v467 = vunpack.c.l.b16 %v304
      %v468 = vunpack.c.l.b16 %v305
      %v469 = vunpack.c.l.b16 %v306
      %v470 = vunpack.c.l.b16 %v307
      %v471 = vunpack.c.l.b16 %v308
      %v472 = vunpack.c.l.b16 %v309
      %v473 = vpack.c.b16 %v458, %v457
      %v474 = vpack.c.b16 %v460, %v459
      %v475 = vpack.c.b16 %v462, %v461
      %v476 = vpack.c.b16 %v464, %v463
      %v477 = vpack.c.b16 %v466, %v465
      %v478 = vpack.c.b16 %v468, %v467
      %v479 = vpack.c.b16 %v470, %v469
      %v480 = vpack.c.b16 %v472, %v471
      %489 = vmatprep.subr.bf16.mxu0 0
      %490 = vmatpush1.bf16.msra.mxu0 %v473
      %491 = vmatprep.subr.bf16.mxu0 0
      %492 = vmatpush1.bf16.msra.mxu0 %v474
      %493 = vmatprep.subr.bf16.mxu0 0
      %494 = vmatpush1.bf16.msra.mxu0 %v475
      %495 = vmatprep.subr.bf16.mxu0 0
      %496 = vmatpush1.bf16.msra.mxu0 %v476
      %497 = vmatprep.subr.bf16.mxu0 0
      %498 = vmatpush1.bf16.msra.mxu0 %v477
      %499 = vmatprep.subr.bf16.mxu0 0
      %500 = vmatpush1.bf16.msra.mxu0 %v478
      %501 = vmatprep.subr.bf16.mxu0 0
      %502 = vmatpush1.bf16.msra.mxu0 %v479
      %503 = vmatprep.subr.bf16.mxu0 0
      %504 = vmatpush1.bf16.msra.mxu0 %v480
      %505 = vmatprep.subr.bf16.mxu0 0
      %506 = vmatpush1.bf16.msra.mxu0 0
      %507 = vmatprep.subr.bf16.mxu0 0
      %508 = vmatpush1.bf16.msra.mxu0 0
      %509 = vmatprep.subr.bf16.mxu0 0
      %510 = vmatpush1.bf16.msra.mxu0 0
      %511 = vmatprep.subr.bf16.mxu0 0
      %512 = vmatpush1.bf16.msra.mxu0 0
      %513 = vmatprep.subr.bf16.mxu0 0
      %514 = vmatpush1.bf16.msra.mxu0 0
      %515 = vmatprep.subr.bf16.mxu0 0
      %516 = vmatpush1.bf16.msra.mxu0 0
      %517 = vmatprep.subr.bf16.mxu0 0
      %518 = vmatpush1.bf16.msra.mxu0 0
      %519 = vmatprep.subr.bf16.mxu0 0
      %520 = vmatpush1.bf16.msra.mxu0 0
      %521 = vmatprep.mubr.bf16.mxu0 0
      %522 = vmatmul.mubr.bf16.gmra.mrb[0].mxu0 %v399
      %v523 = vpop.f32.mrb[0].mxu0
      %v524 = vadd.f32 %v315, %v523
      %v525 = vpop.f32.mrb[0].mxu0
      %v526 = vpop.f32.mrb[0].mxu0
      %v527 = vadd.f32 %v315, %v526
      %v528 = vpop.f32.mrb[0].mxu0
      %529 = vmatprep.mubr.bf16.mxu0 0
      %530 = vmatmul.mubr.bf16.gmra.mrb[0].mxu0 %v400
      %v531 = vpop.f32.mrb[0].mxu0
      %v532 = vadd.f32 %v315, %v531
      %v533 = vpop.f32.mrb[0].mxu0
      %v534 = vpop.f32.mrb[0].mxu0
      %v535 = vadd.f32 %v315, %v534
      %v536 = vpop.f32.mrb[0].mxu0
      %537 = vmatprep.mubr.bf16.mxu0 0
      %538 = vmatmul.mubr.bf16.gmra.mrb[0].mxu0 %v401
      %v539 = vpop.f32.mrb[0].mxu0
      %v540 = vadd.f32 %v315, %v539
      %v541 = vpop.f32.mrb[0].mxu0
      %v542 = vpop.f32.mrb[0].mxu0
      %v543 = vadd.f32 %v315, %v542
      %v544 = vpop.f32.mrb[0].mxu0
      %545 = vmatprep.mubr.bf16.mxu0 0
      %546 = vmatmul.mubr.bf16.gmra.mrb[0].mxu0 %v402
      %v547 = vpop.f32.mrb[0].mxu0
      %v548 = vadd.f32 %v315, %v547
      %v549 = vpop.f32.mrb[0].mxu0
      %v550 = vpop.f32.mrb[0].mxu0
      %v551 = vadd.f32 %v315, %v550
      %v552 = vpop.f32.mrb[0].mxu0
      %553 = vmatprep.mubr.bf16.mxu0 0
      %554 = vmatmul.mubr.bf16.gmra.mrb[0].mxu0 %v403
      %v555 = vpop.f32.mrb[0].mxu0
      %v556 = vadd.f32 %v315, %v555
      %v557 = vpop.f32.mrb[0].mxu0
      %v558 = vpop.f32.mrb[0].mxu0
      %v559 = vadd.f32 %v315, %v558
      %v560 = vpop.f32.mrb[0].mxu0
      %561 = vmatprep.mubr.bf16.mxu0 0
      %562 = vmatmul.mubr.bf16.gmra.mrb[0].mxu0 %v404
      %v563 = vpop.f32.mrb[0].mxu0
      %v564 = vadd.f32 %v315, %v563
      %v565 = vpop.f32.mrb[0].mxu0
      %v566 = vpop.f32.mrb[0].mxu0
      %v567 = vadd.f32 %v315, %v566
      %v568 = vpop.f32.mrb[0].mxu0
      %569 = vmatprep.mubr.bf16.mxu0 0
      %570 = vmatmul.mubr.bf16.gmra.mrb[0].mxu0 %v405
      %v571 = vpop.f32.mrb[0].mxu0
      %v572 = vadd.f32 %v315, %v571
      %v573 = vpop.f32.mrb[0].mxu0
      %v574 = vpop.f32.mrb[0].mxu0
      %v575 = vadd.f32 %v315, %v574
      %v576 = vpop.f32.mrb[0].mxu0
      %577 = vmatprep.mubr.bf16.mxu0 0
      %578 = vmatmul.mubr.bf16.gmra.mrb[0].mxu0 %v406
      %v579 = vpop.f32.mrb[0].mxu0
      %v580 = vadd.f32 %v315, %v579
      %v581 = vpop.f32.mrb[0].mxu0
      %v582 = vpop.f32.mrb[0].mxu0
      %v583 = vadd.f32 %v315, %v582
      %v584 = vpop.f32.mrb[0].mxu0
      %585 = vmatprep.mubr.bf16.mxu0 0
      %586 = vmatmul.mubr.bf16.gmra.mrb[0].mxu0 %v407
      %v587 = vpop.f32.mrb[0].mxu0
      %v588 = vadd.f32 %v315, %v587
      %v589 = vpop.f32.mrb[0].mxu0
      %v590 = vpop.f32.mrb[0].mxu0
      %v591 = vadd.f32 %v315, %v590
      %v592 = vpop.f32.mrb[0].mxu0
      %593 = vmatprep.mubr.bf16.mxu0 0
      %594 = vmatmul.mubr.bf16.gmra.mrb[0].mxu0 %v408
      %v595 = vpop.f32.mrb[0].mxu0
      %v596 = vadd.f32 %v315, %v595
      %v597 = vpop.f32.mrb[0].mxu0
      %v598 = vpop.f32.mrb[0].mxu0
      %v599 = vadd.f32 %v315, %v598
      %v600 = vpop.f32.mrb[0].mxu0
      %601 = vmatprep.mubr.bf16.mxu0 0
      %602 = vmatmul.mubr.bf16.gmra.mrb[0].mxu0 %v409
      %v603 = vpop.f32.mrb[0].mxu0
      %v604 = vadd.f32 %v315, %v603
      %v605 = vpop.f32.mrb[0].mxu0
      %v606 = vpop.f32.mrb[0].mxu0
      %v607 = vadd.f32 %v315, %v606
      %v608 = vpop.f32.mrb[0].mxu0
      %609 = vmatprep.mubr.bf16.mxu0 0
      %610 = vmatmul.mubr.bf16.gmra.mrb[0].mxu0 %v410
      %v611 = vpop.f32.mrb[0].mxu0
      %v612 = vadd.f32 %v315, %v611
      %v613 = vpop.f32.mrb[0].mxu0
      %v614 = vpop.f32.mrb[0].mxu0
      %v615 = vadd.f32 %v315, %v614
      %v616 = vpop.f32.mrb[0].mxu0
      %617 = vmatprep.mubr.bf16.mxu0 0
      %618 = vmatmul.mubr.bf16.gmra.mrb[0].mxu0 %v411
      %v619 = vpop.f32.mrb[0].mxu0
      %v620 = vadd.f32 %v315, %v619
      %v621 = vpop.f32.mrb[0].mxu0
      %v622 = vpop.f32.mrb[0].mxu0
      %v623 = vadd.f32 %v315, %v622
      %v624 = vpop.f32.mrb[0].mxu0
      %625 = vmatprep.mubr.bf16.mxu0 0
      %626 = vmatmul.mubr.bf16.gmra.mrb[0].mxu0 %v412
      %v627 = vpop.f32.mrb[0].mxu0
      %v628 = vadd.f32 %v315, %v627
      %v629 = vpop.f32.mrb[0].mxu0
      %v630 = vpop.f32.mrb[0].mxu0
      %v631 = vadd.f32 %v315, %v630
      %v632 = vpop.f32.mrb[0].mxu0
      %633 = vmatprep.mubr.bf16.mxu0 0
      %634 = vmatmul.mubr.bf16.gmra.mrb[0].mxu0 %v413
      %v635 = vpop.f32.mrb[0].mxu0
      %v636 = vadd.f32 %v315, %v635
      %v637 = vpop.f32.mrb[0].mxu0
      %v638 = vpop.f32.mrb[0].mxu0
      %v639 = vadd.f32 %v315, %v638
      %v640 = vpop.f32.mrb[0].mxu0
      %641 = vmatprep.mubr.bf16.mxu0 0
      %642 = vmatmul.mubr.bf16.gmra.mrb[0].mxu0 %v414
      %v643 = vpop.f32.mrb[0].mxu0
      %v644 = vadd.f32 %v315, %v643
      %v645 = vpop.f32.mrb[0].mxu0
      %v646 = vpop.f32.mrb[0].mxu0
      %v647 = vadd.f32 %v315, %v646
      %v648 = vpop.f32.mrb[0].mxu0
      %649 = vmatprep.mubr.bf16.mxu0 0
      %650 = vmatmul.mubr.bf16.gmra.mrb[0].mxu0 %v415
      %v651 = vpop.f32.mrb[0].mxu0
      %v652 = vadd.f32 %v315, %v651
      %v653 = vpop.f32.mrb[0].mxu0
      %v654 = vpop.f32.mrb[0].mxu0
      %v655 = vadd.f32 %v315, %v654
      %v656 = vpop.f32.mrb[0].mxu0
      %657 = vmatprep.mubr.bf16.mxu0 0
      %658 = vmatmul.mubr.bf16.gmra.mrb[0].mxu0 %v416
      %v659 = vpop.f32.mrb[0].mxu0
      %v660 = vadd.f32 %v315, %v659
      %v661 = vpop.f32.mrb[0].mxu0
      %v662 = vpop.f32.mrb[0].mxu0
      %v663 = vadd.f32 %v315, %v662
      %v664 = vpop.f32.mrb[0].mxu0
      %665 = vmatprep.mubr.bf16.mxu0 0
      %666 = vmatmul.mubr.bf16.gmra.mrb[0].mxu0 %v417
      %v667 = vpop.f32.mrb[0].mxu0
      %v668 = vadd.f32 %v315, %v667
      %v669 = vpop.f32.mrb[0].mxu0
      %v670 = vpop.f32.mrb[0].mxu0
      %v671 = vadd.f32 %v315, %v670
      %v672 = vpop.f32.mrb[0].mxu0
      %673 = vmatprep.mubr.bf16.mxu0 0
      %674 = vmatmul.mubr.bf16.gmra.mrb[0].mxu0 %v418
      %v675 = vpop.f32.mrb[0].mxu0
      %v676 = vadd.f32 %v315, %v675
      %v677 = vpop.f32.mrb[0].mxu0
      %v678 = vpop.f32.mrb[0].mxu0
      %v679 = vadd.f32 %v315, %v678
      %v680 = vpop.f32.mrb[0].mxu0
      %681 = vmatprep.mubr.bf16.mxu0 0
      %682 = vmatmul.mubr.bf16.gmra.mrb[0].mxu0 %v419
      %v683 = vpop.f32.mrb[0].mxu0
      %v684 = vadd.f32 %v315, %v683
      %v685 = vpop.f32.mrb[0].mxu0
      %v686 = vpop.f32.mrb[0].mxu0
      %v687 = vpop.f32.mrb[0].mxu0
      %688 = vdwg.mxu0
      %v689 = vmax.f32 %v524, 0.0
      %v690 = vmax.f32 %v527, 0.0
      %v691 = vmax.f32 %v532, 0.0
      %v692 = vmax.f32 %v535, 0.0
      %v693 = vmax.f32 %v540, 0.0
      %v694 = vmax.f32 %v543, 0.0
      %v695 = vmax.f32 %v548, 0.0
      %v696 = vmax.f32 %v551, 0.0
      %v697 = vmax.f32 %v556, 0.0
      %v698 = vmax.f32 %v559, 0.0
      %v699 = vmax.f32 %v564, 0.0
      %v700 = vmax.f32 %v567, 0.0
      %v701 = vmax.f32 %v572, 0.0
      %v702 = vmax.f32 %v575, 0.0
      %v703 = vmax.f32 %v580, 0.0
      %v704 = vmax.f32 %v583, 0.0
      %v705 = vmax.f32 %v588, 0.0
      %v706 = vmax.f32 %v591, 0.0
      %v707 = vmax.f32 %v596, 0.0
      %v708 = vmax.f32 %v599, 0.0
      %v709 = vmax.f32 %v604, 0.0
      %v710 = vmax.f32 %v607, 0.0
      %v711 = vmax.f32 %v612, 0.0
      %v712 = vmax.f32 %v615, 0.0
      %v713 = vmax.f32 %v620, 0.0
      %v714 = vmax.f32 %v623, 0.0
      %v715 = vmax.f32 %v628, 0.0
      %v716 = vmax.f32 %v631, 0.0
      %v717 = vmax.f32 %v636, 0.0
      %v718 = vmax.f32 %v639, 0.0
      %v719 = vmax.f32 %v644, 0.0
      %v720 = vmax.f32 %v647, 0.0
      %v721 = vmax.f32 %v652, 0.0
      %v722 = vmax.f32 %v655, 0.0
      %v723 = vmax.f32 %v660, 0.0
      %v724 = vmax.f32 %v663, 0.0
      %v725 = vmax.f32 %v668, 0.0
      %v726 = vmax.f32 %v671, 0.0
      %v727 = vmax.f32 %v676, 0.0
      %v728 = vmax.f32 %v679, 0.0
      %v729 = vmax.f32 %v684, 0.0
      %v730 = vld [vmem:[%s1] sm:$0xff]
      %v731 = vld [vmem:[%s1 + $0x8] sm:$0xff]
      %v732 = vld [vmem:[%s1 + $0x10] sm:$0xff]
      %v733 = vld [vmem:[%s1 + $0x18] sm:$0xff]
      %v734 = vld [vmem:[%s1 + $0x20] sm:$0xff]
      %v735 = vld [vmem:[%s1 + $0x28] sm:$0xff]
      %v736 = vld [vmem:[%s1 + $0x30] sm:$0xff]
      %v737 = vld [vmem:[%s1 + $0x38] sm:$0xff]
      %v738 = vld [vmem:[%s1 + $0x40] sm:$0xff]
      %v739 = vld [vmem:[%s1 + $0x48] sm:$0xff]
      %v740 = vld [vmem:[%s1 + $0x50] sm:$0xff]
      %v741 = vld [vmem:[%s1 + $0x58] sm:$0xff]
      %v742 = vld [vmem:[%s1 + $0x60] sm:$0xff]
      %v743 = vld [vmem:[%s1 + $0x68] sm:$0xff]
      %v744 = vld [vmem:[%s1 + $0x70] sm:$0xff]
      %v745 = vld [vmem:[%s1 + $0x78] sm:$0xff]
      %v746 = vld [vmem:[%s1 + $0x80] sm:$0xff]
      %v747 = vld [vmem:[%s1 + $0x88] sm:$0xff]
      %v748 = vld [vmem:[%s1 + $0x90] sm:$0xff]
      %v749 = vld [vmem:[%s1 + $0x98] sm:$0xff]
      %v750 = vld [vmem:[%s1 + $0xa0] sm:$0xff]
      %v751 = vld [vmem:[%s1 + $0xa8] sm:$0xff]
      %v752 = vld [vmem:[%s1 + $0xb0] sm:$0xff]
      %v753 = vld [vmem:[%s1 + $0xb8] sm:$0xff]
      %v754 = vld [vmem:[%s1 + $0xc0] sm:$0xff]
      %v755 = vld [vmem:[%s1 + $0xc8] sm:$0xff]
      %v756 = vld [vmem:[%s1 + $0xd0] sm:$0xff]
      %v757 = vld [vmem:[%s1 + $0xd8] sm:$0xff]
      %v758 = vld [vmem:[%s1 + $0xe0] sm:$0xff]
      %v759 = vld [vmem:[%s1 + $0xe8] sm:$0xff]
      %v760 = vld [vmem:[%s1 + $0xf0] sm:$0xff]
      %v761 = vld [vmem:[%s1 + $0xf8] sm:$0xff]
      %v762 = vld [vmem:[%s1 + $0x100] sm:$0xff]
      %v763 = vld [vmem:[%s1 + $0x108] sm:$0xff]
      %v764 = vld [vmem:[%s1 + $0x110] sm:$0xff]
      %v765 = vld [vmem:[%s1 + $0x118] sm:$0xff]
      %v766 = vld [vmem:[%s1 + $0x120] sm:$0xff]
      %v767 = vld [vmem:[%s1 + $0x128] sm:$0xff]
      %v768 = vld [vmem:[%s1 + $0x130] sm:$0xff]
      %v769 = vld [vmem:[%s1 + $0x138] sm:$0xff]
      %v770 = vld [vmem:[%s1 + $0x140] sm:$0xf]
      %772 = vset.pattern.permute.xlu0 0
      %773 = vperm.xlu0 %772, %v730
      %v774 = vpop.permute.xlu0 %773
      %777 = vset.pattern.permute.xlu0 0
      %778 = vperm.xlu0 %777, %v731
      %v779 = vpop.permute.xlu0 %778
      %782 = vset.pattern.permute.xlu0 0
      %783 = vperm.xlu0 %782, %v732
      %v784 = vpop.permute.xlu0 %783
      %787 = vset.pattern.permute.xlu0 0
      %788 = vperm.xlu0 %787, %v733
      %v789 = vpop.permute.xlu0 %788
      %792 = vset.pattern.permute.xlu0 0
      %793 = vperm.xlu0 %792, %v734
      %v794 = vpop.permute.xlu0 %793
      %797 = vset.pattern.permute.xlu0 0
      %798 = vperm.xlu0 %797, %v735
      %v799 = vpop.permute.xlu0 %798
      %802 = vset.pattern.permute.xlu0 0
      %803 = vperm.xlu0 %802, %v736
      %v804 = vpop.permute.xlu0 %803
      %807 = vset.pattern.permute.xlu0 0
      %808 = vperm.xlu0 %807, %v737
      %v809 = vpop.permute.xlu0 %808
      %812 = vset.pattern.permute.xlu0 0
      %813 = vperm.xlu0 %812, %v738
      %v814 = vpop.permute.xlu0 %813
      %817 = vset.pattern.permute.xlu0 0
      %818 = vperm.xlu0 %817, %v739
      %v819 = vpop.permute.xlu0 %818
      %822 = vset.pattern.permute.xlu0 0
      %823 = vperm.xlu0 %822, %v740
      %v824 = vpop.permute.xlu0 %823
      %827 = vset.pattern.permute.xlu0 0
      %828 = vperm.xlu0 %827, %v741
      %v829 = vpop.permute.xlu0 %828
      %832 = vset.pattern.permute.xlu0 0
      %833 = vperm.xlu0 %832, %v742
      %v834 = vpop.permute.xlu0 %833
      %837 = vset.pattern.permute.xlu0 0
      %838 = vperm.xlu0 %837, %v743
      %v839 = vpop.permute.xlu0 %838
      %842 = vset.pattern.permute.xlu0 0
      %843 = vperm.xlu0 %842, %v744
      %v844 = vpop.permute.xlu0 %843
      %847 = vset.pattern.permute.xlu0 0
      %848 = vperm.xlu0 %847, %v745
      %v849 = vpop.permute.xlu0 %848
      %852 = vset.pattern.permute.xlu0 0
      %853 = vperm.xlu0 %852, %v746
      %v854 = vpop.permute.xlu0 %853
      %857 = vset.pattern.permute.xlu0 0
      %858 = vperm.xlu0 %857, %v747
      %v859 = vpop.permute.xlu0 %858
      %862 = vset.pattern.permute.xlu0 0
      %863 = vperm.xlu0 %862, %v748
      %v864 = vpop.permute.xlu0 %863
      %867 = vset.pattern.permute.xlu0 0
      %868 = vperm.xlu0 %867, %v749
      %v869 = vpop.permute.xlu0 %868
      %872 = vset.pattern.permute.xlu0 0
      %873 = vperm.xlu0 %872, %v750
      %v874 = vpop.permute.xlu0 %873
      %877 = vset.pattern.permute.xlu0 0
      %878 = vperm.xlu0 %877, %v751
      %v879 = vpop.permute.xlu0 %878
      %882 = vset.pattern.permute.xlu0 0
      %883 = vperm.xlu0 %882, %v752
      %v884 = vpop.permute.xlu0 %883
      %887 = vset.pattern.permute.xlu0 0
      %888 = vperm.xlu0 %887, %v753
      %v889 = vpop.permute.xlu0 %888
      %892 = vset.pattern.permute.xlu0 0
      %893 = vperm.xlu0 %892, %v754
      %v894 = vpop.permute.xlu0 %893
      %897 = vset.pattern.permute.xlu0 0
      %898 = vperm.xlu0 %897, %v755
      %v899 = vpop.permute.xlu0 %898
      %902 = vset.pattern.permute.xlu0 0
      %903 = vperm.xlu0 %902, %v756
      %v904 = vpop.permute.xlu0 %903
      %907 = vset.pattern.permute.xlu0 0
      %908 = vperm.xlu0 %907, %v757
      %v909 = vpop.permute.xlu0 %908
      %912 = vset.pattern.permute.xlu0 0
      %913 = vperm.xlu0 %912, %v758
      %v914 = vpop.permute.xlu0 %913
      %917 = vset.pattern.permute.xlu0 0
      %918 = vperm.xlu0 %917, %v759
      %v919 = vpop.permute.xlu0 %918
      %922 = vset.pattern.permute.xlu0 0
      %923 = vperm.xlu0 %922, %v760
      %v924 = vpop.permute.xlu0 %923
      %927 = vset.pattern.permute.xlu0 0
      %928 = vperm.xlu0 %927, %v761
      %v929 = vpop.permute.xlu0 %928
      %932 = vset.pattern.permute.xlu0 0
      %933 = vperm.xlu0 %932, %v762
      %v934 = vpop.permute.xlu0 %933
      %937 = vset.pattern.permute.xlu0 0
      %938 = vperm.xlu0 %937, %v763
      %v939 = vpop.permute.xlu0 %938
      %942 = vset.pattern.permute.xlu0 0
      %943 = vperm.xlu0 %942, %v764
      %v944 = vpop.permute.xlu0 %943
      %947 = vset.pattern.permute.xlu0 0
      %948 = vperm.xlu0 %947, %v765
      %v949 = vpop.permute.xlu0 %948
      %952 = vset.pattern.permute.xlu0 0
      %953 = vperm.xlu0 %952, %v766
      %v954 = vpop.permute.xlu0 %953
      %957 = vset.pattern.permute.xlu0 0
      %958 = vperm.xlu0 %957, %v767
      %v959 = vpop.permute.xlu0 %958
      %962 = vset.pattern.permute.xlu0 0
      %963 = vperm.xlu0 %962, %v768
      %v964 = vpop.permute.xlu0 %963
      %967 = vset.pattern.permute.xlu0 0
      %968 = vperm.xlu0 %967, %v769
      %v969 = vpop.permute.xlu0 %968
      %972 = vset.pattern.permute.xlu0 0
      %973 = vperm.xlu0 %972, %v770
      %v974 = vpop.permute.xlu0 %973
      %v976 = vmul.f32 %v689, %v774
      %v977 = vmul.f32 %v690, %v779
      %v978 = vmul.f32 %v691, %v784
      %v979 = vmul.f32 %v692, %v789
      %v980 = vmul.f32 %v693, %v794
      %v981 = vmul.f32 %v694, %v799
      %v982 = vmul.f32 %v695, %v804
      %v983 = vmul.f32 %v696, %v809
      %v984 = vmul.f32 %v697, %v814
      %v985 = vmul.f32 %v698, %v819
      %v986 = vmul.f32 %v699, %v824
      %v987 = vmul.f32 %v700, %v829
      %v988 = vmul.f32 %v701, %v834
      %v989 = vmul.f32 %v702, %v839
      %v990 = vmul.f32 %v703, %v844
      %v991 = vmul.f32 %v704, %v849
      %v992 = vmul.f32 %v705, %v854
      %v993 = vmul.f32 %v706, %v859
      %v994 = vmul.f32 %v707, %v864
      %v995 = vmul.f32 %v708, %v869
      %v996 = vmul.f32 %v709, %v874
      %v997 = vmul.f32 %v710, %v879
      %v998 = vmul.f32 %v711, %v884
      %v999 = vmul.f32 %v712, %v889
      %v1000 = vmul.f32 %v713, %v894
      %v1001 = vmul.f32 %v714, %v899
      %v1002 = vmul.f32 %v715, %v904
      %v1003 = vmul.f32 %v716, %v909
      %v1004 = vmul.f32 %v717, %v914
      %v1005 = vmul.f32 %v718, %v919
      %v1006 = vmul.f32 %v719, %v924
      %v1007 = vmul.f32 %v720, %v929
      %v1008 = vmul.f32 %v721, %v934
      %v1009 = vmul.f32 %v722, %v939
      %v1010 = vmul.f32 %v723, %v944
      %v1011 = vmul.f32 %v724, %v949
      %v1012 = vmul.f32 %v725, %v954
      %v1013 = vmul.f32 %v726, %v959
      %v1014 = vmul.f32 %v727, %v964
      %v1015 = vmul.f32 %v728, %v969
      %v1016 = vmul.f32 %v729, %v974
      %v1017 = vpack.c.bf16 %v977, %v976
      %v1018 = vpack.c.bf16 %v979, %v978
      %v1019 = vpack.c.bf16 %v981, %v980
      %v1020 = vpack.c.bf16 %v983, %v982
      %v1021 = vpack.c.bf16 %v985, %v984
      %v1022 = vpack.c.bf16 %v987, %v986
      %v1023 = vpack.c.bf16 %v989, %v988
      %v1024 = vpack.c.bf16 %v991, %v990
      %v1025 = vpack.c.bf16 %v993, %v992
      %v1026 = vpack.c.bf16 %v995, %v994
      %v1027 = vpack.c.bf16 %v997, %v996
      %v1028 = vpack.c.bf16 %v999, %v998
      %v1029 = vpack.c.bf16 %v1001, %v1000
      %v1030 = vpack.c.bf16 %v1003, %v1002
      %v1031 = vpack.c.bf16 %v1005, %v1004
      %v1032 = vpack.c.bf16 %v1007, %v1006
      %v1033 = vpack.c.bf16 %v1009, %v1008
      %v1034 = vpack.c.bf16 %v1011, %v1010
      %v1035 = vpack.c.bf16 %v1013, %v1012
      %v1036 = vpack.c.bf16 %v1015, %v1014
      %v1037 = vpack.c.bf16 %v1016, %v1016
      %vm1059 = vcmask 1043456
      %v1060 = vrot.slane %v1017, 4
      %v1061 = vrot.slane %v1018, 4
      %v1062 = vsel %vm1059, %v1060, %v1061
      %v1063 = vrot.slane %v1019, 4
      %v1064 = vsel %vm1059, %v1061, %v1063
      %v1065 = vrot.slane %v1020, 4
      %v1066 = vsel %vm1059, %v1063, %v1065
      %v1067 = vrot.slane %v1021, 4
      %v1068 = vsel %vm1059, %v1065, %v1067
      %v1069 = vrot.slane %v1022, 4
      %v1070 = vsel %vm1059, %v1067, %v1069
      %v1071 = vrot.slane %v1023, 4
      %v1072 = vsel %vm1059, %v1069, %v1071
      %v1073 = vrot.slane %v1024, 4
      %v1074 = vsel %vm1059, %v1071, %v1073
      %v1075 = vrot.slane %v1025, 4
      %v1076 = vsel %vm1059, %v1073, %v1075
      %v1077 = vrot.slane %v1026, 4
      %v1078 = vsel %vm1059, %v1075, %v1077
      %v1079 = vrot.slane %v1027, 4
      %v1080 = vsel %vm1059, %v1077, %v1079
      %v1081 = vrot.slane %v1028, 4
      %v1082 = vsel %vm1059, %v1079, %v1081
      %v1083 = vrot.slane %v1029, 4
      %v1084 = vsel %vm1059, %v1081, %v1083
      %v1085 = vrot.slane %v1030, 4
      %v1086 = vsel %vm1059, %v1083, %v1085
      %v1087 = vrot.slane %v1031, 4
      %v1088 = vsel %vm1059, %v1085, %v1087
      %v1089 = vrot.slane %v1032, 4
      %v1090 = vsel %vm1059, %v1087, %v1089
      %v1091 = vrot.slane %v1033, 4
      %v1092 = vsel %vm1059, %v1089, %v1091
      %v1093 = vrot.slane %v1034, 4
      %v1094 = vsel %vm1059, %v1091, %v1093
      %v1095 = vrot.slane %v1035, 4
      %v1096 = vsel %vm1059, %v1093, %v1095
      %v1097 = vrot.slane %v1036, 4
      %v1098 = vsel %vm1059, %v1095, %v1097
      %v1099 = vrot.slane %v1037, 4
      %v1100 = vsel %vm1059, %v1097, %v1099
      %vm1101 = vcmask 1043456
      %v1104 = vsel %vm1101, 0, %v1060
      %vm1105 = vcmask 1045504
      %v1107 = vsel %vm1105, %v1100, 0
      %v1108 = vld [vmem:[%s5] sm:$0x1]
      %v1110 = vlaneseq
      %v1111 = vshrl.u32 %v1110, 7
      %v1112 = vsub.s32 0, %v1111
      %v1113 = vrot.slane %v1108, %v1112
      %v1115 = vld [vmem:[%s4] sm:$0xf]
      %v1116 = vld [vmem:[%s4 + $0x4] sm:$0xf]
      %v1117 = vld [vmem:[%s4 + $0x8] sm:$0xf]
      %v1118 = vld [vmem:[%s4 + $0xc] sm:$0xf]
      %v1119 = vld [vmem:[%s4 + $0x10] sm:$0xf]
      %v1120 = vld [vmem:[%s4 + $0x14] sm:$0xf]
      %v1121 = vld [vmem:[%s4 + $0x18] sm:$0xf]
      %v1122 = vld [vmem:[%s4 + $0x1c] sm:$0xf]
      %v1123 = vld [vmem:[%s4 + $0x20] sm:$0xf]
      %v1124 = vld [vmem:[%s4 + $0x24] sm:$0xf]
      %v1125 = vld [vmem:[%s4 + $0x28] sm:$0xf]
      %v1126 = vld [vmem:[%s4 + $0x2c] sm:$0xf]
      %v1127 = vld [vmem:[%s4 + $0x30] sm:$0xf]
      %v1128 = vld [vmem:[%s4 + $0x34] sm:$0xf]
      %v1129 = vld [vmem:[%s4 + $0x38] sm:$0xf]
      %v1130 = vld [vmem:[%s4 + $0x3c] sm:$0xf]
      %vm1131 = vsmask.f32 4352
      %v1132 = vshrl.u32 %v1104, 16
      %v1134 = vrot.slane %v1132, 3
      %v1135 = vshll.u32 %v1104, 16
      %v1137 = vrot.slane %v1135, 4
      %v1138 = vor.u32 %v1134, %v1137
      %v1140 = vshrl.u32 %v1062, 16
      %v1142 = vrot.slane %v1140, 3
      %v1143 = vshll.u32 %v1062, 16
      %v1145 = vrot.slane %v1143, 4
      %v1146 = vor.u32 %v1142, %v1145
      %v1147 = vsel %vm1131, %v1138, %v1146
      %v1149 = vshrl.u32 %v1064, 16
      %v1151 = vrot.slane %v1149, 3
      %v1152 = vshll.u32 %v1064, 16
      %v1154 = vrot.slane %v1152, 4
      %v1155 = vor.u32 %v1151, %v1154
      %v1156 = vsel %vm1131, %v1146, %v1155
      %v1158 = vshrl.u32 %v1066, 16
      %v1160 = vrot.slane %v1158, 3
      %v1161 = vshll.u32 %v1066, 16
      %v1163 = vrot.slane %v1161, 4
      %v1164 = vor.u32 %v1160, %v1163
      %v1165 = vsel %vm1131, %v1155, %v1164
      %v1167 = vshrl.u32 %v1068, 16
      %v1169 = vrot.slane %v1167, 3
      %v1170 = vshll.u32 %v1068, 16
      %v1172 = vrot.slane %v1170, 4
      %v1173 = vor.u32 %v1169, %v1172
      %v1174 = vsel %vm1131, %v1164, %v1173
      %v1176 = vshrl.u32 %v1070, 16
      %v1178 = vrot.slane %v1176, 3
      %v1179 = vshll.u32 %v1070, 16
      %v1181 = vrot.slane %v1179, 4
      %v1182 = vor.u32 %v1178, %v1181
      %v1183 = vsel %vm1131, %v1173, %v1182
      %v1185 = vshrl.u32 %v1072, 16
      %v1187 = vrot.slane %v1185, 3
      %v1188 = vshll.u32 %v1072, 16
      %v1190 = vrot.slane %v1188, 4
      %v1191 = vor.u32 %v1187, %v1190
      %v1192 = vsel %vm1131, %v1182, %v1191
      %v1194 = vshrl.u32 %v1074, 16
      %v1196 = vrot.slane %v1194, 3
      %v1197 = vshll.u32 %v1074, 16
      %v1199 = vrot.slane %v1197, 4
      %v1200 = vor.u32 %v1196, %v1199
      %v1201 = vsel %vm1131, %v1191, %v1200
      %v1203 = vshrl.u32 %v1076, 16
      %v1205 = vrot.slane %v1203, 3
      %v1206 = vshll.u32 %v1076, 16
      %v1208 = vrot.slane %v1206, 4
      %v1209 = vor.u32 %v1205, %v1208
      %v1210 = vsel %vm1131, %v1200, %v1209
      %v1212 = vshrl.u32 %v1078, 16
      %v1214 = vrot.slane %v1212, 3
      %v1215 = vshll.u32 %v1078, 16
      %v1217 = vrot.slane %v1215, 4
      %v1218 = vor.u32 %v1214, %v1217
      %v1219 = vsel %vm1131, %v1209, %v1218
      %v1221 = vshrl.u32 %v1080, 16
      %v1223 = vrot.slane %v1221, 3
      %v1224 = vshll.u32 %v1080, 16
      %v1226 = vrot.slane %v1224, 4
      %v1227 = vor.u32 %v1223, %v1226
      %v1228 = vsel %vm1131, %v1218, %v1227
      %v1230 = vshrl.u32 %v1082, 16
      %v1232 = vrot.slane %v1230, 3
      %v1233 = vshll.u32 %v1082, 16
      %v1235 = vrot.slane %v1233, 4
      %v1236 = vor.u32 %v1232, %v1235
      %v1237 = vsel %vm1131, %v1227, %v1236
      %v1239 = vshrl.u32 %v1084, 16
      %v1241 = vrot.slane %v1239, 3
      %v1242 = vshll.u32 %v1084, 16
      %v1244 = vrot.slane %v1242, 4
      %v1245 = vor.u32 %v1241, %v1244
      %v1246 = vsel %vm1131, %v1236, %v1245
      %v1248 = vshrl.u32 %v1086, 16
      %v1250 = vrot.slane %v1248, 3
      %v1251 = vshll.u32 %v1086, 16
      %v1253 = vrot.slane %v1251, 4
      %v1254 = vor.u32 %v1250, %v1253
      %v1255 = vsel %vm1131, %v1245, %v1254
      %v1257 = vshrl.u32 %v1088, 16
      %v1259 = vrot.slane %v1257, 3
      %v1260 = vshll.u32 %v1088, 16
      %v1262 = vrot.slane %v1260, 4
      %v1263 = vor.u32 %v1259, %v1262
      %v1264 = vsel %vm1131, %v1254, %v1263
      %v1266 = vshrl.u32 %v1090, 16
      %v1268 = vrot.slane %v1266, 3
      %v1269 = vshll.u32 %v1090, 16
      %v1271 = vrot.slane %v1269, 4
      %v1272 = vor.u32 %v1268, %v1271
      %v1273 = vsel %vm1131, %v1263, %v1272
      %v1275 = vshrl.u32 %v1092, 16
      %v1277 = vrot.slane %v1275, 3
      %v1278 = vshll.u32 %v1092, 16
      %v1280 = vrot.slane %v1278, 4
      %v1281 = vor.u32 %v1277, %v1280
      %v1282 = vsel %vm1131, %v1272, %v1281
      %v1284 = vshrl.u32 %v1094, 16
      %v1286 = vrot.slane %v1284, 3
      %v1287 = vshll.u32 %v1094, 16
      %v1289 = vrot.slane %v1287, 4
      %v1290 = vor.u32 %v1286, %v1289
      %v1291 = vsel %vm1131, %v1281, %v1290
      %v1293 = vshrl.u32 %v1096, 16
      %v1295 = vrot.slane %v1293, 3
      %v1296 = vshll.u32 %v1096, 16
      %v1298 = vrot.slane %v1296, 4
      %v1299 = vor.u32 %v1295, %v1298
      %v1300 = vsel %vm1131, %v1290, %v1299
      %v1335 = vunpack.c.l.b16 %v1115
      %v1336 = vunpack.c.l.b16 %v1116
      %v1337 = vunpack.c.l.b16 %v1117
      %v1338 = vunpack.c.l.b16 %v1118
      %v1339 = vunpack.c.l.b16 %v1119
      %v1340 = vunpack.c.l.b16 %v1120
      %v1341 = vunpack.c.l.b16 %v1121
      %v1342 = vunpack.c.l.b16 %v1122
      %v1343 = vunpack.c.l.b16 %v1123
      %v1344 = vunpack.c.l.b16 %v1124
      %v1345 = vunpack.c.l.b16 %v1125
      %v1346 = vunpack.c.l.b16 %v1126
      %v1347 = vunpack.c.l.b16 %v1127
      %v1348 = vunpack.c.l.b16 %v1128
      %v1349 = vunpack.c.l.b16 %v1129
      %v1350 = vunpack.c.l.b16 %v1130
      %v1351 = vpack.c.b16 %v1336, %v1335
      %v1352 = vpack.c.b16 %v1338, %v1337
      %v1353 = vpack.c.b16 %v1340, %v1339
      %v1354 = vpack.c.b16 %v1342, %v1341
      %v1355 = vpack.c.b16 %v1344, %v1343
      %v1356 = vpack.c.b16 %v1346, %v1345
      %v1357 = vpack.c.b16 %v1348, %v1347
      %v1358 = vpack.c.b16 %v1350, %v1349
      %1367 = vmatprep.subr.bf16.mxu0 0
      %1368 = vmatpush1.bf16.msra.mxu0 %v1351
      %1369 = vmatprep.subr.bf16.mxu0 0
      %1370 = vmatpush1.bf16.msra.mxu0 %v1352
      %1371 = vmatprep.subr.bf16.mxu0 0
      %1372 = vmatpush1.bf16.msra.mxu0 %v1353
      %1373 = vmatprep.subr.bf16.mxu0 0
      %1374 = vmatpush1.bf16.msra.mxu0 %v1354
      %1375 = vmatprep.subr.bf16.mxu0 0
      %1376 = vmatpush1.bf16.msra.mxu0 %v1355
      %1377 = vmatprep.subr.bf16.mxu0 0
      %1378 = vmatpush1.bf16.msra.mxu0 %v1356
      %1379 = vmatprep.subr.bf16.mxu0 0
      %1380 = vmatpush1.bf16.msra.mxu0 %v1357
      %1381 = vmatprep.subr.bf16.mxu0 0
      %1382 = vmatpush1.bf16.msra.mxu0 %v1358
      %1383 = vmatprep.subr.bf16.mxu0 0
      %1384 = vmatpush1.bf16.msra.mxu0 0
      %1385 = vmatprep.subr.bf16.mxu0 0
      %1386 = vmatpush1.bf16.msra.mxu0 0
      %1387 = vmatprep.subr.bf16.mxu0 0
      %1388 = vmatpush1.bf16.msra.mxu0 0
      %1389 = vmatprep.subr.bf16.mxu0 0
      %1390 = vmatpush1.bf16.msra.mxu0 0
      %1391 = vmatprep.subr.bf16.mxu0 0
      %1392 = vmatpush1.bf16.msra.mxu0 0
      %1393 = vmatprep.subr.bf16.mxu0 0
      %1394 = vmatpush1.bf16.msra.mxu0 0
      %1395 = vmatprep.subr.bf16.mxu0 0
      %1396 = vmatpush1.bf16.msra.mxu0 0
      %1397 = vmatprep.subr.bf16.mxu0 0
      %1398 = vmatpush1.bf16.msra.mxu0 0
      %1399 = vmatprep.mubr.bf16.mxu0 0
      %1400 = vmatmul.mubr.bf16.gmra.mrb[0].mxu0 %v1147
      %v1401 = vpop.f32.mrb[0].mxu0
      %v1402 = vadd.f32 0.0, %v1401
      %v1403 = vpop.f32.mrb[0].mxu0
      %v1404 = vpop.f32.mrb[0].mxu0
      %v1405 = vadd.f32 0.0, %v1404
      %v1406 = vpop.f32.mrb[0].mxu0
      %1407 = vmatprep.mubr.bf16.mxu0 0
      %1408 = vmatmul.mubr.bf16.gmra.mrb[0].mxu0 %v1156
      %v1409 = vpop.f32.mrb[0].mxu0
      %v1410 = vadd.f32 0.0, %v1409
      %v1411 = vpop.f32.mrb[0].mxu0
      %v1412 = vpop.f32.mrb[0].mxu0
      %v1413 = vadd.f32 0.0, %v1412
      %v1414 = vpop.f32.mrb[0].mxu0
      %1415 = vmatprep.mubr.bf16.mxu0 0
      %1416 = vmatmul.mubr.bf16.gmra.mrb[0].mxu0 %v1165
      %v1417 = vpop.f32.mrb[0].mxu0
      %v1418 = vadd.f32 0.0, %v1417
      %v1419 = vpop.f32.mrb[0].mxu0
      %v1420 = vpop.f32.mrb[0].mxu0
      %v1421 = vadd.f32 0.0, %v1420
      %v1422 = vpop.f32.mrb[0].mxu0
      %1423 = vmatprep.mubr.bf16.mxu0 0
      %1424 = vmatmul.mubr.bf16.gmra.mrb[0].mxu0 %v1174
      %v1425 = vpop.f32.mrb[0].mxu0
      %v1426 = vadd.f32 0.0, %v1425
      %v1427 = vpop.f32.mrb[0].mxu0
      %v1428 = vpop.f32.mrb[0].mxu0
      %v1429 = vadd.f32 0.0, %v1428
      %v1430 = vpop.f32.mrb[0].mxu0
      %1431 = vmatprep.mubr.bf16.mxu0 0
      %1432 = vmatmul.mubr.bf16.gmra.mrb[0].mxu0 %v1183
      %v1433 = vpop.f32.mrb[0].mxu0
      %v1434 = vadd.f32 0.0, %v1433
      %v1435 = vpop.f32.mrb[0].mxu0
      %v1436 = vpop.f32.mrb[0].mxu0
      %v1437 = vadd.f32 0.0, %v1436
      %v1438 = vpop.f32.mrb[0].mxu0
      %1439 = vmatprep.mubr.bf16.mxu0 0
      %1440 = vmatmul.mubr.bf16.gmra.mrb[0].mxu0 %v1192
      %v1441 = vpop.f32.mrb[0].mxu0
      %v1442 = vadd.f32 0.0, %v1441
      %v1443 = vpop.f32.mrb[0].mxu0
      %v1444 = vpop.f32.mrb[0].mxu0
      %v1445 = vadd.f32 0.0, %v1444
      %v1446 = vpop.f32.mrb[0].mxu0
      %1447 = vmatprep.mubr.bf16.mxu0 0
      %1448 = vmatmul.mubr.bf16.gmra.mrb[0].mxu0 %v1201
      %v1449 = vpop.f32.mrb[0].mxu0
      %v1450 = vadd.f32 0.0, %v1449
      %v1451 = vpop.f32.mrb[0].mxu0
      %v1452 = vpop.f32.mrb[0].mxu0
      %v1453 = vadd.f32 0.0, %v1452
      %v1454 = vpop.f32.mrb[0].mxu0
      %1455 = vmatprep.mubr.bf16.mxu0 0
      %1456 = vmatmul.mubr.bf16.gmra.mrb[0].mxu0 %v1210
      %v1457 = vpop.f32.mrb[0].mxu0
      %v1458 = vadd.f32 0.0, %v1457
      %v1459 = vpop.f32.mrb[0].mxu0
      %v1460 = vpop.f32.mrb[0].mxu0
      %v1461 = vadd.f32 0.0, %v1460
      %v1462 = vpop.f32.mrb[0].mxu0
      %1463 = vmatprep.mubr.bf16.mxu0 0
      %1464 = vmatmul.mubr.bf16.gmra.mrb[0].mxu0 %v1219
      %v1465 = vpop.f32.mrb[0].mxu0
      %v1466 = vadd.f32 0.0, %v1465
      %v1467 = vpop.f32.mrb[0].mxu0
      %v1468 = vpop.f32.mrb[0].mxu0
      %v1469 = vadd.f32 0.0, %v1468
      %v1470 = vpop.f32.mrb[0].mxu0
      %1471 = vmatprep.mubr.bf16.mxu0 0
      %1472 = vmatmul.mubr.bf16.gmra.mrb[0].mxu0 %v1228
      %v1473 = vpop.f32.mrb[0].mxu0
      %v1474 = vadd.f32 0.0, %v1473
      %v1475 = vpop.f32.mrb[0].mxu0
      %v1476 = vpop.f32.mrb[0].mxu0
      %v1477 = vadd.f32 0.0, %v1476
      %v1478 = vpop.f32.mrb[0].mxu0
      %1479 = vmatprep.mubr.bf16.mxu0 0
      %1480 = vmatmul.mubr.bf16.gmra.mrb[0].mxu0 %v1237
      %v1481 = vpop.f32.mrb[0].mxu0
      %v1482 = vadd.f32 0.0, %v1481
      %v1483 = vpop.f32.mrb[0].mxu0
      %v1484 = vpop.f32.mrb[0].mxu0
      %v1485 = vadd.f32 0.0, %v1484
      %v1486 = vpop.f32.mrb[0].mxu0
      %1487 = vmatprep.mubr.bf16.mxu0 0
      %1488 = vmatmul.mubr.bf16.gmra.mrb[0].mxu0 %v1246
      %v1489 = vpop.f32.mrb[0].mxu0
      %v1490 = vadd.f32 0.0, %v1489
      %v1491 = vpop.f32.mrb[0].mxu0
      %v1492 = vpop.f32.mrb[0].mxu0
      %v1493 = vadd.f32 0.0, %v1492
      %v1494 = vpop.f32.mrb[0].mxu0
      %1495 = vmatprep.mubr.bf16.mxu0 0
      %1496 = vmatmul.mubr.bf16.gmra.mrb[0].mxu0 %v1255
      %v1497 = vpop.f32.mrb[0].mxu0
      %v1498 = vadd.f32 0.0, %v1497
      %v1499 = vpop.f32.mrb[0].mxu0
      %v1500 = vpop.f32.mrb[0].mxu0
      %v1501 = vadd.f32 0.0, %v1500
      %v1502 = vpop.f32.mrb[0].mxu0
      %1503 = vmatprep.mubr.bf16.mxu0 0
      %1504 = vmatmul.mubr.bf16.gmra.mrb[0].mxu0 %v1264
      %v1505 = vpop.f32.mrb[0].mxu0
      %v1506 = vadd.f32 0.0, %v1505
      %v1507 = vpop.f32.mrb[0].mxu0
      %v1508 = vpop.f32.mrb[0].mxu0
      %v1509 = vadd.f32 0.0, %v1508
      %v1510 = vpop.f32.mrb[0].mxu0
      %1511 = vmatprep.mubr.bf16.mxu0 0
      %1512 = vmatmul.mubr.bf16.gmra.mrb[0].mxu0 %v1273
      %v1513 = vpop.f32.mrb[0].mxu0
      %v1514 = vadd.f32 0.0, %v1513
      %v1515 = vpop.f32.mrb[0].mxu0
      %v1516 = vpop.f32.mrb[0].mxu0
      %v1517 = vadd.f32 0.0, %v1516
      %v1518 = vpop.f32.mrb[0].mxu0
      %1519 = vmatprep.mubr.bf16.mxu0 0
      %1520 = vmatmul.mubr.bf16.gmra.mrb[0].mxu0 %v1282
      %v1521 = vpop.f32.mrb[0].mxu0
      %v1522 = vadd.f32 0.0, %v1521
      %v1523 = vpop.f32.mrb[0].mxu0
      %v1524 = vpop.f32.mrb[0].mxu0
      %v1525 = vadd.f32 0.0, %v1524
      %v1526 = vpop.f32.mrb[0].mxu0
      %1527 = vmatprep.mubr.bf16.mxu0 0
      %1528 = vmatmul.mubr.bf16.gmra.mrb[0].mxu0 %v1291
      %v1529 = vpop.f32.mrb[0].mxu0
      %v1530 = vadd.f32 0.0, %v1529
      %v1531 = vpop.f32.mrb[0].mxu0
      %v1532 = vpop.f32.mrb[0].mxu0
      %v1533 = vadd.f32 0.0, %v1532
      %v1534 = vpop.f32.mrb[0].mxu0
      %1535 = vmatprep.mubr.bf16.mxu0 0
      %1536 = vmatmul.mubr.bf16.gmra.mrb[0].mxu0 %v1300
      %v1537 = vpop.f32.mrb[0].mxu0
      %v1538 = vadd.f32 0.0, %v1537
      %v1539 = vpop.f32.mrb[0].mxu0
      %v1540 = vpop.f32.mrb[0].mxu0
      %v1541 = vadd.f32 0.0, %v1540
      %v1542 = vpop.f32.mrb[0].mxu0
      %1543 = vdwg.mxu0
      %v1544 = vadd.f32 %v1113, %v1402
      %v1545 = vadd.f32 %v1113, %v1405
      %v1546 = vadd.f32 %v1113, %v1410
      %v1547 = vadd.f32 %v1113, %v1413
      %v1548 = vadd.f32 %v1113, %v1418
      %v1549 = vadd.f32 %v1113, %v1421
      %v1550 = vadd.f32 %v1113, %v1426
      %v1551 = vadd.f32 %v1113, %v1429
      %v1552 = vadd.f32 %v1113, %v1434
      %v1553 = vadd.f32 %v1113, %v1437
      %v1554 = vadd.f32 %v1113, %v1442
      %v1555 = vadd.f32 %v1113, %v1445
      %v1556 = vadd.f32 %v1113, %v1450
      %v1557 = vadd.f32 %v1113, %v1453
      %v1558 = vadd.f32 %v1113, %v1458
      %v1559 = vadd.f32 %v1113, %v1461
      %v1560 = vadd.f32 %v1113, %v1466
      %v1561 = vadd.f32 %v1113, %v1469
      %v1562 = vadd.f32 %v1113, %v1474
      %v1563 = vadd.f32 %v1113, %v1477
      %v1564 = vadd.f32 %v1113, %v1482
      %v1565 = vadd.f32 %v1113, %v1485
      %v1566 = vadd.f32 %v1113, %v1490
      %v1567 = vadd.f32 %v1113, %v1493
      %v1568 = vadd.f32 %v1113, %v1498
      %v1569 = vadd.f32 %v1113, %v1501
      %v1570 = vadd.f32 %v1113, %v1506
      %v1571 = vadd.f32 %v1113, %v1509
      %v1572 = vadd.f32 %v1113, %v1514
      %v1573 = vadd.f32 %v1113, %v1517
      %v1574 = vadd.f32 %v1113, %v1522
      %v1575 = vadd.f32 %v1113, %v1525
      %v1576 = vadd.f32 %v1113, %v1530
      %v1577 = vadd.f32 %v1113, %v1533
      %v1578 = vadd.f32 %v1113, %v1538
      %v1579 = vadd.f32 %v1113, %v1541
      %s1580 = scalar_lea.vmem %s4, 64
      %v1581 = vld [vmem:[%s1580] sm:$0xf]
      %v1582 = vld [vmem:[%s1580 + $0x4] sm:$0xf]
      %v1583 = vld [vmem:[%s1580 + $0x8] sm:$0xf]
      %v1584 = vld [vmem:[%s1580 + $0xc] sm:$0xf]
      %v1585 = vld [vmem:[%s1580 + $0x10] sm:$0xf]
      %v1586 = vld [vmem:[%s1580 + $0x14] sm:$0xf]
      %v1587 = vld [vmem:[%s1580 + $0x18] sm:$0xf]
      %v1588 = vld [vmem:[%s1580 + $0x1c] sm:$0xf]
      %v1589 = vld [vmem:[%s1580 + $0x20] sm:$0xf]
      %v1590 = vld [vmem:[%s1580 + $0x24] sm:$0xf]
      %v1591 = vld [vmem:[%s1580 + $0x28] sm:$0xf]
      %v1592 = vld [vmem:[%s1580 + $0x2c] sm:$0xf]
      %v1593 = vld [vmem:[%s1580 + $0x30] sm:$0xf]
      %v1594 = vld [vmem:[%s1580 + $0x34] sm:$0xf]
      %v1595 = vld [vmem:[%s1580 + $0x38] sm:$0xf]
      %v1596 = vld [vmem:[%s1580 + $0x3c] sm:$0xf]
      %v1598 = vrot.slane %v1104, 4
      %v1599 = vrot.slane %v1062, 4
      %v1600 = vsel %vm1059, %v1598, %v1599
      %v1601 = vrot.slane %v1064, 4
      %v1602 = vsel %vm1059, %v1599, %v1601
      %v1603 = vrot.slane %v1066, 4
      %v1604 = vsel %vm1059, %v1601, %v1603
      %v1605 = vrot.slane %v1068, 4
      %v1606 = vsel %vm1059, %v1603, %v1605
      %v1607 = vrot.slane %v1070, 4
      %v1608 = vsel %vm1059, %v1605, %v1607
      %v1609 = vrot.slane %v1072, 4
      %v1610 = vsel %vm1059, %v1607, %v1609
      %v1611 = vrot.slane %v1074, 4
      %v1612 = vsel %vm1059, %v1609, %v1611
      %v1613 = vrot.slane %v1076, 4
      %v1614 = vsel %vm1059, %v1611, %v1613
      %v1615 = vrot.slane %v1078, 4
      %v1616 = vsel %vm1059, %v1613, %v1615
      %v1617 = vrot.slane %v1080, 4
      %v1618 = vsel %vm1059, %v1615, %v1617
      %v1619 = vrot.slane %v1082, 4
      %v1620 = vsel %vm1059, %v1617, %v1619
      %v1621 = vrot.slane %v1084, 4
      %v1622 = vsel %vm1059, %v1619, %v1621
      %v1623 = vrot.slane %v1086, 4
      %v1624 = vsel %vm1059, %v1621, %v1623
      %v1625 = vrot.slane %v1088, 4
      %v1626 = vsel %vm1059, %v1623, %v1625
      %v1627 = vrot.slane %v1090, 4
      %v1628 = vsel %vm1059, %v1625, %v1627
      %v1629 = vrot.slane %v1092, 4
      %v1630 = vsel %vm1059, %v1627, %v1629
      %v1631 = vrot.slane %v1094, 4
      %v1632 = vsel %vm1059, %v1629, %v1631
      %v1633 = vrot.slane %v1096, 4
      %v1634 = vsel %vm1059, %v1631, %v1633
      %v1669 = vunpack.c.l.b16 %v1581
      %v1670 = vunpack.c.l.b16 %v1582
      %v1671 = vunpack.c.l.b16 %v1583
      %v1672 = vunpack.c.l.b16 %v1584
      %v1673 = vunpack.c.l.b16 %v1585
      %v1674 = vunpack.c.l.b16 %v1586
      %v1675 = vunpack.c.l.b16 %v1587
      %v1676 = vunpack.c.l.b16 %v1588
      %v1677 = vunpack.c.l.b16 %v1589
      %v1678 = vunpack.c.l.b16 %v1590
      %v1679 = vunpack.c.l.b16 %v1591
      %v1680 = vunpack.c.l.b16 %v1592
      %v1681 = vunpack.c.l.b16 %v1593
      %v1682 = vunpack.c.l.b16 %v1594
      %v1683 = vunpack.c.l.b16 %v1595
      %v1684 = vunpack.c.l.b16 %v1596
      %v1685 = vpack.c.b16 %v1670, %v1669
      %v1686 = vpack.c.b16 %v1672, %v1671
      %v1687 = vpack.c.b16 %v1674, %v1673
      %v1688 = vpack.c.b16 %v1676, %v1675
      %v1689 = vpack.c.b16 %v1678, %v1677
      %v1690 = vpack.c.b16 %v1680, %v1679
      %v1691 = vpack.c.b16 %v1682, %v1681
      %v1692 = vpack.c.b16 %v1684, %v1683
      %1701 = vmatprep.subr.bf16.mxu0 0
      %1702 = vmatpush1.bf16.msra.mxu0 %v1685
      %1703 = vmatprep.subr.bf16.mxu0 0
      %1704 = vmatpush1.bf16.msra.mxu0 %v1686
      %1705 = vmatprep.subr.bf16.mxu0 0
      %1706 = vmatpush1.bf16.msra.mxu0 %v1687
      %1707 = vmatprep.subr.bf16.mxu0 0
      %1708 = vmatpush1.bf16.msra.mxu0 %v1688
      %1709 = vmatprep.subr.bf16.mxu0 0
      %1710 = vmatpush1.bf16.msra.mxu0 %v1689
      %1711 = vmatprep.subr.bf16.mxu0 0
      %1712 = vmatpush1.bf16.msra.mxu0 %v1690
      %1713 = vmatprep.subr.bf16.mxu0 0
      %1714 = vmatpush1.bf16.msra.mxu0 %v1691
      %1715 = vmatprep.subr.bf16.mxu0 0
      %1716 = vmatpush1.bf16.msra.mxu0 %v1692
      %1717 = vmatprep.subr.bf16.mxu0 0
      %1718 = vmatpush1.bf16.msra.mxu0 0
      %1719 = vmatprep.subr.bf16.mxu0 0
      %1720 = vmatpush1.bf16.msra.mxu0 0
      %1721 = vmatprep.subr.bf16.mxu0 0
      %1722 = vmatpush1.bf16.msra.mxu0 0
      %1723 = vmatprep.subr.bf16.mxu0 0
      %1724 = vmatpush1.bf16.msra.mxu0 0
      %1725 = vmatprep.subr.bf16.mxu0 0
      %1726 = vmatpush1.bf16.msra.mxu0 0
      %1727 = vmatprep.subr.bf16.mxu0 0
      %1728 = vmatpush1.bf16.msra.mxu0 0
      %1729 = vmatprep.subr.bf16.mxu0 0
      %1730 = vmatpush1.bf16.msra.mxu0 0
      %1731 = vmatprep.subr.bf16.mxu0 0
      %1732 = vmatpush1.bf16.msra.mxu0 0
      %1733 = vmatprep.mubr.bf16.mxu0 0
      %1734 = vmatmul.mubr.bf16.gmra.mrb[0].mxu0 %v1600
      %v1735 = vpop.f32.mrb[0].mxu0
      %v1736 = vadd.f32 0.0, %v1735
      %v1737 = vpop.f32.mrb[0].mxu0
      %v1738 = vpop.f32.mrb[0].mxu0
      %v1739 = vadd.f32 0.0, %v1738
      %v1740 = vpop.f32.mrb[0].mxu0
      %1741 = vmatprep.mubr.bf16.mxu0 0
      %1742 = vmatmul.mubr.bf16.gmra.mrb[0].mxu0 %v1602
      %v1743 = vpop.f32.mrb[0].mxu0
      %v1744 = vadd.f32 0.0, %v1743
      %v1745 = vpop.f32.mrb[0].mxu0
      %v1746 = vpop.f32.mrb[0].mxu0
      %v1747 = vadd.f32 0.0, %v1746
      %v1748 = vpop.f32.mrb[0].mxu0
      %1749 = vmatprep.mubr.bf16.mxu0 0
      %1750 = vmatmul.mubr.bf16.gmra.mrb[0].mxu0 %v1604
      %v1751 = vpop.f32.mrb[0].mxu0
      %v1752 = vadd.f32 0.0, %v1751
      %v1753 = vpop.f32.mrb[0].mxu0
      %v1754 = vpop.f32.mrb[0].mxu0
      %v1755 = vadd.f32 0.0, %v1754
      %v1756 = vpop.f32.mrb[0].mxu0
      %1757 = vmatprep.mubr.bf16.mxu0 0
      %1758 = vmatmul.mubr.bf16.gmra.mrb[0].mxu0 %v1606
      %v1759 = vpop.f32.mrb[0].mxu0
      %v1760 = vadd.f32 0.0, %v1759
      %v1761 = vpop.f32.mrb[0].mxu0
      %v1762 = vpop.f32.mrb[0].mxu0
      %v1763 = vadd.f32 0.0, %v1762
      %v1764 = vpop.f32.mrb[0].mxu0
      %1765 = vmatprep.mubr.bf16.mxu0 0
      %1766 = vmatmul.mubr.bf16.gmra.mrb[0].mxu0 %v1608
      %v1767 = vpop.f32.mrb[0].mxu0
      %v1768 = vadd.f32 0.0, %v1767
      %v1769 = vpop.f32.mrb[0].mxu0
      %v1770 = vpop.f32.mrb[0].mxu0
      %v1771 = vadd.f32 0.0, %v1770
      %v1772 = vpop.f32.mrb[0].mxu0
      %1773 = vmatprep.mubr.bf16.mxu0 0
      %1774 = vmatmul.mubr.bf16.gmra.mrb[0].mxu0 %v1610
      %v1775 = vpop.f32.mrb[0].mxu0
      %v1776 = vadd.f32 0.0, %v1775
      %v1777 = vpop.f32.mrb[0].mxu0
      %v1778 = vpop.f32.mrb[0].mxu0
      %v1779 = vadd.f32 0.0, %v1778
      %v1780 = vpop.f32.mrb[0].mxu0
      %1781 = vmatprep.mubr.bf16.mxu0 0
      %1782 = vmatmul.mubr.bf16.gmra.mrb[0].mxu0 %v1612
      %v1783 = vpop.f32.mrb[0].mxu0
      %v1784 = vadd.f32 0.0, %v1783
      %v1785 = vpop.f32.mrb[0].mxu0
      %v1786 = vpop.f32.mrb[0].mxu0
      %v1787 = vadd.f32 0.0, %v1786
      %v1788 = vpop.f32.mrb[0].mxu0
      %1789 = vmatprep.mubr.bf16.mxu0 0
      %1790 = vmatmul.mubr.bf16.gmra.mrb[0].mxu0 %v1614
      %v1791 = vpop.f32.mrb[0].mxu0
      %v1792 = vadd.f32 0.0, %v1791
      %v1793 = vpop.f32.mrb[0].mxu0
      %v1794 = vpop.f32.mrb[0].mxu0
      %v1795 = vadd.f32 0.0, %v1794
      %v1796 = vpop.f32.mrb[0].mxu0
      %1797 = vmatprep.mubr.bf16.mxu0 0
      %1798 = vmatmul.mubr.bf16.gmra.mrb[0].mxu0 %v1616
      %v1799 = vpop.f32.mrb[0].mxu0
      %v1800 = vadd.f32 0.0, %v1799
      %v1801 = vpop.f32.mrb[0].mxu0
      %v1802 = vpop.f32.mrb[0].mxu0
      %v1803 = vadd.f32 0.0, %v1802
      %v1804 = vpop.f32.mrb[0].mxu0
      %1805 = vmatprep.mubr.bf16.mxu0 0
      %1806 = vmatmul.mubr.bf16.gmra.mrb[0].mxu0 %v1618
      %v1807 = vpop.f32.mrb[0].mxu0
      %v1808 = vadd.f32 0.0, %v1807
      %v1809 = vpop.f32.mrb[0].mxu0
      %v1810 = vpop.f32.mrb[0].mxu0
      %v1811 = vadd.f32 0.0, %v1810
      %v1812 = vpop.f32.mrb[0].mxu0
      %1813 = vmatprep.mubr.bf16.mxu0 0
      %1814 = vmatmul.mubr.bf16.gmra.mrb[0].mxu0 %v1620
      %v1815 = vpop.f32.mrb[0].mxu0
      %v1816 = vadd.f32 0.0, %v1815
      %v1817 = vpop.f32.mrb[0].mxu0
      %v1818 = vpop.f32.mrb[0].mxu0
      %v1819 = vadd.f32 0.0, %v1818
      %v1820 = vpop.f32.mrb[0].mxu0
      %1821 = vmatprep.mubr.bf16.mxu0 0
      %1822 = vmatmul.mubr.bf16.gmra.mrb[0].mxu0 %v1622
      %v1823 = vpop.f32.mrb[0].mxu0
      %v1824 = vadd.f32 0.0, %v1823
      %v1825 = vpop.f32.mrb[0].mxu0
      %v1826 = vpop.f32.mrb[0].mxu0
      %v1827 = vadd.f32 0.0, %v1826
      %v1828 = vpop.f32.mrb[0].mxu0
      %1829 = vmatprep.mubr.bf16.mxu0 0
      %1830 = vmatmul.mubr.bf16.gmra.mrb[0].mxu0 %v1624
      %v1831 = vpop.f32.mrb[0].mxu0
      %v1832 = vadd.f32 0.0, %v1831
      %v1833 = vpop.f32.mrb[0].mxu0
      %v1834 = vpop.f32.mrb[0].mxu0
      %v1835 = vadd.f32 0.0, %v1834
      %v1836 = vpop.f32.mrb[0].mxu0
      %1837 = vmatprep.mubr.bf16.mxu0 0
      %1838 = vmatmul.mubr.bf16.gmra.mrb[0].mxu0 %v1626
      %v1839 = vpop.f32.mrb[0].mxu0
      %v1840 = vadd.f32 0.0, %v1839
      %v1841 = vpop.f32.mrb[0].mxu0
      %v1842 = vpop.f32.mrb[0].mxu0
      %v1843 = vadd.f32 0.0, %v1842
      %v1844 = vpop.f32.mrb[0].mxu0
      %1845 = vmatprep.mubr.bf16.mxu0 0
      %1846 = vmatmul.mubr.bf16.gmra.mrb[0].mxu0 %v1628
      %v1847 = vpop.f32.mrb[0].mxu0
      %v1848 = vadd.f32 0.0, %v1847
      %v1849 = vpop.f32.mrb[0].mxu0
      %v1850 = vpop.f32.mrb[0].mxu0
      %v1851 = vadd.f32 0.0, %v1850
      %v1852 = vpop.f32.mrb[0].mxu0
      %1853 = vmatprep.mubr.bf16.mxu0 0
      %1854 = vmatmul.mubr.bf16.gmra.mrb[0].mxu0 %v1630
      %v1855 = vpop.f32.mrb[0].mxu0
      %v1856 = vadd.f32 0.0, %v1855
      %v1857 = vpop.f32.mrb[0].mxu0
      %v1858 = vpop.f32.mrb[0].mxu0
      %v1859 = vadd.f32 0.0, %v1858
      %v1860 = vpop.f32.mrb[0].mxu0
      %1861 = vmatprep.mubr.bf16.mxu0 0
      %1862 = vmatmul.mubr.bf16.gmra.mrb[0].mxu0 %v1632
      %v1863 = vpop.f32.mrb[0].mxu0
      %v1864 = vadd.f32 0.0, %v1863
      %v1865 = vpop.f32.mrb[0].mxu0
      %v1866 = vpop.f32.mrb[0].mxu0
      %v1867 = vadd.f32 0.0, %v1866
      %v1868 = vpop.f32.mrb[0].mxu0
      %1869 = vmatprep.mubr.bf16.mxu0 0
      %1870 = vmatmul.mubr.bf16.gmra.mrb[0].mxu0 %v1634
      %v1871 = vpop.f32.mrb[0].mxu0
      %v1872 = vadd.f32 0.0, %v1871
      %v1873 = vpop.f32.mrb[0].mxu0
      %v1874 = vpop.f32.mrb[0].mxu0
      %v1875 = vadd.f32 0.0, %v1874
      %v1876 = vpop.f32.mrb[0].mxu0
      %1877 = vdwg.mxu0
      %v1878 = vadd.f32 %v1544, %v1736
      %v1879 = vadd.f32 %v1545, %v1739
      %v1880 = vadd.f32 %v1546, %v1744
      %v1881 = vadd.f32 %v1547, %v1747
      %v1882 = vadd.f32 %v1548, %v1752
      %v1883 = vadd.f32 %v1549, %v1755
      %v1884 = vadd.f32 %v1550, %v1760
      %v1885 = vadd.f32 %v1551, %v1763
      %v1886 = vadd.f32 %v1552, %v1768
      %v1887 = vadd.f32 %v1553, %v1771
      %v1888 = vadd.f32 %v1554, %v1776
      %v1889 = vadd.f32 %v1555, %v1779
      %v1890 = vadd.f32 %v1556, %v1784
      %v1891 = vadd.f32 %v1557, %v1787
      %v1892 = vadd.f32 %v1558, %v1792
      %v1893 = vadd.f32 %v1559, %v1795
      %v1894 = vadd.f32 %v1560, %v1800
      %v1895 = vadd.f32 %v1561, %v1803
      %v1896 = vadd.f32 %v1562, %v1808
      %v1897 = vadd.f32 %v1563, %v1811
      %v1898 = vadd.f32 %v1564, %v1816
      %v1899 = vadd.f32 %v1565, %v1819
      %v1900 = vadd.f32 %v1566, %v1824
      %v1901 = vadd.f32 %v1567, %v1827
      %v1902 = vadd.f32 %v1568, %v1832
      %v1903 = vadd.f32 %v1569, %v1835
      %v1904 = vadd.f32 %v1570, %v1840
      %v1905 = vadd.f32 %v1571, %v1843
      %v1906 = vadd.f32 %v1572, %v1848
      %v1907 = vadd.f32 %v1573, %v1851
      %v1908 = vadd.f32 %v1574, %v1856
      %v1909 = vadd.f32 %v1575, %v1859
      %v1910 = vadd.f32 %v1576, %v1864
      %v1911 = vadd.f32 %v1577, %v1867
      %v1912 = vadd.f32 %v1578, %v1872
      %v1913 = vadd.f32 %v1579, %v1875
      %s1914 = scalar_lea.vmem %s4, 128
      %v1915 = vld [vmem:[%s1914] sm:$0xf]
      %v1916 = vld [vmem:[%s1914 + $0x4] sm:$0xf]
      %v1917 = vld [vmem:[%s1914 + $0x8] sm:$0xf]
      %v1918 = vld [vmem:[%s1914 + $0xc] sm:$0xf]
      %v1919 = vld [vmem:[%s1914 + $0x10] sm:$0xf]
      %v1920 = vld [vmem:[%s1914 + $0x14] sm:$0xf]
      %v1921 = vld [vmem:[%s1914 + $0x18] sm:$0xf]
      %v1922 = vld [vmem:[%s1914 + $0x1c] sm:$0xf]
      %v1923 = vld [vmem:[%s1914 + $0x20] sm:$0xf]
      %v1924 = vld [vmem:[%s1914 + $0x24] sm:$0xf]
      %v1925 = vld [vmem:[%s1914 + $0x28] sm:$0xf]
      %v1926 = vld [vmem:[%s1914 + $0x2c] sm:$0xf]
      %v1927 = vld [vmem:[%s1914 + $0x30] sm:$0xf]
      %v1928 = vld [vmem:[%s1914 + $0x34] sm:$0xf]
      %v1929 = vld [vmem:[%s1914 + $0x38] sm:$0xf]
      %v1930 = vld [vmem:[%s1914 + $0x3c] sm:$0xf]
      %vm1931 = vsmask.f32 3328
      %v1932 = vrot.slane %v1132, 4
      %v1933 = vrot.slane %v1135, 5
      %v1934 = vor.u32 %v1932, %v1933
      %v1935 = vrot.slane %v1140, 4
      %v1936 = vrot.slane %v1143, 5
      %v1937 = vor.u32 %v1935, %v1936
      %v1938 = vsel %vm1931, %v1934, %v1937
      %v1939 = vrot.slane %v1149, 4
      %v1940 = vrot.slane %v1152, 5
      %v1941 = vor.u32 %v1939, %v1940
      %v1942 = vsel %vm1931, %v1937, %v1941
      %v1943 = vrot.slane %v1158, 4
      %v1944 = vrot.slane %v1161, 5
      %v1945 = vor.u32 %v1943, %v1944
      %v1946 = vsel %vm1931, %v1941, %v1945
      %v1947 = vrot.slane %v1167, 4
      %v1948 = vrot.slane %v1170, 5
      %v1949 = vor.u32 %v1947, %v1948
      %v1950 = vsel %vm1931, %v1945, %v1949
      %v1951 = vrot.slane %v1176, 4
      %v1952 = vrot.slane %v1179, 5
      %v1953 = vor.u32 %v1951, %v1952
      %v1954 = vsel %vm1931, %v1949, %v1953
      %v1955 = vrot.slane %v1185, 4
      %v1956 = vrot.slane %v1188, 5
      %v1957 = vor.u32 %v1955, %v1956
      %v1958 = vsel %vm1931, %v1953, %v1957
      %v1959 = vrot.slane %v1194, 4
      %v1960 = vrot.slane %v1197, 5
      %v1961 = vor.u32 %v1959, %v1960
      %v1962 = vsel %vm1931, %v1957, %v1961
      %v1963 = vrot.slane %v1203, 4
      %v1964 = vrot.slane %v1206, 5
      %v1965 = vor.u32 %v1963, %v1964
      %v1966 = vsel %vm1931, %v1961, %v1965
      %v1967 = vrot.slane %v1212, 4
      %v1968 = vrot.slane %v1215, 5
      %v1969 = vor.u32 %v1967, %v1968
      %v1970 = vsel %vm1931, %v1965, %v1969
      %v1971 = vrot.slane %v1221, 4
      %v1972 = vrot.slane %v1224, 5
      %v1973 = vor.u32 %v1971, %v1972
      %v1974 = vsel %vm1931, %v1969, %v1973
      %v1975 = vrot.slane %v1230, 4
      %v1976 = vrot.slane %v1233, 5
      %v1977 = vor.u32 %v1975, %v1976
      %v1978 = vsel %vm1931, %v1973, %v1977
      %v1979 = vrot.slane %v1239, 4
      %v1980 = vrot.slane %v1242, 5
      %v1981 = vor.u32 %v1979, %v1980
      %v1982 = vsel %vm1931, %v1977, %v1981
      %v1983 = vrot.slane %v1248, 4
      %v1984 = vrot.slane %v1251, 5
      %v1985 = vor.u32 %v1983, %v1984
      %v1986 = vsel %vm1931, %v1981, %v1985
      %v1987 = vrot.slane %v1257, 4
      %v1988 = vrot.slane %v1260, 5
      %v1989 = vor.u32 %v1987, %v1988
      %v1990 = vsel %vm1931, %v1985, %v1989
      %v1991 = vrot.slane %v1266, 4
      %v1992 = vrot.slane %v1269, 5
      %v1993 = vor.u32 %v1991, %v1992
      %v1994 = vsel %vm1931, %v1989, %v1993
      %v1995 = vrot.slane %v1275, 4
      %v1996 = vrot.slane %v1278, 5
      %v1997 = vor.u32 %v1995, %v1996
      %v1998 = vsel %vm1931, %v1993, %v1997
      %v1999 = vrot.slane %v1284, 4
      %v2000 = vrot.slane %v1287, 5
      %v2001 = vor.u32 %v1999, %v2000
      %v2002 = vsel %vm1931, %v1997, %v2001
      %v2003 = vrot.slane %v1293, 4
      %v2004 = vrot.slane %v1296, 5
      %v2005 = vor.u32 %v2003, %v2004
      %v2006 = vsel %vm1931, %v2001, %v2005
      %v2041 = vunpack.c.l.b16 %v1915
      %v2042 = vunpack.c.l.b16 %v1916
      %v2043 = vunpack.c.l.b16 %v1917
      %v2044 = vunpack.c.l.b16 %v1918
      %v2045 = vunpack.c.l.b16 %v1919
      %v2046 = vunpack.c.l.b16 %v1920
      %v2047 = vunpack.c.l.b16 %v1921
      %v2048 = vunpack.c.l.b16 %v1922
      %v2049 = vunpack.c.l.b16 %v1923
      %v2050 = vunpack.c.l.b16 %v1924
      %v2051 = vunpack.c.l.b16 %v1925
      %v2052 = vunpack.c.l.b16 %v1926
      %v2053 = vunpack.c.l.b16 %v1927
      %v2054 = vunpack.c.l.b16 %v1928
      %v2055 = vunpack.c.l.b16 %v1929
      %v2056 = vunpack.c.l.b16 %v1930
      %v2057 = vpack.c.b16 %v2042, %v2041
      %v2058 = vpack.c.b16 %v2044, %v2043
      %v2059 = vpack.c.b16 %v2046, %v2045
      %v2060 = vpack.c.b16 %v2048, %v2047
      %v2061 = vpack.c.b16 %v2050, %v2049
      %v2062 = vpack.c.b16 %v2052, %v2051
      %v2063 = vpack.c.b16 %v2054, %v2053
      %v2064 = vpack.c.b16 %v2056, %v2055
      %2073 = vmatprep.subr.bf16.mxu0 0
      %2074 = vmatpush1.bf16.msra.mxu0 %v2057
      %2075 = vmatprep.subr.bf16.mxu0 0
      %2076 = vmatpush1.bf16.msra.mxu0 %v2058
      %2077 = vmatprep.subr.bf16.mxu0 0
      %2078 = vmatpush1.bf16.msra.mxu0 %v2059
      %2079 = vmatprep.subr.bf16.mxu0 0
      %2080 = vmatpush1.bf16.msra.mxu0 %v2060
      %2081 = vmatprep.subr.bf16.mxu0 0
      %2082 = vmatpush1.bf16.msra.mxu0 %v2061
      %2083 = vmatprep.subr.bf16.mxu0 0
      %2084 = vmatpush1.bf16.msra.mxu0 %v2062
      %2085 = vmatprep.subr.bf16.mxu0 0
      %2086 = vmatpush1.bf16.msra.mxu0 %v2063
      %2087 = vmatprep.subr.bf16.mxu0 0
      %2088 = vmatpush1.bf16.msra.mxu0 %v2064
      %2089 = vmatprep.subr.bf16.mxu0 0
      %2090 = vmatpush1.bf16.msra.mxu0 0
      %2091 = vmatprep.subr.bf16.mxu0 0
      %2092 = vmatpush1.bf16.msra.mxu0 0
      %2093 = vmatprep.subr.bf16.mxu0 0
      %2094 = vmatpush1.bf16.msra.mxu0 0
      %2095 = vmatprep.subr.bf16.mxu0 0
      %2096 = vmatpush1.bf16.msra.mxu0 0
      %2097 = vmatprep.subr.bf16.mxu0 0
      %2098 = vmatpush1.bf16.msra.mxu0 0
      %2099 = vmatprep.subr.bf16.mxu0 0
      %2100 = vmatpush1.bf16.msra.mxu0 0
      %2101 = vmatprep.subr.bf16.mxu0 0
      %2102 = vmatpush1.bf16.msra.mxu0 0
      %2103 = vmatprep.subr.bf16.mxu0 0
      %2104 = vmatpush1.bf16.msra.mxu0 0
      %2105 = vmatprep.mubr.bf16.mxu0 0
      %2106 = vmatmul.mubr.bf16.gmra.mrb[0].mxu0 %v1938
      %v2107 = vpop.f32.mrb[0].mxu0
      %v2108 = vadd.f32 0.0, %v2107
      %v2109 = vpop.f32.mrb[0].mxu0
      %v2110 = vpop.f32.mrb[0].mxu0
      %v2111 = vadd.f32 0.0, %v2110
      %v2112 = vpop.f32.mrb[0].mxu0
      %2113 = vmatprep.mubr.bf16.mxu0 0
      %2114 = vmatmul.mubr.bf16.gmra.mrb[0].mxu0 %v1942
      %v2115 = vpop.f32.mrb[0].mxu0
      %v2116 = vadd.f32 0.0, %v2115
      %v2117 = vpop.f32.mrb[0].mxu0
      %v2118 = vpop.f32.mrb[0].mxu0
      %v2119 = vadd.f32 0.0, %v2118
      %v2120 = vpop.f32.mrb[0].mxu0
      %2121 = vmatprep.mubr.bf16.mxu0 0
      %2122 = vmatmul.mubr.bf16.gmra.mrb[0].mxu0 %v1946
      %v2123 = vpop.f32.mrb[0].mxu0
      %v2124 = vadd.f32 0.0, %v2123
      %v2125 = vpop.f32.mrb[0].mxu0
      %v2126 = vpop.f32.mrb[0].mxu0
      %v2127 = vadd.f32 0.0, %v2126
      %v2128 = vpop.f32.mrb[0].mxu0
      %2129 = vmatprep.mubr.bf16.mxu0 0
      %2130 = vmatmul.mubr.bf16.gmra.mrb[0].mxu0 %v1950
      %v2131 = vpop.f32.mrb[0].mxu0
      %v2132 = vadd.f32 0.0, %v2131
      %v2133 = vpop.f32.mrb[0].mxu0
      %v2134 = vpop.f32.mrb[0].mxu0
      %v2135 = vadd.f32 0.0, %v2134
      %v2136 = vpop.f32.mrb[0].mxu0
      %2137 = vmatprep.mubr.bf16.mxu0 0
      %2138 = vmatmul.mubr.bf16.gmra.mrb[0].mxu0 %v1954
      %v2139 = vpop.f32.mrb[0].mxu0
      %v2140 = vadd.f32 0.0, %v2139
      %v2141 = vpop.f32.mrb[0].mxu0
      %v2142 = vpop.f32.mrb[0].mxu0
      %v2143 = vadd.f32 0.0, %v2142
      %v2144 = vpop.f32.mrb[0].mxu0
      %2145 = vmatprep.mubr.bf16.mxu0 0
      %2146 = vmatmul.mubr.bf16.gmra.mrb[0].mxu0 %v1958
      %v2147 = vpop.f32.mrb[0].mxu0
      %v2148 = vadd.f32 0.0, %v2147
      %v2149 = vpop.f32.mrb[0].mxu0
      %v2150 = vpop.f32.mrb[0].mxu0
      %v2151 = vadd.f32 0.0, %v2150
      %v2152 = vpop.f32.mrb[0].mxu0
      %2153 = vmatprep.mubr.bf16.mxu0 0
      %2154 = vmatmul.mubr.bf16.gmra.mrb[0].mxu0 %v1962
      %v2155 = vpop.f32.mrb[0].mxu0
      %v2156 = vadd.f32 0.0, %v2155
      %v2157 = vpop.f32.mrb[0].mxu0
      %v2158 = vpop.f32.mrb[0].mxu0
      %v2159 = vadd.f32 0.0, %v2158
      %v2160 = vpop.f32.mrb[0].mxu0
      %2161 = vmatprep.mubr.bf16.mxu0 0
      %2162 = vmatmul.mubr.bf16.gmra.mrb[0].mxu0 %v1966
      %v2163 = vpop.f32.mrb[0].mxu0
      %v2164 = vadd.f32 0.0, %v2163
      %v2165 = vpop.f32.mrb[0].mxu0
      %v2166 = vpop.f32.mrb[0].mxu0
      %v2167 = vadd.f32 0.0, %v2166
      %v2168 = vpop.f32.mrb[0].mxu0
      %2169 = vmatprep.mubr.bf16.mxu0 0
      %2170 = vmatmul.mubr.bf16.gmra.mrb[0].mxu0 %v1970
      %v2171 = vpop.f32.mrb[0].mxu0
      %v2172 = vadd.f32 0.0, %v2171
      %v2173 = vpop.f32.mrb[0].mxu0
      %v2174 = vpop.f32.mrb[0].mxu0
      %v2175 = vadd.f32 0.0, %v2174
      %v2176 = vpop.f32.mrb[0].mxu0
      %2177 = vmatprep.mubr.bf16.mxu0 0
      %2178 = vmatmul.mubr.bf16.gmra.mrb[0].mxu0 %v1974
      %v2179 = vpop.f32.mrb[0].mxu0
      %v2180 = vadd.f32 0.0, %v2179
      %v2181 = vpop.f32.mrb[0].mxu0
      %v2182 = vpop.f32.mrb[0].mxu0
      %v2183 = vadd.f32 0.0, %v2182
      %v2184 = vpop.f32.mrb[0].mxu0
      %2185 = vmatprep.mubr.bf16.mxu0 0
      %2186 = vmatmul.mubr.bf16.gmra.mrb[0].mxu0 %v1978
      %v2187 = vpop.f32.mrb[0].mxu0
      %v2188 = vadd.f32 0.0, %v2187
      %v2189 = vpop.f32.mrb[0].mxu0
      %v2190 = vpop.f32.mrb[0].mxu0
      %v2191 = vadd.f32 0.0, %v2190
      %v2192 = vpop.f32.mrb[0].mxu0
      %2193 = vmatprep.mubr.bf16.mxu0 0
      %2194 = vmatmul.mubr.bf16.gmra.mrb[0].mxu0 %v1982
      %v2195 = vpop.f32.mrb[0].mxu0
      %v2196 = vadd.f32 0.0, %v2195
      %v2197 = vpop.f32.mrb[0].mxu0
      %v2198 = vpop.f32.mrb[0].mxu0
      %v2199 = vadd.f32 0.0, %v2198
      %v2200 = vpop.f32.mrb[0].mxu0
      %2201 = vmatprep.mubr.bf16.mxu0 0
      %2202 = vmatmul.mubr.bf16.gmra.mrb[0].mxu0 %v1986
      %v2203 = vpop.f32.mrb[0].mxu0
      %v2204 = vadd.f32 0.0, %v2203
      %v2205 = vpop.f32.mrb[0].mxu0
      %v2206 = vpop.f32.mrb[0].mxu0
      %v2207 = vadd.f32 0.0, %v2206
      %v2208 = vpop.f32.mrb[0].mxu0
      %2209 = vmatprep.mubr.bf16.mxu0 0
      %2210 = vmatmul.mubr.bf16.gmra.mrb[0].mxu0 %v1990
      %v2211 = vpop.f32.mrb[0].mxu0
      %v2212 = vadd.f32 0.0, %v2211
      %v2213 = vpop.f32.mrb[0].mxu0
      %v2214 = vpop.f32.mrb[0].mxu0
      %v2215 = vadd.f32 0.0, %v2214
      %v2216 = vpop.f32.mrb[0].mxu0
      %2217 = vmatprep.mubr.bf16.mxu0 0
      %2218 = vmatmul.mubr.bf16.gmra.mrb[0].mxu0 %v1994
      %v2219 = vpop.f32.mrb[0].mxu0
      %v2220 = vadd.f32 0.0, %v2219
      %v2221 = vpop.f32.mrb[0].mxu0
      %v2222 = vpop.f32.mrb[0].mxu0
      %v2223 = vadd.f32 0.0, %v2222
      %v2224 = vpop.f32.mrb[0].mxu0
      %2225 = vmatprep.mubr.bf16.mxu0 0
      %2226 = vmatmul.mubr.bf16.gmra.mrb[0].mxu0 %v1998
      %v2227 = vpop.f32.mrb[0].mxu0
      %v2228 = vadd.f32 0.0, %v2227
      %v2229 = vpop.f32.mrb[0].mxu0
      %v2230 = vpop.f32.mrb[0].mxu0
      %v2231 = vadd.f32 0.0, %v2230
      %v2232 = vpop.f32.mrb[0].mxu0
      %2233 = vmatprep.mubr.bf16.mxu0 0
      %2234 = vmatmul.mubr.bf16.gmra.mrb[0].mxu0 %v2002
      %v2235 = vpop.f32.mrb[0].mxu0
      %v2236 = vadd.f32 0.0, %v2235
      %v2237 = vpop.f32.mrb[0].mxu0
      %v2238 = vpop.f32.mrb[0].mxu0
      %v2239 = vadd.f32 0.0, %v2238
      %v2240 = vpop.f32.mrb[0].mxu0
      %2241 = vmatprep.mubr.bf16.mxu0 0
      %2242 = vmatmul.mubr.bf16.gmra.mrb[0].mxu0 %v2006
      %v2243 = vpop.f32.mrb[0].mxu0
      %v2244 = vadd.f32 0.0, %v2243
      %v2245 = vpop.f32.mrb[0].mxu0
      %v2246 = vpop.f32.mrb[0].mxu0
      %v2247 = vadd.f32 0.0, %v2246
      %v2248 = vpop.f32.mrb[0].mxu0
      %2249 = vdwg.mxu0
      %v2250 = vadd.f32 %v1878, %v2108
      %v2251 = vadd.f32 %v1879, %v2111
      %v2252 = vadd.f32 %v1880, %v2116
      %v2253 = vadd.f32 %v1881, %v2119
      %v2254 = vadd.f32 %v1882, %v2124
      %v2255 = vadd.f32 %v1883, %v2127
      %v2256 = vadd.f32 %v1884, %v2132
      %v2257 = vadd.f32 %v1885, %v2135
      %v2258 = vadd.f32 %v1886, %v2140
      %v2259 = vadd.f32 %v1887, %v2143
      %v2260 = vadd.f32 %v1888, %v2148
      %v2261 = vadd.f32 %v1889, %v2151
      %v2262 = vadd.f32 %v1890, %v2156
      %v2263 = vadd.f32 %v1891, %v2159
      %v2264 = vadd.f32 %v1892, %v2164
      %v2265 = vadd.f32 %v1893, %v2167
      %v2266 = vadd.f32 %v1894, %v2172
      %v2267 = vadd.f32 %v1895, %v2175
      %v2268 = vadd.f32 %v1896, %v2180
      %v2269 = vadd.f32 %v1897, %v2183
      %v2270 = vadd.f32 %v1898, %v2188
      %v2271 = vadd.f32 %v1899, %v2191
      %v2272 = vadd.f32 %v1900, %v2196
      %v2273 = vadd.f32 %v1901, %v2199
      %v2274 = vadd.f32 %v1902, %v2204
      %v2275 = vadd.f32 %v1903, %v2207
      %v2276 = vadd.f32 %v1904, %v2212
      %v2277 = vadd.f32 %v1905, %v2215
      %v2278 = vadd.f32 %v1906, %v2220
      %v2279 = vadd.f32 %v1907, %v2223
      %v2280 = vadd.f32 %v1908, %v2228
      %v2281 = vadd.f32 %v1909, %v2231
      %v2282 = vadd.f32 %v1910, %v2236
      %v2283 = vadd.f32 %v1911, %v2239
      %v2284 = vadd.f32 %v1912, %v2244
      %v2285 = vadd.f32 %v1913, %v2247
      %s2286 = scalar_lea.vmem %s4, 192
      %v2287 = vld [vmem:[%s2286] sm:$0xf]
      %v2288 = vld [vmem:[%s2286 + $0x4] sm:$0xf]
      %v2289 = vld [vmem:[%s2286 + $0x8] sm:$0xf]
      %v2290 = vld [vmem:[%s2286 + $0xc] sm:$0xf]
      %v2291 = vld [vmem:[%s2286 + $0x10] sm:$0xf]
      %v2292 = vld [vmem:[%s2286 + $0x14] sm:$0xf]
      %v2293 = vld [vmem:[%s2286 + $0x18] sm:$0xf]
      %v2294 = vld [vmem:[%s2286 + $0x1c] sm:$0xf]
      %v2295 = vld [vmem:[%s2286 + $0x20] sm:$0xf]
      %v2296 = vld [vmem:[%s2286 + $0x24] sm:$0xf]
      %v2297 = vld [vmem:[%s2286 + $0x28] sm:$0xf]
      %v2298 = vld [vmem:[%s2286 + $0x2c] sm:$0xf]
      %v2299 = vld [vmem:[%s2286 + $0x30] sm:$0xf]
      %v2300 = vld [vmem:[%s2286 + $0x34] sm:$0xf]
      %v2301 = vld [vmem:[%s2286 + $0x38] sm:$0xf]
      %v2302 = vld [vmem:[%s2286 + $0x3c] sm:$0xf]
      %v2304 = vshrl.u32 %v1098, 16
      %v2306 = vrot.slane %v2304, 4
      %v2307 = vshll.u32 %v1098, 16
      %v2309 = vrot.slane %v2307, 5
      %v2310 = vor.u32 %v2306, %v2309
      %v2311 = vsel %vm1931, %v2005, %v2310
      %v2329 = vunpack.c.l.b16 %v2287
      %v2330 = vunpack.c.l.b16 %v2288
      %v2331 = vunpack.c.l.b16 %v2289
      %v2332 = vunpack.c.l.b16 %v2290
      %v2333 = vunpack.c.l.b16 %v2291
      %v2334 = vunpack.c.l.b16 %v2292
      %v2335 = vunpack.c.l.b16 %v2293
      %v2336 = vunpack.c.l.b16 %v2294
      %v2337 = vunpack.c.l.b16 %v2295
      %v2338 = vunpack.c.l.b16 %v2296
      %v2339 = vunpack.c.l.b16 %v2297
      %v2340 = vunpack.c.l.b16 %v2298
      %v2341 = vunpack.c.l.b16 %v2299
      %v2342 = vunpack.c.l.b16 %v2300
      %v2343 = vunpack.c.l.b16 %v2301
      %v2344 = vunpack.c.l.b16 %v2302
      %v2345 = vpack.c.b16 %v2330, %v2329
      %v2346 = vpack.c.b16 %v2332, %v2331
      %v2347 = vpack.c.b16 %v2334, %v2333
      %v2348 = vpack.c.b16 %v2336, %v2335
      %v2349 = vpack.c.b16 %v2338, %v2337
      %v2350 = vpack.c.b16 %v2340, %v2339
      %v2351 = vpack.c.b16 %v2342, %v2341
      %v2352 = vpack.c.b16 %v2344, %v2343
      %2361 = vmatprep.subr.bf16.mxu0 0
      %2362 = vmatpush1.bf16.msra.mxu0 %v2345
      %2363 = vmatprep.subr.bf16.mxu0 0
      %2364 = vmatpush1.bf16.msra.mxu0 %v2346
      %2365 = vmatprep.subr.bf16.mxu0 0
      %2366 = vmatpush1.bf16.msra.mxu0 %v2347
      %2367 = vmatprep.subr.bf16.mxu0 0
      %2368 = vmatpush1.bf16.msra.mxu0 %v2348
      %2369 = vmatprep.subr.bf16.mxu0 0
      %2370 = vmatpush1.bf16.msra.mxu0 %v2349
      %2371 = vmatprep.subr.bf16.mxu0 0
      %2372 = vmatpush1.bf16.msra.mxu0 %v2350
      %2373 = vmatprep.subr.bf16.mxu0 0
      %2374 = vmatpush1.bf16.msra.mxu0 %v2351
      %2375 = vmatprep.subr.bf16.mxu0 0
      %2376 = vmatpush1.bf16.msra.mxu0 %v2352
      %2377 = vmatprep.subr.bf16.mxu0 0
      %2378 = vmatpush1.bf16.msra.mxu0 0
      %2379 = vmatprep.subr.bf16.mxu0 0
      %2380 = vmatpush1.bf16.msra.mxu0 0
      %2381 = vmatprep.subr.bf16.mxu0 0
      %2382 = vmatpush1.bf16.msra.mxu0 0
      %2383 = vmatprep.subr.bf16.mxu0 0
      %2384 = vmatpush1.bf16.msra.mxu0 0
      %2385 = vmatprep.subr.bf16.mxu0 0
      %2386 = vmatpush1.bf16.msra.mxu0 0
      %2387 = vmatprep.subr.bf16.mxu0 0
      %2388 = vmatpush1.bf16.msra.mxu0 0
      %2389 = vmatprep.subr.bf16.mxu0 0
      %2390 = vmatpush1.bf16.msra.mxu0 0
      %2391 = vmatprep.subr.bf16.mxu0 0
      %2392 = vmatpush1.bf16.msra.mxu0 0
      %2393 = vmatprep.mubr.bf16.mxu0 0
      %2394 = vmatmul.mubr.bf16.gmra.mrb[0].mxu0 %v1942
      %v2395 = vpop.f32.mrb[0].mxu0
      %v2396 = vadd.f32 0.0, %v2395
      %v2397 = vpop.f32.mrb[0].mxu0
      %v2398 = vpop.f32.mrb[0].mxu0
      %v2399 = vadd.f32 0.0, %v2398
      %v2400 = vpop.f32.mrb[0].mxu0
      %2401 = vmatprep.mubr.bf16.mxu0 0
      %2402 = vmatmul.mubr.bf16.gmra.mrb[0].mxu0 %v1946
      %v2403 = vpop.f32.mrb[0].mxu0
      %v2404 = vadd.f32 0.0, %v2403
      %v2405 = vpop.f32.mrb[0].mxu0
      %v2406 = vpop.f32.mrb[0].mxu0
      %v2407 = vadd.f32 0.0, %v2406
      %v2408 = vpop.f32.mrb[0].mxu0
      %2409 = vmatprep.mubr.bf16.mxu0 0
      %2410 = vmatmul.mubr.bf16.gmra.mrb[0].mxu0 %v1950
      %v2411 = vpop.f32.mrb[0].mxu0
      %v2412 = vadd.f32 0.0, %v2411
      %v2413 = vpop.f32.mrb[0].mxu0
      %v2414 = vpop.f32.mrb[0].mxu0
      %v2415 = vadd.f32 0.0, %v2414
      %v2416 = vpop.f32.mrb[0].mxu0
      %2417 = vmatprep.mubr.bf16.mxu0 0
      %2418 = vmatmul.mubr.bf16.gmra.mrb[0].mxu0 %v1954
      %v2419 = vpop.f32.mrb[0].mxu0
      %v2420 = vadd.f32 0.0, %v2419
      %v2421 = vpop.f32.mrb[0].mxu0
      %v2422 = vpop.f32.mrb[0].mxu0
      %v2423 = vadd.f32 0.0, %v2422
      %v2424 = vpop.f32.mrb[0].mxu0
      %2425 = vmatprep.mubr.bf16.mxu0 0
      %2426 = vmatmul.mubr.bf16.gmra.mrb[0].mxu0 %v1958
      %v2427 = vpop.f32.mrb[0].mxu0
      %v2428 = vadd.f32 0.0, %v2427
      %v2429 = vpop.f32.mrb[0].mxu0
      %v2430 = vpop.f32.mrb[0].mxu0
      %v2431 = vadd.f32 0.0, %v2430
      %v2432 = vpop.f32.mrb[0].mxu0
      %2433 = vmatprep.mubr.bf16.mxu0 0
      %2434 = vmatmul.mubr.bf16.gmra.mrb[0].mxu0 %v1962
      %v2435 = vpop.f32.mrb[0].mxu0
      %v2436 = vadd.f32 0.0, %v2435
      %v2437 = vpop.f32.mrb[0].mxu0
      %v2438 = vpop.f32.mrb[0].mxu0
      %v2439 = vadd.f32 0.0, %v2438
      %v2440 = vpop.f32.mrb[0].mxu0
      %2441 = vmatprep.mubr.bf16.mxu0 0
      %2442 = vmatmul.mubr.bf16.gmra.mrb[0].mxu0 %v1966
      %v2443 = vpop.f32.mrb[0].mxu0
      %v2444 = vadd.f32 0.0, %v2443
      %v2445 = vpop.f32.mrb[0].mxu0
      %v2446 = vpop.f32.mrb[0].mxu0
      %v2447 = vadd.f32 0.0, %v2446
      %v2448 = vpop.f32.mrb[0].mxu0
      %2449 = vmatprep.mubr.bf16.mxu0 0
      %2450 = vmatmul.mubr.bf16.gmra.mrb[0].mxu0 %v1970
      %v2451 = vpop.f32.mrb[0].mxu0
      %v2452 = vadd.f32 0.0, %v2451
      %v2453 = vpop.f32.mrb[0].mxu0
      %v2454 = vpop.f32.mrb[0].mxu0
      %v2455 = vadd.f32 0.0, %v2454
      %v2456 = vpop.f32.mrb[0].mxu0
      %2457 = vmatprep.mubr.bf16.mxu0 0
      %2458 = vmatmul.mubr.bf16.gmra.mrb[0].mxu0 %v1974
      %v2459 = vpop.f32.mrb[0].mxu0
      %v2460 = vadd.f32 0.0, %v2459
      %v2461 = vpop.f32.mrb[0].mxu0
      %v2462 = vpop.f32.mrb[0].mxu0
      %v2463 = vadd.f32 0.0, %v2462
      %v2464 = vpop.f32.mrb[0].mxu0
      %2465 = vmatprep.mubr.bf16.mxu0 0
      %2466 = vmatmul.mubr.bf16.gmra.mrb[0].mxu0 %v1978
      %v2467 = vpop.f32.mrb[0].mxu0
      %v2468 = vadd.f32 0.0, %v2467
      %v2469 = vpop.f32.mrb[0].mxu0
      %v2470 = vpop.f32.mrb[0].mxu0
      %v2471 = vadd.f32 0.0, %v2470
      %v2472 = vpop.f32.mrb[0].mxu0
      %2473 = vmatprep.mubr.bf16.mxu0 0
      %2474 = vmatmul.mubr.bf16.gmra.mrb[0].mxu0 %v1982
      %v2475 = vpop.f32.mrb[0].mxu0
      %v2476 = vadd.f32 0.0, %v2475
      %v2477 = vpop.f32.mrb[0].mxu0
      %v2478 = vpop.f32.mrb[0].mxu0
      %v2479 = vadd.f32 0.0, %v2478
      %v2480 = vpop.f32.mrb[0].mxu0
      %2481 = vmatprep.mubr.bf16.mxu0 0
      %2482 = vmatmul.mubr.bf16.gmra.mrb[0].mxu0 %v1986
      %v2483 = vpop.f32.mrb[0].mxu0
      %v2484 = vadd.f32 0.0, %v2483
      %v2485 = vpop.f32.mrb[0].mxu0
      %v2486 = vpop.f32.mrb[0].mxu0
      %v2487 = vadd.f32 0.0, %v2486
      %v2488 = vpop.f32.mrb[0].mxu0
      %2489 = vmatprep.mubr.bf16.mxu0 0
      %2490 = vmatmul.mubr.bf16.gmra.mrb[0].mxu0 %v1990
      %v2491 = vpop.f32.mrb[0].mxu0
      %v2492 = vadd.f32 0.0, %v2491
      %v2493 = vpop.f32.mrb[0].mxu0
      %v2494 = vpop.f32.mrb[0].mxu0
      %v2495 = vadd.f32 0.0, %v2494
      %v2496 = vpop.f32.mrb[0].mxu0
      %2497 = vmatprep.mubr.bf16.mxu0 0
      %2498 = vmatmul.mubr.bf16.gmra.mrb[0].mxu0 %v1994
      %v2499 = vpop.f32.mrb[0].mxu0
      %v2500 = vadd.f32 0.0, %v2499
      %v2501 = vpop.f32.mrb[0].mxu0
      %v2502 = vpop.f32.mrb[0].mxu0
      %v2503 = vadd.f32 0.0, %v2502
      %v2504 = vpop.f32.mrb[0].mxu0
      %2505 = vmatprep.mubr.bf16.mxu0 0
      %2506 = vmatmul.mubr.bf16.gmra.mrb[0].mxu0 %v1998
      %v2507 = vpop.f32.mrb[0].mxu0
      %v2508 = vadd.f32 0.0, %v2507
      %v2509 = vpop.f32.mrb[0].mxu0
      %v2510 = vpop.f32.mrb[0].mxu0
      %v2511 = vadd.f32 0.0, %v2510
      %v2512 = vpop.f32.mrb[0].mxu0
      %2513 = vmatprep.mubr.bf16.mxu0 0
      %2514 = vmatmul.mubr.bf16.gmra.mrb[0].mxu0 %v2002
      %v2515 = vpop.f32.mrb[0].mxu0
      %v2516 = vadd.f32 0.0, %v2515
      %v2517 = vpop.f32.mrb[0].mxu0
      %v2518 = vpop.f32.mrb[0].mxu0
      %v2519 = vadd.f32 0.0, %v2518
      %v2520 = vpop.f32.mrb[0].mxu0
      %2521 = vmatprep.mubr.bf16.mxu0 0
      %2522 = vmatmul.mubr.bf16.gmra.mrb[0].mxu0 %v2006
      %v2523 = vpop.f32.mrb[0].mxu0
      %v2524 = vadd.f32 0.0, %v2523
      %v2525 = vpop.f32.mrb[0].mxu0
      %v2526 = vpop.f32.mrb[0].mxu0
      %v2527 = vadd.f32 0.0, %v2526
      %v2528 = vpop.f32.mrb[0].mxu0
      %2529 = vmatprep.mubr.bf16.mxu0 0
      %2530 = vmatmul.mubr.bf16.gmra.mrb[0].mxu0 %v2311
      %v2531 = vpop.f32.mrb[0].mxu0
      %v2532 = vadd.f32 0.0, %v2531
      %v2533 = vpop.f32.mrb[0].mxu0
      %v2534 = vpop.f32.mrb[0].mxu0
      %v2535 = vadd.f32 0.0, %v2534
      %v2536 = vpop.f32.mrb[0].mxu0
      %2537 = vdwg.mxu0
      %v2538 = vadd.f32 %v2250, %v2396
      %v2539 = vadd.f32 %v2251, %v2399
      %v2540 = vadd.f32 %v2252, %v2404
      %v2541 = vadd.f32 %v2253, %v2407
      %v2542 = vadd.f32 %v2254, %v2412
      %v2543 = vadd.f32 %v2255, %v2415
      %v2544 = vadd.f32 %v2256, %v2420
      %v2545 = vadd.f32 %v2257, %v2423
      %v2546 = vadd.f32 %v2258, %v2428
      %v2547 = vadd.f32 %v2259, %v2431
      %v2548 = vadd.f32 %v2260, %v2436
      %v2549 = vadd.f32 %v2261, %v2439
      %v2550 = vadd.f32 %v2262, %v2444
      %v2551 = vadd.f32 %v2263, %v2447
      %v2552 = vadd.f32 %v2264, %v2452
      %v2553 = vadd.f32 %v2265, %v2455
      %v2554 = vadd.f32 %v2266, %v2460
      %v2555 = vadd.f32 %v2267, %v2463
      %v2556 = vadd.f32 %v2268, %v2468
      %v2557 = vadd.f32 %v2269, %v2471
      %v2558 = vadd.f32 %v2270, %v2476
      %v2559 = vadd.f32 %v2271, %v2479
      %v2560 = vadd.f32 %v2272, %v2484
      %v2561 = vadd.f32 %v2273, %v2487
      %v2562 = vadd.f32 %v2274, %v2492
      %v2563 = vadd.f32 %v2275, %v2495
      %v2564 = vadd.f32 %v2276, %v2500
      %v2565 = vadd.f32 %v2277, %v2503
      %v2566 = vadd.f32 %v2278, %v2508
      %v2567 = vadd.f32 %v2279, %v2511
      %v2568 = vadd.f32 %v2280, %v2516
      %v2569 = vadd.f32 %v2281, %v2519
      %v2570 = vadd.f32 %v2282, %v2524
      %v2571 = vadd.f32 %v2283, %v2527
      %v2572 = vadd.f32 %v2284, %v2532
      %v2573 = vadd.f32 %v2285, %v2535
      %s2574 = scalar_lea.vmem %s4, 256
      %v2575 = vld [vmem:[%s2574] sm:$0xf]
      %v2576 = vld [vmem:[%s2574 + $0x4] sm:$0xf]
      %v2577 = vld [vmem:[%s2574 + $0x8] sm:$0xf]
      %v2578 = vld [vmem:[%s2574 + $0xc] sm:$0xf]
      %v2579 = vld [vmem:[%s2574 + $0x10] sm:$0xf]
      %v2580 = vld [vmem:[%s2574 + $0x14] sm:$0xf]
      %v2581 = vld [vmem:[%s2574 + $0x18] sm:$0xf]
      %v2582 = vld [vmem:[%s2574 + $0x1c] sm:$0xf]
      %v2583 = vld [vmem:[%s2574 + $0x20] sm:$0xf]
      %v2584 = vld [vmem:[%s2574 + $0x24] sm:$0xf]
      %v2585 = vld [vmem:[%s2574 + $0x28] sm:$0xf]
      %v2586 = vld [vmem:[%s2574 + $0x2c] sm:$0xf]
      %v2587 = vld [vmem:[%s2574 + $0x30] sm:$0xf]
      %v2588 = vld [vmem:[%s2574 + $0x34] sm:$0xf]
      %v2589 = vld [vmem:[%s2574 + $0x38] sm:$0xf]
      %v2590 = vld [vmem:[%s2574 + $0x3c] sm:$0xf]
      %vm2591 = vcmask 1042432
      %v2592 = vrot.slane %v1062, 5
      %v2593 = vrot.slane %v1064, 5
      %v2594 = vsel %vm2591, %v2592, %v2593
      %v2595 = vrot.slane %v1066, 5
      %v2596 = vsel %vm2591, %v2593, %v2595
      %v2597 = vrot.slane %v1068, 5
      %v2598 = vsel %vm2591, %v2595, %v2597
      %v2599 = vrot.slane %v1070, 5
      %v2600 = vsel %vm2591, %v2597, %v2599
      %v2601 = vrot.slane %v1072, 5
      %v2602 = vsel %vm2591, %v2599, %v2601
      %v2603 = vrot.slane %v1074, 5
      %v2604 = vsel %vm2591, %v2601, %v2603
      %v2605 = vrot.slane %v1076, 5
      %v2606 = vsel %vm2591, %v2603, %v2605
      %v2607 = vrot.slane %v1078, 5
      %v2608 = vsel %vm2591, %v2605, %v2607
      %v2609 = vrot.slane %v1080, 5
      %v2610 = vsel %vm2591, %v2607, %v2609
      %v2611 = vrot.slane %v1082, 5
      %v2612 = vsel %vm2591, %v2609, %v2611
      %v2613 = vrot.slane %v1084, 5
      %v2614 = vsel %vm2591, %v2611, %v2613
      %v2615 = vrot.slane %v1086, 5
      %v2616 = vsel %vm2591, %v2613, %v2615
      %v2617 = vrot.slane %v1088, 5
      %v2618 = vsel %vm2591, %v2615, %v2617
      %v2619 = vrot.slane %v1090, 5
      %v2620 = vsel %vm2591, %v2617, %v2619
      %v2621 = vrot.slane %v1092, 5
      %v2622 = vsel %vm2591, %v2619, %v2621
      %v2623 = vrot.slane %v1094, 5
      %v2624 = vsel %vm2591, %v2621, %v2623
      %v2625 = vrot.slane %v1096, 5
      %v2626 = vsel %vm2591, %v2623, %v2625
      %v2627 = vrot.slane %v1098, 5
      %v2628 = vsel %vm2591, %v2625, %v2627
      %v2663 = vunpack.c.l.b16 %v2575
      %v2664 = vunpack.c.l.b16 %v2576
      %v2665 = vunpack.c.l.b16 %v2577
      %v2666 = vunpack.c.l.b16 %v2578
      %v2667 = vunpack.c.l.b16 %v2579
      %v2668 = vunpack.c.l.b16 %v2580
      %v2669 = vunpack.c.l.b16 %v2581
      %v2670 = vunpack.c.l.b16 %v2582
      %v2671 = vunpack.c.l.b16 %v2583
      %v2672 = vunpack.c.l.b16 %v2584
      %v2673 = vunpack.c.l.b16 %v2585
      %v2674 = vunpack.c.l.b16 %v2586
      %v2675 = vunpack.c.l.b16 %v2587
      %v2676 = vunpack.c.l.b16 %v2588
      %v2677 = vunpack.c.l.b16 %v2589
      %v2678 = vunpack.c.l.b16 %v2590
      %v2679 = vpack.c.b16 %v2664, %v2663
      %v2680 = vpack.c.b16 %v2666, %v2665
      %v2681 = vpack.c.b16 %v2668, %v2667
      %v2682 = vpack.c.b16 %v2670, %v2669
      %v2683 = vpack.c.b16 %v2672, %v2671
      %v2684 = vpack.c.b16 %v2674, %v2673
      %v2685 = vpack.c.b16 %v2676, %v2675
      %v2686 = vpack.c.b16 %v2678, %v2677
      %2695 = vmatprep.subr.bf16.mxu0 0
      %2696 = vmatpush1.bf16.msra.mxu0 %v2679
      %2697 = vmatprep.subr.bf16.mxu0 0
      %2698 = vmatpush1.bf16.msra.mxu0 %v2680
      %2699 = vmatprep.subr.bf16.mxu0 0
      %2700 = vmatpush1.bf16.msra.mxu0 %v2681
      %2701 = vmatprep.subr.bf16.mxu0 0
      %2702 = vmatpush1.bf16.msra.mxu0 %v2682
      %2703 = vmatprep.subr.bf16.mxu0 0
      %2704 = vmatpush1.bf16.msra.mxu0 %v2683
      %2705 = vmatprep.subr.bf16.mxu0 0
      %2706 = vmatpush1.bf16.msra.mxu0 %v2684
      %2707 = vmatprep.subr.bf16.mxu0 0
      %2708 = vmatpush1.bf16.msra.mxu0 %v2685
      %2709 = vmatprep.subr.bf16.mxu0 0
      %2710 = vmatpush1.bf16.msra.mxu0 %v2686
      %2711 = vmatprep.subr.bf16.mxu0 0
      %2712 = vmatpush1.bf16.msra.mxu0 0
      %2713 = vmatprep.subr.bf16.mxu0 0
      %2714 = vmatpush1.bf16.msra.mxu0 0
      %2715 = vmatprep.subr.bf16.mxu0 0
      %2716 = vmatpush1.bf16.msra.mxu0 0
      %2717 = vmatprep.subr.bf16.mxu0 0
      %2718 = vmatpush1.bf16.msra.mxu0 0
      %2719 = vmatprep.subr.bf16.mxu0 0
      %2720 = vmatpush1.bf16.msra.mxu0 0
      %2721 = vmatprep.subr.bf16.mxu0 0
      %2722 = vmatpush1.bf16.msra.mxu0 0
      %2723 = vmatprep.subr.bf16.mxu0 0
      %2724 = vmatpush1.bf16.msra.mxu0 0
      %2725 = vmatprep.subr.bf16.mxu0 0
      %2726 = vmatpush1.bf16.msra.mxu0 0
      %2727 = vmatprep.mubr.bf16.mxu0 0
      %2728 = vmatmul.mubr.bf16.gmra.mrb[0].mxu0 %v2594
      %v2729 = vpop.f32.mrb[0].mxu0
      %v2730 = vadd.f32 0.0, %v2729
      %v2731 = vpop.f32.mrb[0].mxu0
      %v2732 = vpop.f32.mrb[0].mxu0
      %v2733 = vadd.f32 0.0, %v2732
      %v2734 = vpop.f32.mrb[0].mxu0
      %2735 = vmatprep.mubr.bf16.mxu0 0
      %2736 = vmatmul.mubr.bf16.gmra.mrb[0].mxu0 %v2596
      %v2737 = vpop.f32.mrb[0].mxu0
      %v2738 = vadd.f32 0.0, %v2737
      %v2739 = vpop.f32.mrb[0].mxu0
      %v2740 = vpop.f32.mrb[0].mxu0
      %v2741 = vadd.f32 0.0, %v2740
      %v2742 = vpop.f32.mrb[0].mxu0
      %2743 = vmatprep.mubr.bf16.mxu0 0
      %2744 = vmatmul.mubr.bf16.gmra.mrb[0].mxu0 %v2598
      %v2745 = vpop.f32.mrb[0].mxu0
      %v2746 = vadd.f32 0.0, %v2745
      %v2747 = vpop.f32.mrb[0].mxu0
      %v2748 = vpop.f32.mrb[0].mxu0
      %v2749 = vadd.f32 0.0, %v2748
      %v2750 = vpop.f32.mrb[0].mxu0
      %2751 = vmatprep.mubr.bf16.mxu0 0
      %2752 = vmatmul.mubr.bf16.gmra.mrb[0].mxu0 %v2600
      %v2753 = vpop.f32.mrb[0].mxu0
      %v2754 = vadd.f32 0.0, %v2753
      %v2755 = vpop.f32.mrb[0].mxu0
      %v2756 = vpop.f32.mrb[0].mxu0
      %v2757 = vadd.f32 0.0, %v2756
      %v2758 = vpop.f32.mrb[0].mxu0
      %2759 = vmatprep.mubr.bf16.mxu0 0
      %2760 = vmatmul.mubr.bf16.gmra.mrb[0].mxu0 %v2602
      %v2761 = vpop.f32.mrb[0].mxu0
      %v2762 = vadd.f32 0.0, %v2761
      %v2763 = vpop.f32.mrb[0].mxu0
      %v2764 = vpop.f32.mrb[0].mxu0
      %v2765 = vadd.f32 0.0, %v2764
      %v2766 = vpop.f32.mrb[0].mxu0
      %2767 = vmatprep.mubr.bf16.mxu0 0
      %2768 = vmatmul.mubr.bf16.gmra.mrb[0].mxu0 %v2604
      %v2769 = vpop.f32.mrb[0].mxu0
      %v2770 = vadd.f32 0.0, %v2769
      %v2771 = vpop.f32.mrb[0].mxu0
      %v2772 = vpop.f32.mrb[0].mxu0
      %v2773 = vadd.f32 0.0, %v2772
      %v2774 = vpop.f32.mrb[0].mxu0
      %2775 = vmatprep.mubr.bf16.mxu0 0
      %2776 = vmatmul.mubr.bf16.gmra.mrb[0].mxu0 %v2606
      %v2777 = vpop.f32.mrb[0].mxu0
      %v2778 = vadd.f32 0.0, %v2777
      %v2779 = vpop.f32.mrb[0].mxu0
      %v2780 = vpop.f32.mrb[0].mxu0
      %v2781 = vadd.f32 0.0, %v2780
      %v2782 = vpop.f32.mrb[0].mxu0
      %2783 = vmatprep.mubr.bf16.mxu0 0
      %2784 = vmatmul.mubr.bf16.gmra.mrb[0].mxu0 %v2608
      %v2785 = vpop.f32.mrb[0].mxu0
      %v2786 = vadd.f32 0.0, %v2785
      %v2787 = vpop.f32.mrb[0].mxu0
      %v2788 = vpop.f32.mrb[0].mxu0
      %v2789 = vadd.f32 0.0, %v2788
      %v2790 = vpop.f32.mrb[0].mxu0
      %2791 = vmatprep.mubr.bf16.mxu0 0
      %2792 = vmatmul.mubr.bf16.gmra.mrb[0].mxu0 %v2610
      %v2793 = vpop.f32.mrb[0].mxu0
      %v2794 = vadd.f32 0.0, %v2793
      %v2795 = vpop.f32.mrb[0].mxu0
      %v2796 = vpop.f32.mrb[0].mxu0
      %v2797 = vadd.f32 0.0, %v2796
      %v2798 = vpop.f32.mrb[0].mxu0
      %2799 = vmatprep.mubr.bf16.mxu0 0
      %2800 = vmatmul.mubr.bf16.gmra.mrb[0].mxu0 %v2612
      %v2801 = vpop.f32.mrb[0].mxu0
      %v2802 = vadd.f32 0.0, %v2801
      %v2803 = vpop.f32.mrb[0].mxu0
      %v2804 = vpop.f32.mrb[0].mxu0
      %v2805 = vadd.f32 0.0, %v2804
      %v2806 = vpop.f32.mrb[0].mxu0
      %2807 = vmatprep.mubr.bf16.mxu0 0
      %2808 = vmatmul.mubr.bf16.gmra.mrb[0].mxu0 %v2614
      %v2809 = vpop.f32.mrb[0].mxu0
      %v2810 = vadd.f32 0.0, %v2809
      %v2811 = vpop.f32.mrb[0].mxu0
      %v2812 = vpop.f32.mrb[0].mxu0
      %v2813 = vadd.f32 0.0, %v2812
      %v2814 = vpop.f32.mrb[0].mxu0
      %2815 = vmatprep.mubr.bf16.mxu0 0
      %2816 = vmatmul.mubr.bf16.gmra.mrb[0].mxu0 %v2616
      %v2817 = vpop.f32.mrb[0].mxu0
      %v2818 = vadd.f32 0.0, %v2817
      %v2819 = vpop.f32.mrb[0].mxu0
      %v2820 = vpop.f32.mrb[0].mxu0
      %v2821 = vadd.f32 0.0, %v2820
      %v2822 = vpop.f32.mrb[0].mxu0
      %2823 = vmatprep.mubr.bf16.mxu0 0
      %2824 = vmatmul.mubr.bf16.gmra.mrb[0].mxu0 %v2618
      %v2825 = vpop.f32.mrb[0].mxu0
      %v2826 = vadd.f32 0.0, %v2825
      %v2827 = vpop.f32.mrb[0].mxu0
      %v2828 = vpop.f32.mrb[0].mxu0
      %v2829 = vadd.f32 0.0, %v2828
      %v2830 = vpop.f32.mrb[0].mxu0
      %2831 = vmatprep.mubr.bf16.mxu0 0
      %2832 = vmatmul.mubr.bf16.gmra.mrb[0].mxu0 %v2620
      %v2833 = vpop.f32.mrb[0].mxu0
      %v2834 = vadd.f32 0.0, %v2833
      %v2835 = vpop.f32.mrb[0].mxu0
      %v2836 = vpop.f32.mrb[0].mxu0
      %v2837 = vadd.f32 0.0, %v2836
      %v2838 = vpop.f32.mrb[0].mxu0
      %2839 = vmatprep.mubr.bf16.mxu0 0
      %2840 = vmatmul.mubr.bf16.gmra.mrb[0].mxu0 %v2622
      %v2841 = vpop.f32.mrb[0].mxu0
      %v2842 = vadd.f32 0.0, %v2841
      %v2843 = vpop.f32.mrb[0].mxu0
      %v2844 = vpop.f32.mrb[0].mxu0
      %v2845 = vadd.f32 0.0, %v2844
      %v2846 = vpop.f32.mrb[0].mxu0
      %2847 = vmatprep.mubr.bf16.mxu0 0
      %2848 = vmatmul.mubr.bf16.gmra.mrb[0].mxu0 %v2624
      %v2849 = vpop.f32.mrb[0].mxu0
      %v2850 = vadd.f32 0.0, %v2849
      %v2851 = vpop.f32.mrb[0].mxu0
      %v2852 = vpop.f32.mrb[0].mxu0
      %v2853 = vadd.f32 0.0, %v2852
      %v2854 = vpop.f32.mrb[0].mxu0
      %2855 = vmatprep.mubr.bf16.mxu0 0
      %2856 = vmatmul.mubr.bf16.gmra.mrb[0].mxu0 %v2626
      %v2857 = vpop.f32.mrb[0].mxu0
      %v2858 = vadd.f32 0.0, %v2857
      %v2859 = vpop.f32.mrb[0].mxu0
      %v2860 = vpop.f32.mrb[0].mxu0
      %v2861 = vadd.f32 0.0, %v2860
      %v2862 = vpop.f32.mrb[0].mxu0
      %2863 = vmatprep.mubr.bf16.mxu0 0
      %2864 = vmatmul.mubr.bf16.gmra.mrb[0].mxu0 %v2628
      %v2865 = vpop.f32.mrb[0].mxu0
      %v2866 = vadd.f32 0.0, %v2865
      %v2867 = vpop.f32.mrb[0].mxu0
      %v2868 = vpop.f32.mrb[0].mxu0
      %v2869 = vadd.f32 0.0, %v2868
      %v2870 = vpop.f32.mrb[0].mxu0
      %2871 = vdwg.mxu0
      %v2872 = vadd.f32 %v2538, %v2730
      %v2873 = vadd.f32 %v2539, %v2733
      %v2874 = vadd.f32 %v2540, %v2738
      %v2875 = vadd.f32 %v2541, %v2741
      %v2876 = vadd.f32 %v2542, %v2746
      %v2877 = vadd.f32 %v2543, %v2749
      %v2878 = vadd.f32 %v2544, %v2754
      %v2879 = vadd.f32 %v2545, %v2757
      %v2880 = vadd.f32 %v2546, %v2762
      %v2881 = vadd.f32 %v2547, %v2765
      %v2882 = vadd.f32 %v2548, %v2770
      %v2883 = vadd.f32 %v2549, %v2773
      %v2884 = vadd.f32 %v2550, %v2778
      %v2885 = vadd.f32 %v2551, %v2781
      %v2886 = vadd.f32 %v2552, %v2786
      %v2887 = vadd.f32 %v2553, %v2789
      %v2888 = vadd.f32 %v2554, %v2794
      %v2889 = vadd.f32 %v2555, %v2797
      %v2890 = vadd.f32 %v2556, %v2802
      %v2891 = vadd.f32 %v2557, %v2805
      %v2892 = vadd.f32 %v2558, %v2810
      %v2893 = vadd.f32 %v2559, %v2813
      %v2894 = vadd.f32 %v2560, %v2818
      %v2895 = vadd.f32 %v2561, %v2821
      %v2896 = vadd.f32 %v2562, %v2826
      %v2897 = vadd.f32 %v2563, %v2829
      %v2898 = vadd.f32 %v2564, %v2834
      %v2899 = vadd.f32 %v2565, %v2837
      %v2900 = vadd.f32 %v2566, %v2842
      %v2901 = vadd.f32 %v2567, %v2845
      %v2902 = vadd.f32 %v2568, %v2850
      %v2903 = vadd.f32 %v2569, %v2853
      %v2904 = vadd.f32 %v2570, %v2858
      %v2905 = vadd.f32 %v2571, %v2861
      %v2906 = vadd.f32 %v2572, %v2866
      %v2907 = vadd.f32 %v2573, %v2869
      %s2908 = scalar_lea.vmem %s4, 320
      %v2909 = vld [vmem:[%s2908] sm:$0xf]
      %v2910 = vld [vmem:[%s2908 + $0x4] sm:$0xf]
      %v2911 = vld [vmem:[%s2908 + $0x8] sm:$0xf]
      %v2912 = vld [vmem:[%s2908 + $0xc] sm:$0xf]
      %v2913 = vld [vmem:[%s2908 + $0x10] sm:$0xf]
      %v2914 = vld [vmem:[%s2908 + $0x14] sm:$0xf]
      %v2915 = vld [vmem:[%s2908 + $0x18] sm:$0xf]
      %v2916 = vld [vmem:[%s2908 + $0x1c] sm:$0xf]
      %v2917 = vld [vmem:[%s2908 + $0x20] sm:$0xf]
      %v2918 = vld [vmem:[%s2908 + $0x24] sm:$0xf]
      %v2919 = vld [vmem:[%s2908 + $0x28] sm:$0xf]
      %v2920 = vld [vmem:[%s2908 + $0x2c] sm:$0xf]
      %v2921 = vld [vmem:[%s2908 + $0x30] sm:$0xf]
      %v2922 = vld [vmem:[%s2908 + $0x34] sm:$0xf]
      %v2923 = vld [vmem:[%s2908 + $0x38] sm:$0xf]
      %v2924 = vld [vmem:[%s2908 + $0x3c] sm:$0xf]
      %vm2925 = vsmask.f32 2304
      %v2926 = vrot.slane %v1140, 5
      %v2927 = vrot.slane %v1143, 6
      %v2928 = vor.u32 %v2926, %v2927
      %v2929 = vrot.slane %v1149, 5
      %v2930 = vrot.slane %v1152, 6
      %v2931 = vor.u32 %v2929, %v2930
      %v2932 = vsel %vm2925, %v2928, %v2931
      %v2933 = vrot.slane %v1158, 5
      %v2934 = vrot.slane %v1161, 6
      %v2935 = vor.u32 %v2933, %v2934
      %v2936 = vsel %vm2925, %v2931, %v2935
      %v2937 = vrot.slane %v1167, 5
      %v2938 = vrot.slane %v1170, 6
      %v2939 = vor.u32 %v2937, %v2938
      %v2940 = vsel %vm2925, %v2935, %v2939
      %v2941 = vrot.slane %v1176, 5
      %v2942 = vrot.slane %v1179, 6
      %v2943 = vor.u32 %v2941, %v2942
      %v2944 = vsel %vm2925, %v2939, %v2943
      %v2945 = vrot.slane %v1185, 5
      %v2946 = vrot.slane %v1188, 6
      %v2947 = vor.u32 %v2945, %v2946
      %v2948 = vsel %vm2925, %v2943, %v2947
      %v2949 = vrot.slane %v1194, 5
      %v2950 = vrot.slane %v1197, 6
      %v2951 = vor.u32 %v2949, %v2950
      %v2952 = vsel %vm2925, %v2947, %v2951
      %v2953 = vrot.slane %v1203, 5
      %v2954 = vrot.slane %v1206, 6
      %v2955 = vor.u32 %v2953, %v2954
      %v2956 = vsel %vm2925, %v2951, %v2955
      %v2957 = vrot.slane %v1212, 5
      %v2958 = vrot.slane %v1215, 6
      %v2959 = vor.u32 %v2957, %v2958
      %v2960 = vsel %vm2925, %v2955, %v2959
      %v2961 = vrot.slane %v1221, 5
      %v2962 = vrot.slane %v1224, 6
      %v2963 = vor.u32 %v2961, %v2962
      %v2964 = vsel %vm2925, %v2959, %v2963
      %v2965 = vrot.slane %v1230, 5
      %v2966 = vrot.slane %v1233, 6
      %v2967 = vor.u32 %v2965, %v2966
      %v2968 = vsel %vm2925, %v2963, %v2967
      %v2969 = vrot.slane %v1239, 5
      %v2970 = vrot.slane %v1242, 6
      %v2971 = vor.u32 %v2969, %v2970
      %v2972 = vsel %vm2925, %v2967, %v2971
      %v2973 = vrot.slane %v1248, 5
      %v2974 = vrot.slane %v1251, 6
      %v2975 = vor.u32 %v2973, %v2974
      %v2976 = vsel %vm2925, %v2971, %v2975
      %v2977 = vrot.slane %v1257, 5
      %v2978 = vrot.slane %v1260, 6
      %v2979 = vor.u32 %v2977, %v2978
      %v2980 = vsel %vm2925, %v2975, %v2979
      %v2981 = vrot.slane %v1266, 5
      %v2982 = vrot.slane %v1269, 6
      %v2983 = vor.u32 %v2981, %v2982
      %v2984 = vsel %vm2925, %v2979, %v2983
      %v2985 = vrot.slane %v1275, 5
      %v2986 = vrot.slane %v1278, 6
      %v2987 = vor.u32 %v2985, %v2986
      %v2988 = vsel %vm2925, %v2983, %v2987
      %v2989 = vrot.slane %v1284, 5
      %v2990 = vrot.slane %v1287, 6
      %v2991 = vor.u32 %v2989, %v2990
      %v2992 = vsel %vm2925, %v2987, %v2991
      %v2993 = vrot.slane %v1293, 5
      %v2994 = vrot.slane %v1296, 6
      %v2995 = vor.u32 %v2993, %v2994
      %v2996 = vsel %vm2925, %v2991, %v2995
      %v2997 = vrot.slane %v2304, 5
      %v2998 = vrot.slane %v2307, 6
      %v2999 = vor.u32 %v2997, %v2998
      %v3000 = vsel %vm2925, %v2995, %v2999
      %v3035 = vunpack.c.l.b16 %v2909
      %v3036 = vunpack.c.l.b16 %v2910
      %v3037 = vunpack.c.l.b16 %v2911
      %v3038 = vunpack.c.l.b16 %v2912
      %v3039 = vunpack.c.l.b16 %v2913
      %v3040 = vunpack.c.l.b16 %v2914
      %v3041 = vunpack.c.l.b16 %v2915
      %v3042 = vunpack.c.l.b16 %v2916
      %v3043 = vunpack.c.l.b16 %v2917
      %v3044 = vunpack.c.l.b16 %v2918
      %v3045 = vunpack.c.l.b16 %v2919
      %v3046 = vunpack.c.l.b16 %v2920
      %v3047 = vunpack.c.l.b16 %v2921
      %v3048 = vunpack.c.l.b16 %v2922
      %v3049 = vunpack.c.l.b16 %v2923
      %v3050 = vunpack.c.l.b16 %v2924
      %v3051 = vpack.c.b16 %v3036, %v3035
      %v3052 = vpack.c.b16 %v3038, %v3037
      %v3053 = vpack.c.b16 %v3040, %v3039
      %v3054 = vpack.c.b16 %v3042, %v3041
      %v3055 = vpack.c.b16 %v3044, %v3043
      %v3056 = vpack.c.b16 %v3046, %v3045
      %v3057 = vpack.c.b16 %v3048, %v3047
      %v3058 = vpack.c.b16 %v3050, %v3049
      %3067 = vmatprep.subr.bf16.mxu0 0
      %3068 = vmatpush1.bf16.msra.mxu0 %v3051
      %3069 = vmatprep.subr.bf16.mxu0 0
      %3070 = vmatpush1.bf16.msra.mxu0 %v3052
      %3071 = vmatprep.subr.bf16.mxu0 0
      %3072 = vmatpush1.bf16.msra.mxu0 %v3053
      %3073 = vmatprep.subr.bf16.mxu0 0
      %3074 = vmatpush1.bf16.msra.mxu0 %v3054
      %3075 = vmatprep.subr.bf16.mxu0 0
      %3076 = vmatpush1.bf16.msra.mxu0 %v3055
      %3077 = vmatprep.subr.bf16.mxu0 0
      %3078 = vmatpush1.bf16.msra.mxu0 %v3056
      %3079 = vmatprep.subr.bf16.mxu0 0
      %3080 = vmatpush1.bf16.msra.mxu0 %v3057
      %3081 = vmatprep.subr.bf16.mxu0 0
      %3082 = vmatpush1.bf16.msra.mxu0 %v3058
      %3083 = vmatprep.subr.bf16.mxu0 0
      %3084 = vmatpush1.bf16.msra.mxu0 0
      %3085 = vmatprep.subr.bf16.mxu0 0
      %3086 = vmatpush1.bf16.msra.mxu0 0
      %3087 = vmatprep.subr.bf16.mxu0 0
      %3088 = vmatpush1.bf16.msra.mxu0 0
      %3089 = vmatprep.subr.bf16.mxu0 0
      %3090 = vmatpush1.bf16.msra.mxu0 0
      %3091 = vmatprep.subr.bf16.mxu0 0
      %3092 = vmatpush1.bf16.msra.mxu0 0
      %3093 = vmatprep.subr.bf16.mxu0 0
      %3094 = vmatpush1.bf16.msra.mxu0 0
      %3095 = vmatprep.subr.bf16.mxu0 0
      %3096 = vmatpush1.bf16.msra.mxu0 0
      %3097 = vmatprep.subr.bf16.mxu0 0
      %3098 = vmatpush1.bf16.msra.mxu0 0
      %3099 = vmatprep.mubr.bf16.mxu0 0
      %3100 = vmatmul.mubr.bf16.gmra.mrb[0].mxu0 %v2932
      %v3101 = vpop.f32.mrb[0].mxu0
      %v3102 = vadd.f32 0.0, %v3101
      %v3103 = vpop.f32.mrb[0].mxu0
      %v3104 = vpop.f32.mrb[0].mxu0
      %v3105 = vadd.f32 0.0, %v3104
      %v3106 = vpop.f32.mrb[0].mxu0
      %3107 = vmatprep.mubr.bf16.mxu0 0
      %3108 = vmatmul.mubr.bf16.gmra.mrb[0].mxu0 %v2936
      %v3109 = vpop.f32.mrb[0].mxu0
      %v3110 = vadd.f32 0.0, %v3109
      %v3111 = vpop.f32.mrb[0].mxu0
      %v3112 = vpop.f32.mrb[0].mxu0
      %v3113 = vadd.f32 0.0, %v3112
      %v3114 = vpop.f32.mrb[0].mxu0
      %3115 = vmatprep.mubr.bf16.mxu0 0
      %3116 = vmatmul.mubr.bf16.gmra.mrb[0].mxu0 %v2940
      %v3117 = vpop.f32.mrb[0].mxu0
      %v3118 = vadd.f32 0.0, %v3117
      %v3119 = vpop.f32.mrb[0].mxu0
      %v3120 = vpop.f32.mrb[0].mxu0
      %v3121 = vadd.f32 0.0, %v3120
      %v3122 = vpop.f32.mrb[0].mxu0
      %3123 = vmatprep.mubr.bf16.mxu0 0
      %3124 = vmatmul.mubr.bf16.gmra.mrb[0].mxu0 %v2944
      %v3125 = vpop.f32.mrb[0].mxu0
      %v3126 = vadd.f32 0.0, %v3125
      %v3127 = vpop.f32.mrb[0].mxu0
      %v3128 = vpop.f32.mrb[0].mxu0
      %v3129 = vadd.f32 0.0, %v3128
      %v3130 = vpop.f32.mrb[0].mxu0
      %3131 = vmatprep.mubr.bf16.mxu0 0
      %3132 = vmatmul.mubr.bf16.gmra.mrb[0].mxu0 %v2948
      %v3133 = vpop.f32.mrb[0].mxu0
      %v3134 = vadd.f32 0.0, %v3133
      %v3135 = vpop.f32.mrb[0].mxu0
      %v3136 = vpop.f32.mrb[0].mxu0
      %v3137 = vadd.f32 0.0, %v3136
      %v3138 = vpop.f32.mrb[0].mxu0
      %3139 = vmatprep.mubr.bf16.mxu0 0
      %3140 = vmatmul.mubr.bf16.gmra.mrb[0].mxu0 %v2952
      %v3141 = vpop.f32.mrb[0].mxu0
      %v3142 = vadd.f32 0.0, %v3141
      %v3143 = vpop.f32.mrb[0].mxu0
      %v3144 = vpop.f32.mrb[0].mxu0
      %v3145 = vadd.f32 0.0, %v3144
      %v3146 = vpop.f32.mrb[0].mxu0
      %3147 = vmatprep.mubr.bf16.mxu0 0
      %3148 = vmatmul.mubr.bf16.gmra.mrb[0].mxu0 %v2956
      %v3149 = vpop.f32.mrb[0].mxu0
      %v3150 = vadd.f32 0.0, %v3149
      %v3151 = vpop.f32.mrb[0].mxu0
      %v3152 = vpop.f32.mrb[0].mxu0
      %v3153 = vadd.f32 0.0, %v3152
      %v3154 = vpop.f32.mrb[0].mxu0
      %3155 = vmatprep.mubr.bf16.mxu0 0
      %3156 = vmatmul.mubr.bf16.gmra.mrb[0].mxu0 %v2960
      %v3157 = vpop.f32.mrb[0].mxu0
      %v3158 = vadd.f32 0.0, %v3157
      %v3159 = vpop.f32.mrb[0].mxu0
      %v3160 = vpop.f32.mrb[0].mxu0
      %v3161 = vadd.f32 0.0, %v3160
      %v3162 = vpop.f32.mrb[0].mxu0
      %3163 = vmatprep.mubr.bf16.mxu0 0
      %3164 = vmatmul.mubr.bf16.gmra.mrb[0].mxu0 %v2964
      %v3165 = vpop.f32.mrb[0].mxu0
      %v3166 = vadd.f32 0.0, %v3165
      %v3167 = vpop.f32.mrb[0].mxu0
      %v3168 = vpop.f32.mrb[0].mxu0
      %v3169 = vadd.f32 0.0, %v3168
      %v3170 = vpop.f32.mrb[0].mxu0
      %3171 = vmatprep.mubr.bf16.mxu0 0
      %3172 = vmatmul.mubr.bf16.gmra.mrb[0].mxu0 %v2968
      %v3173 = vpop.f32.mrb[0].mxu0
      %v3174 = vadd.f32 0.0, %v3173
      %v3175 = vpop.f32.mrb[0].mxu0
      %v3176 = vpop.f32.mrb[0].mxu0
      %v3177 = vadd.f32 0.0, %v3176
      %v3178 = vpop.f32.mrb[0].mxu0
      %3179 = vmatprep.mubr.bf16.mxu0 0
      %3180 = vmatmul.mubr.bf16.gmra.mrb[0].mxu0 %v2972
      %v3181 = vpop.f32.mrb[0].mxu0
      %v3182 = vadd.f32 0.0, %v3181
      %v3183 = vpop.f32.mrb[0].mxu0
      %v3184 = vpop.f32.mrb[0].mxu0
      %v3185 = vadd.f32 0.0, %v3184
      %v3186 = vpop.f32.mrb[0].mxu0
      %3187 = vmatprep.mubr.bf16.mxu0 0
      %3188 = vmatmul.mubr.bf16.gmra.mrb[0].mxu0 %v2976
      %v3189 = vpop.f32.mrb[0].mxu0
      %v3190 = vadd.f32 0.0, %v3189
      %v3191 = vpop.f32.mrb[0].mxu0
      %v3192 = vpop.f32.mrb[0].mxu0
      %v3193 = vadd.f32 0.0, %v3192
      %v3194 = vpop.f32.mrb[0].mxu0
      %3195 = vmatprep.mubr.bf16.mxu0 0
      %3196 = vmatmul.mubr.bf16.gmra.mrb[0].mxu0 %v2980
      %v3197 = vpop.f32.mrb[0].mxu0
      %v3198 = vadd.f32 0.0, %v3197
      %v3199 = vpop.f32.mrb[0].mxu0
      %v3200 = vpop.f32.mrb[0].mxu0
      %v3201 = vadd.f32 0.0, %v3200
      %v3202 = vpop.f32.mrb[0].mxu0
      %3203 = vmatprep.mubr.bf16.mxu0 0
      %3204 = vmatmul.mubr.bf16.gmra.mrb[0].mxu0 %v2984
      %v3205 = vpop.f32.mrb[0].mxu0
      %v3206 = vadd.f32 0.0, %v3205
      %v3207 = vpop.f32.mrb[0].mxu0
      %v3208 = vpop.f32.mrb[0].mxu0
      %v3209 = vadd.f32 0.0, %v3208
      %v3210 = vpop.f32.mrb[0].mxu0
      %3211 = vmatprep.mubr.bf16.mxu0 0
      %3212 = vmatmul.mubr.bf16.gmra.mrb[0].mxu0 %v2988
      %v3213 = vpop.f32.mrb[0].mxu0
      %v3214 = vadd.f32 0.0, %v3213
      %v3215 = vpop.f32.mrb[0].mxu0
      %v3216 = vpop.f32.mrb[0].mxu0
      %v3217 = vadd.f32 0.0, %v3216
      %v3218 = vpop.f32.mrb[0].mxu0
      %3219 = vmatprep.mubr.bf16.mxu0 0
      %3220 = vmatmul.mubr.bf16.gmra.mrb[0].mxu0 %v2992
      %v3221 = vpop.f32.mrb[0].mxu0
      %v3222 = vadd.f32 0.0, %v3221
      %v3223 = vpop.f32.mrb[0].mxu0
      %v3224 = vpop.f32.mrb[0].mxu0
      %v3225 = vadd.f32 0.0, %v3224
      %v3226 = vpop.f32.mrb[0].mxu0
      %3227 = vmatprep.mubr.bf16.mxu0 0
      %3228 = vmatmul.mubr.bf16.gmra.mrb[0].mxu0 %v2996
      %v3229 = vpop.f32.mrb[0].mxu0
      %v3230 = vadd.f32 0.0, %v3229
      %v3231 = vpop.f32.mrb[0].mxu0
      %v3232 = vpop.f32.mrb[0].mxu0
      %v3233 = vadd.f32 0.0, %v3232
      %v3234 = vpop.f32.mrb[0].mxu0
      %3235 = vmatprep.mubr.bf16.mxu0 0
      %3236 = vmatmul.mubr.bf16.gmra.mrb[0].mxu0 %v3000
      %v3237 = vpop.f32.mrb[0].mxu0
      %v3238 = vadd.f32 0.0, %v3237
      %v3239 = vpop.f32.mrb[0].mxu0
      %v3240 = vpop.f32.mrb[0].mxu0
      %v3241 = vadd.f32 0.0, %v3240
      %v3242 = vpop.f32.mrb[0].mxu0
      %3243 = vdwg.mxu0
      %v3244 = vadd.f32 %v2872, %v3102
      %v3245 = vadd.f32 %v2873, %v3105
      %v3246 = vadd.f32 %v2874, %v3110
      %v3247 = vadd.f32 %v2875, %v3113
      %v3248 = vadd.f32 %v2876, %v3118
      %v3249 = vadd.f32 %v2877, %v3121
      %v3250 = vadd.f32 %v2878, %v3126
      %v3251 = vadd.f32 %v2879, %v3129
      %v3252 = vadd.f32 %v2880, %v3134
      %v3253 = vadd.f32 %v2881, %v3137
      %v3254 = vadd.f32 %v2882, %v3142
      %v3255 = vadd.f32 %v2883, %v3145
      %v3256 = vadd.f32 %v2884, %v3150
      %v3257 = vadd.f32 %v2885, %v3153
      %v3258 = vadd.f32 %v2886, %v3158
      %v3259 = vadd.f32 %v2887, %v3161
      %v3260 = vadd.f32 %v2888, %v3166
      %v3261 = vadd.f32 %v2889, %v3169
      %v3262 = vadd.f32 %v2890, %v3174
      %v3263 = vadd.f32 %v2891, %v3177
      %v3264 = vadd.f32 %v2892, %v3182
      %v3265 = vadd.f32 %v2893, %v3185
      %v3266 = vadd.f32 %v2894, %v3190
      %v3267 = vadd.f32 %v2895, %v3193
      %v3268 = vadd.f32 %v2896, %v3198
      %v3269 = vadd.f32 %v2897, %v3201
      %v3270 = vadd.f32 %v2898, %v3206
      %v3271 = vadd.f32 %v2899, %v3209
      %v3272 = vadd.f32 %v2900, %v3214
      %v3273 = vadd.f32 %v2901, %v3217
      %v3274 = vadd.f32 %v2902, %v3222
      %v3275 = vadd.f32 %v2903, %v3225
      %v3276 = vadd.f32 %v2904, %v3230
      %v3277 = vadd.f32 %v2905, %v3233
      %v3278 = vadd.f32 %v2906, %v3238
      %v3279 = vadd.f32 %v2907, %v3241
      %s3280 = scalar_lea.vmem %s4, 384
      %v3281 = vld [vmem:[%s3280] sm:$0xf]
      %v3282 = vld [vmem:[%s3280 + $0x4] sm:$0xf]
      %v3283 = vld [vmem:[%s3280 + $0x8] sm:$0xf]
      %v3284 = vld [vmem:[%s3280 + $0xc] sm:$0xf]
      %v3285 = vld [vmem:[%s3280 + $0x10] sm:$0xf]
      %v3286 = vld [vmem:[%s3280 + $0x14] sm:$0xf]
      %v3287 = vld [vmem:[%s3280 + $0x18] sm:$0xf]
      %v3288 = vld [vmem:[%s3280 + $0x1c] sm:$0xf]
      %v3289 = vld [vmem:[%s3280 + $0x20] sm:$0xf]
      %v3290 = vld [vmem:[%s3280 + $0x24] sm:$0xf]
      %v3291 = vld [vmem:[%s3280 + $0x28] sm:$0xf]
      %v3292 = vld [vmem:[%s3280 + $0x2c] sm:$0xf]
      %v3293 = vld [vmem:[%s3280 + $0x30] sm:$0xf]
      %v3294 = vld [vmem:[%s3280 + $0x34] sm:$0xf]
      %v3295 = vld [vmem:[%s3280 + $0x38] sm:$0xf]
      %v3296 = vld [vmem:[%s3280 + $0x3c] sm:$0xf]
      %v3297 = vshrl.u32 %v1107, 16
      %v3299 = vrot.slane %v3297, 5
      %v3300 = vshll.u32 %v1107, 16
      %v3302 = vrot.slane %v3300, 6
      %v3303 = vor.u32 %v3299, %v3302
      %v3304 = vsel %vm2925, %v2999, %v3303
      %v3322 = vunpack.c.l.b16 %v3281
      %v3323 = vunpack.c.l.b16 %v3282
      %v3324 = vunpack.c.l.b16 %v3283
      %v3325 = vunpack.c.l.b16 %v3284
      %v3326 = vunpack.c.l.b16 %v3285
      %v3327 = vunpack.c.l.b16 %v3286
      %v3328 = vunpack.c.l.b16 %v3287
      %v3329 = vunpack.c.l.b16 %v3288
      %v3330 = vunpack.c.l.b16 %v3289
      %v3331 = vunpack.c.l.b16 %v3290
      %v3332 = vunpack.c.l.b16 %v3291
      %v3333 = vunpack.c.l.b16 %v3292
      %v3334 = vunpack.c.l.b16 %v3293
      %v3335 = vunpack.c.l.b16 %v3294
      %v3336 = vunpack.c.l.b16 %v3295
      %v3337 = vunpack.c.l.b16 %v3296
      %v3338 = vpack.c.b16 %v3323, %v3322
      %v3339 = vpack.c.b16 %v3325, %v3324
      %v3340 = vpack.c.b16 %v3327, %v3326
      %v3341 = vpack.c.b16 %v3329, %v3328
      %v3342 = vpack.c.b16 %v3331, %v3330
      %v3343 = vpack.c.b16 %v3333, %v3332
      %v3344 = vpack.c.b16 %v3335, %v3334
      %v3345 = vpack.c.b16 %v3337, %v3336
      %3354 = vmatprep.subr.bf16.mxu0 0
      %3355 = vmatpush1.bf16.msra.mxu0 %v3338
      %3356 = vmatprep.subr.bf16.mxu0 0
      %3357 = vmatpush1.bf16.msra.mxu0 %v3339
      %3358 = vmatprep.subr.bf16.mxu0 0
      %3359 = vmatpush1.bf16.msra.mxu0 %v3340
      %3360 = vmatprep.subr.bf16.mxu0 0
      %3361 = vmatpush1.bf16.msra.mxu0 %v3341
      %3362 = vmatprep.subr.bf16.mxu0 0
      %3363 = vmatpush1.bf16.msra.mxu0 %v3342
      %3364 = vmatprep.subr.bf16.mxu0 0
      %3365 = vmatpush1.bf16.msra.mxu0 %v3343
      %3366 = vmatprep.subr.bf16.mxu0 0
      %3367 = vmatpush1.bf16.msra.mxu0 %v3344
      %3368 = vmatprep.subr.bf16.mxu0 0
      %3369 = vmatpush1.bf16.msra.mxu0 %v3345
      %3370 = vmatprep.subr.bf16.mxu0 0
      %3371 = vmatpush1.bf16.msra.mxu0 0
      %3372 = vmatprep.subr.bf16.mxu0 0
      %3373 = vmatpush1.bf16.msra.mxu0 0
      %3374 = vmatprep.subr.bf16.mxu0 0
      %3375 = vmatpush1.bf16.msra.mxu0 0
      %3376 = vmatprep.subr.bf16.mxu0 0
      %3377 = vmatpush1.bf16.msra.mxu0 0
      %3378 = vmatprep.subr.bf16.mxu0 0
      %3379 = vmatpush1.bf16.msra.mxu0 0
      %3380 = vmatprep.subr.bf16.mxu0 0
      %3381 = vmatpush1.bf16.msra.mxu0 0
      %3382 = vmatprep.subr.bf16.mxu0 0
      %3383 = vmatpush1.bf16.msra.mxu0 0
      %3384 = vmatprep.subr.bf16.mxu0 0
      %3385 = vmatpush1.bf16.msra.mxu0 0
      %3386 = vmatprep.mubr.bf16.mxu0 0
      %3387 = vmatmul.mubr.bf16.gmra.mrb[0].mxu0 %v2936
      %v3388 = vpop.f32.mrb[0].mxu0
      %v3389 = vadd.f32 0.0, %v3388
      %v3390 = vpop.f32.mrb[0].mxu0
      %v3391 = vpop.f32.mrb[0].mxu0
      %v3392 = vadd.f32 0.0, %v3391
      %v3393 = vpop.f32.mrb[0].mxu0
      %3394 = vmatprep.mubr.bf16.mxu0 0
      %3395 = vmatmul.mubr.bf16.gmra.mrb[0].mxu0 %v2940
      %v3396 = vpop.f32.mrb[0].mxu0
      %v3397 = vadd.f32 0.0, %v3396
      %v3398 = vpop.f32.mrb[0].mxu0
      %v3399 = vpop.f32.mrb[0].mxu0
      %v3400 = vadd.f32 0.0, %v3399
      %v3401 = vpop.f32.mrb[0].mxu0
      %3402 = vmatprep.mubr.bf16.mxu0 0
      %3403 = vmatmul.mubr.bf16.gmra.mrb[0].mxu0 %v2944
      %v3404 = vpop.f32.mrb[0].mxu0
      %v3405 = vadd.f32 0.0, %v3404
      %v3406 = vpop.f32.mrb[0].mxu0
      %v3407 = vpop.f32.mrb[0].mxu0
      %v3408 = vadd.f32 0.0, %v3407
      %v3409 = vpop.f32.mrb[0].mxu0
      %3410 = vmatprep.mubr.bf16.mxu0 0
      %3411 = vmatmul.mubr.bf16.gmra.mrb[0].mxu0 %v2948
      %v3412 = vpop.f32.mrb[0].mxu0
      %v3413 = vadd.f32 0.0, %v3412
      %v3414 = vpop.f32.mrb[0].mxu0
      %v3415 = vpop.f32.mrb[0].mxu0
      %v3416 = vadd.f32 0.0, %v3415
      %v3417 = vpop.f32.mrb[0].mxu0
      %3418 = vmatprep.mubr.bf16.mxu0 0
      %3419 = vmatmul.mubr.bf16.gmra.mrb[0].mxu0 %v2952
      %v3420 = vpop.f32.mrb[0].mxu0
      %v3421 = vadd.f32 0.0, %v3420
      %v3422 = vpop.f32.mrb[0].mxu0
      %v3423 = vpop.f32.mrb[0].mxu0
      %v3424 = vadd.f32 0.0, %v3423
      %v3425 = vpop.f32.mrb[0].mxu0
      %3426 = vmatprep.mubr.bf16.mxu0 0
      %3427 = vmatmul.mubr.bf16.gmra.mrb[0].mxu0 %v2956
      %v3428 = vpop.f32.mrb[0].mxu0
      %v3429 = vadd.f32 0.0, %v3428
      %v3430 = vpop.f32.mrb[0].mxu0
      %v3431 = vpop.f32.mrb[0].mxu0
      %v3432 = vadd.f32 0.0, %v3431
      %v3433 = vpop.f32.mrb[0].mxu0
      %3434 = vmatprep.mubr.bf16.mxu0 0
      %3435 = vmatmul.mubr.bf16.gmra.mrb[0].mxu0 %v2960
      %v3436 = vpop.f32.mrb[0].mxu0
      %v3437 = vadd.f32 0.0, %v3436
      %v3438 = vpop.f32.mrb[0].mxu0
      %v3439 = vpop.f32.mrb[0].mxu0
      %v3440 = vadd.f32 0.0, %v3439
      %v3441 = vpop.f32.mrb[0].mxu0
      %3442 = vmatprep.mubr.bf16.mxu0 0
      %3443 = vmatmul.mubr.bf16.gmra.mrb[0].mxu0 %v2964
      %v3444 = vpop.f32.mrb[0].mxu0
      %v3445 = vadd.f32 0.0, %v3444
      %v3446 = vpop.f32.mrb[0].mxu0
      %v3447 = vpop.f32.mrb[0].mxu0
      %v3448 = vadd.f32 0.0, %v3447
      %v3449 = vpop.f32.mrb[0].mxu0
      %3450 = vmatprep.mubr.bf16.mxu0 0
      %3451 = vmatmul.mubr.bf16.gmra.mrb[0].mxu0 %v2968
      %v3452 = vpop.f32.mrb[0].mxu0
      %v3453 = vadd.f32 0.0, %v3452
      %v3454 = vpop.f32.mrb[0].mxu0
      %v3455 = vpop.f32.mrb[0].mxu0
      %v3456 = vadd.f32 0.0, %v3455
      %v3457 = vpop.f32.mrb[0].mxu0
      %3458 = vmatprep.mubr.bf16.mxu0 0
      %3459 = vmatmul.mubr.bf16.gmra.mrb[0].mxu0 %v2972
      %v3460 = vpop.f32.mrb[0].mxu0
      %v3461 = vadd.f32 0.0, %v3460
      %v3462 = vpop.f32.mrb[0].mxu0
      %v3463 = vpop.f32.mrb[0].mxu0
      %v3464 = vadd.f32 0.0, %v3463
      %v3465 = vpop.f32.mrb[0].mxu0
      %3466 = vmatprep.mubr.bf16.mxu0 0
      %3467 = vmatmul.mubr.bf16.gmra.mrb[0].mxu0 %v2976
      %v3468 = vpop.f32.mrb[0].mxu0
      %v3469 = vadd.f32 0.0, %v3468
      %v3470 = vpop.f32.mrb[0].mxu0
      %v3471 = vpop.f32.mrb[0].mxu0
      %v3472 = vadd.f32 0.0, %v3471
      %v3473 = vpop.f32.mrb[0].mxu0
      %3474 = vmatprep.mubr.bf16.mxu0 0
      %3475 = vmatmul.mubr.bf16.gmra.mrb[0].mxu0 %v2980
      %v3476 = vpop.f32.mrb[0].mxu0
      %v3477 = vadd.f32 0.0, %v3476
      %v3478 = vpop.f32.mrb[0].mxu0
      %v3479 = vpop.f32.mrb[0].mxu0
      %v3480 = vadd.f32 0.0, %v3479
      %v3481 = vpop.f32.mrb[0].mxu0
      %3482 = vmatprep.mubr.bf16.mxu0 0
      %3483 = vmatmul.mubr.bf16.gmra.mrb[0].mxu0 %v2984
      %v3484 = vpop.f32.mrb[0].mxu0
      %v3485 = vadd.f32 0.0, %v3484
      %v3486 = vpop.f32.mrb[0].mxu0
      %v3487 = vpop.f32.mrb[0].mxu0
      %v3488 = vadd.f32 0.0, %v3487
      %v3489 = vpop.f32.mrb[0].mxu0
      %3490 = vmatprep.mubr.bf16.mxu0 0
      %3491 = vmatmul.mubr.bf16.gmra.mrb[0].mxu0 %v2988
      %v3492 = vpop.f32.mrb[0].mxu0
      %v3493 = vadd.f32 0.0, %v3492
      %v3494 = vpop.f32.mrb[0].mxu0
      %v3495 = vpop.f32.mrb[0].mxu0
      %v3496 = vadd.f32 0.0, %v3495
      %v3497 = vpop.f32.mrb[0].mxu0
      %3498 = vmatprep.mubr.bf16.mxu0 0
      %3499 = vmatmul.mubr.bf16.gmra.mrb[0].mxu0 %v2992
      %v3500 = vpop.f32.mrb[0].mxu0
      %v3501 = vadd.f32 0.0, %v3500
      %v3502 = vpop.f32.mrb[0].mxu0
      %v3503 = vpop.f32.mrb[0].mxu0
      %v3504 = vadd.f32 0.0, %v3503
      %v3505 = vpop.f32.mrb[0].mxu0
      %3506 = vmatprep.mubr.bf16.mxu0 0
      %3507 = vmatmul.mubr.bf16.gmra.mrb[0].mxu0 %v2996
      %v3508 = vpop.f32.mrb[0].mxu0
      %v3509 = vadd.f32 0.0, %v3508
      %v3510 = vpop.f32.mrb[0].mxu0
      %v3511 = vpop.f32.mrb[0].mxu0
      %v3512 = vadd.f32 0.0, %v3511
      %v3513 = vpop.f32.mrb[0].mxu0
      %3514 = vmatprep.mubr.bf16.mxu0 0
      %3515 = vmatmul.mubr.bf16.gmra.mrb[0].mxu0 %v3000
      %v3516 = vpop.f32.mrb[0].mxu0
      %v3517 = vadd.f32 0.0, %v3516
      %v3518 = vpop.f32.mrb[0].mxu0
      %v3519 = vpop.f32.mrb[0].mxu0
      %v3520 = vadd.f32 0.0, %v3519
      %v3521 = vpop.f32.mrb[0].mxu0
      %3522 = vmatprep.mubr.bf16.mxu0 0
      %3523 = vmatmul.mubr.bf16.gmra.mrb[0].mxu0 %v3304
      %v3524 = vpop.f32.mrb[0].mxu0
      %v3525 = vadd.f32 0.0, %v3524
      %v3526 = vpop.f32.mrb[0].mxu0
      %v3527 = vpop.f32.mrb[0].mxu0
      %v3528 = vadd.f32 0.0, %v3527
      %v3529 = vpop.f32.mrb[0].mxu0
      %3530 = vdwg.mxu0
      %v3531 = vadd.f32 %v3244, %v3389
      %v3532 = vadd.f32 %v3245, %v3392
      %v3533 = vadd.f32 %v3246, %v3397
      %v3534 = vadd.f32 %v3247, %v3400
      %v3535 = vadd.f32 %v3248, %v3405
      %v3536 = vadd.f32 %v3249, %v3408
      %v3537 = vadd.f32 %v3250, %v3413
      %v3538 = vadd.f32 %v3251, %v3416
      %v3539 = vadd.f32 %v3252, %v3421
      %v3540 = vadd.f32 %v3253, %v3424
      %v3541 = vadd.f32 %v3254, %v3429
      %v3542 = vadd.f32 %v3255, %v3432
      %v3543 = vadd.f32 %v3256, %v3437
      %v3544 = vadd.f32 %v3257, %v3440
      %v3545 = vadd.f32 %v3258, %v3445
      %v3546 = vadd.f32 %v3259, %v3448
      %v3547 = vadd.f32 %v3260, %v3453
      %v3548 = vadd.f32 %v3261, %v3456
      %v3549 = vadd.f32 %v3262, %v3461
      %v3550 = vadd.f32 %v3263, %v3464
      %v3551 = vadd.f32 %v3264, %v3469
      %v3552 = vadd.f32 %v3265, %v3472
      %v3553 = vadd.f32 %v3266, %v3477
      %v3554 = vadd.f32 %v3267, %v3480
      %v3555 = vadd.f32 %v3268, %v3485
      %v3556 = vadd.f32 %v3269, %v3488
      %v3557 = vadd.f32 %v3270, %v3493
      %v3558 = vadd.f32 %v3271, %v3496
      %v3559 = vadd.f32 %v3272, %v3501
      %v3560 = vadd.f32 %v3273, %v3504
      %v3561 = vadd.f32 %v3274, %v3509
      %v3562 = vadd.f32 %v3275, %v3512
      %v3563 = vadd.f32 %v3276, %v3517
      %v3564 = vadd.f32 %v3277, %v3520
      %v3565 = vadd.f32 %v3278, %v3525
      %v3566 = vadd.f32 %v3279, %v3528
      %s3567 = scalar_lea.vmem %s4, 448
      %v3568 = vld [vmem:[%s3567] sm:$0xf]
      %v3569 = vld [vmem:[%s3567 + $0x4] sm:$0xf]
      %v3570 = vld [vmem:[%s3567 + $0x8] sm:$0xf]
      %v3571 = vld [vmem:[%s3567 + $0xc] sm:$0xf]
      %v3572 = vld [vmem:[%s3567 + $0x10] sm:$0xf]
      %v3573 = vld [vmem:[%s3567 + $0x14] sm:$0xf]
      %v3574 = vld [vmem:[%s3567 + $0x18] sm:$0xf]
      %v3575 = vld [vmem:[%s3567 + $0x1c] sm:$0xf]
      %v3576 = vld [vmem:[%s3567 + $0x20] sm:$0xf]
      %v3577 = vld [vmem:[%s3567 + $0x24] sm:$0xf]
      %v3578 = vld [vmem:[%s3567 + $0x28] sm:$0xf]
      %v3579 = vld [vmem:[%s3567 + $0x2c] sm:$0xf]
      %v3580 = vld [vmem:[%s3567 + $0x30] sm:$0xf]
      %v3581 = vld [vmem:[%s3567 + $0x34] sm:$0xf]
      %v3582 = vld [vmem:[%s3567 + $0x38] sm:$0xf]
      %v3583 = vld [vmem:[%s3567 + $0x3c] sm:$0xf]
      %vm3585 = vcmask 1041408
      %v3586 = vrot.slane %v1064, 6
      %v3587 = vrot.slane %v1066, 6
      %v3588 = vsel %vm3585, %v3586, %v3587
      %v3589 = vrot.slane %v1068, 6
      %v3590 = vsel %vm3585, %v3587, %v3589
      %v3591 = vrot.slane %v1070, 6
      %v3592 = vsel %vm3585, %v3589, %v3591
      %v3593 = vrot.slane %v1072, 6
      %v3594 = vsel %vm3585, %v3591, %v3593
      %v3595 = vrot.slane %v1074, 6
      %v3596 = vsel %vm3585, %v3593, %v3595
      %v3597 = vrot.slane %v1076, 6
      %v3598 = vsel %vm3585, %v3595, %v3597
      %v3599 = vrot.slane %v1078, 6
      %v3600 = vsel %vm3585, %v3597, %v3599
      %v3601 = vrot.slane %v1080, 6
      %v3602 = vsel %vm3585, %v3599, %v3601
      %v3603 = vrot.slane %v1082, 6
      %v3604 = vsel %vm3585, %v3601, %v3603
      %v3605 = vrot.slane %v1084, 6
      %v3606 = vsel %vm3585, %v3603, %v3605
      %v3607 = vrot.slane %v1086, 6
      %v3608 = vsel %vm3585, %v3605, %v3607
      %v3609 = vrot.slane %v1088, 6
      %v3610 = vsel %vm3585, %v3607, %v3609
      %v3611 = vrot.slane %v1090, 6
      %v3612 = vsel %vm3585, %v3609, %v3611
      %v3613 = vrot.slane %v1092, 6
      %v3614 = vsel %vm3585, %v3611, %v3613
      %v3615 = vrot.slane %v1094, 6
      %v3616 = vsel %vm3585, %v3613, %v3615
      %v3617 = vrot.slane %v1096, 6
      %v3618 = vsel %vm3585, %v3615, %v3617
      %v3619 = vrot.slane %v1098, 6
      %v3620 = vsel %vm3585, %v3617, %v3619
      %v3621 = vrot.slane %v1107, 6
      %v3622 = vsel %vm3585, %v3619, %v3621
      %v3657 = vunpack.c.l.b16 %v3568
      %v3658 = vunpack.c.l.b16 %v3569
      %v3659 = vunpack.c.l.b16 %v3570
      %v3660 = vunpack.c.l.b16 %v3571
      %v3661 = vunpack.c.l.b16 %v3572
      %v3662 = vunpack.c.l.b16 %v3573
      %v3663 = vunpack.c.l.b16 %v3574
      %v3664 = vunpack.c.l.b16 %v3575
      %v3665 = vunpack.c.l.b16 %v3576
      %v3666 = vunpack.c.l.b16 %v3577
      %v3667 = vunpack.c.l.b16 %v3578
      %v3668 = vunpack.c.l.b16 %v3579
      %v3669 = vunpack.c.l.b16 %v3580
      %v3670 = vunpack.c.l.b16 %v3581
      %v3671 = vunpack.c.l.b16 %v3582
      %v3672 = vunpack.c.l.b16 %v3583
      %v3673 = vpack.c.b16 %v3658, %v3657
      %v3674 = vpack.c.b16 %v3660, %v3659
      %v3675 = vpack.c.b16 %v3662, %v3661
      %v3676 = vpack.c.b16 %v3664, %v3663
      %v3677 = vpack.c.b16 %v3666, %v3665
      %v3678 = vpack.c.b16 %v3668, %v3667
      %v3679 = vpack.c.b16 %v3670, %v3669
      %v3680 = vpack.c.b16 %v3672, %v3671
      %3689 = vmatprep.subr.bf16.mxu0 0
      %3690 = vmatpush1.bf16.msra.mxu0 %v3673
      %3691 = vmatprep.subr.bf16.mxu0 0
      %3692 = vmatpush1.bf16.msra.mxu0 %v3674
      %3693 = vmatprep.subr.bf16.mxu0 0
      %3694 = vmatpush1.bf16.msra.mxu0 %v3675
      %3695 = vmatprep.subr.bf16.mxu0 0
      %3696 = vmatpush1.bf16.msra.mxu0 %v3676
      %3697 = vmatprep.subr.bf16.mxu0 0
      %3698 = vmatpush1.bf16.msra.mxu0 %v3677
      %3699 = vmatprep.subr.bf16.mxu0 0
      %3700 = vmatpush1.bf16.msra.mxu0 %v3678
      %3701 = vmatprep.subr.bf16.mxu0 0
      %3702 = vmatpush1.bf16.msra.mxu0 %v3679
      %3703 = vmatprep.subr.bf16.mxu0 0
      %3704 = vmatpush1.bf16.msra.mxu0 %v3680
      %3705 = vmatprep.subr.bf16.mxu0 0
      %3706 = vmatpush1.bf16.msra.mxu0 0
      %3707 = vmatprep.subr.bf16.mxu0 0
      %3708 = vmatpush1.bf16.msra.mxu0 0
      %3709 = vmatprep.subr.bf16.mxu0 0
      %3710 = vmatpush1.bf16.msra.mxu0 0
      %3711 = vmatprep.subr.bf16.mxu0 0
      %3712 = vmatpush1.bf16.msra.mxu0 0
      %3713 = vmatprep.subr.bf16.mxu0 0
      %3714 = vmatpush1.bf16.msra.mxu0 0
      %3715 = vmatprep.subr.bf16.mxu0 0
      %3716 = vmatpush1.bf16.msra.mxu0 0
      %3717 = vmatprep.subr.bf16.mxu0 0
      %3718 = vmatpush1.bf16.msra.mxu0 0
      %3719 = vmatprep.subr.bf16.mxu0 0
      %3720 = vmatpush1.bf16.msra.mxu0 0
      %3721 = vmatprep.mubr.bf16.mxu0 0
      %3722 = vmatmul.mubr.bf16.gmra.mrb[0].mxu0 %v3588
      %v3723 = vpop.f32.mrb[0].mxu0
      %v3724 = vadd.f32 0.0, %v3723
      %v3725 = vpop.f32.mrb[0].mxu0
      %v3726 = vpop.f32.mrb[0].mxu0
      %v3727 = vadd.f32 0.0, %v3726
      %v3728 = vpop.f32.mrb[0].mxu0
      %3729 = vmatprep.mubr.bf16.mxu0 0
      %3730 = vmatmul.mubr.bf16.gmra.mrb[0].mxu0 %v3590
      %v3731 = vpop.f32.mrb[0].mxu0
      %v3732 = vadd.f32 0.0, %v3731
      %v3733 = vpop.f32.mrb[0].mxu0
      %v3734 = vpop.f32.mrb[0].mxu0
      %v3735 = vadd.f32 0.0, %v3734
      %v3736 = vpop.f32.mrb[0].mxu0
      %3737 = vmatprep.mubr.bf16.mxu0 0
      %3738 = vmatmul.mubr.bf16.gmra.mrb[0].mxu0 %v3592
      %v3739 = vpop.f32.mrb[0].mxu0
      %v3740 = vadd.f32 0.0, %v3739
      %v3741 = vpop.f32.mrb[0].mxu0
      %v3742 = vpop.f32.mrb[0].mxu0
      %v3743 = vadd.f32 0.0, %v3742
      %v3744 = vpop.f32.mrb[0].mxu0
      %3745 = vmatprep.mubr.bf16.mxu0 0
      %3746 = vmatmul.mubr.bf16.gmra.mrb[0].mxu0 %v3594
      %v3747 = vpop.f32.mrb[0].mxu0
      %v3748 = vadd.f32 0.0, %v3747
      %v3749 = vpop.f32.mrb[0].mxu0
      %v3750 = vpop.f32.mrb[0].mxu0
      %v3751 = vadd.f32 0.0, %v3750
      %v3752 = vpop.f32.mrb[0].mxu0
      %3753 = vmatprep.mubr.bf16.mxu0 0
      %3754 = vmatmul.mubr.bf16.gmra.mrb[0].mxu0 %v3596
      %v3755 = vpop.f32.mrb[0].mxu0
      %v3756 = vadd.f32 0.0, %v3755
      %v3757 = vpop.f32.mrb[0].mxu0
      %v3758 = vpop.f32.mrb[0].mxu0
      %v3759 = vadd.f32 0.0, %v3758
      %v3760 = vpop.f32.mrb[0].mxu0
      %3761 = vmatprep.mubr.bf16.mxu0 0
      %3762 = vmatmul.mubr.bf16.gmra.mrb[0].mxu0 %v3598
      %v3763 = vpop.f32.mrb[0].mxu0
      %v3764 = vadd.f32 0.0, %v3763
      %v3765 = vpop.f32.mrb[0].mxu0
      %v3766 = vpop.f32.mrb[0].mxu0
      %v3767 = vadd.f32 0.0, %v3766
      %v3768 = vpop.f32.mrb[0].mxu0
      %3769 = vmatprep.mubr.bf16.mxu0 0
      %3770 = vmatmul.mubr.bf16.gmra.mrb[0].mxu0 %v3600
      %v3771 = vpop.f32.mrb[0].mxu0
      %v3772 = vadd.f32 0.0, %v3771
      %v3773 = vpop.f32.mrb[0].mxu0
      %v3774 = vpop.f32.mrb[0].mxu0
      %v3775 = vadd.f32 0.0, %v3774
      %v3776 = vpop.f32.mrb[0].mxu0
      %3777 = vmatprep.mubr.bf16.mxu0 0
      %3778 = vmatmul.mubr.bf16.gmra.mrb[0].mxu0 %v3602
      %v3779 = vpop.f32.mrb[0].mxu0
      %v3780 = vadd.f32 0.0, %v3779
      %v3781 = vpop.f32.mrb[0].mxu0
      %v3782 = vpop.f32.mrb[0].mxu0
      %v3783 = vadd.f32 0.0, %v3782
      %v3784 = vpop.f32.mrb[0].mxu0
      %3785 = vmatprep.mubr.bf16.mxu0 0
      %3786 = vmatmul.mubr.bf16.gmra.mrb[0].mxu0 %v3604
      %v3787 = vpop.f32.mrb[0].mxu0
      %v3788 = vadd.f32 0.0, %v3787
      %v3789 = vpop.f32.mrb[0].mxu0
      %v3790 = vpop.f32.mrb[0].mxu0
      %v3791 = vadd.f32 0.0, %v3790
      %v3792 = vpop.f32.mrb[0].mxu0
      %3793 = vmatprep.mubr.bf16.mxu0 0
      %3794 = vmatmul.mubr.bf16.gmra.mrb[0].mxu0 %v3606
      %v3795 = vpop.f32.mrb[0].mxu0
      %v3796 = vadd.f32 0.0, %v3795
      %v3797 = vpop.f32.mrb[0].mxu0
      %v3798 = vpop.f32.mrb[0].mxu0
      %v3799 = vadd.f32 0.0, %v3798
      %v3800 = vpop.f32.mrb[0].mxu0
      %3801 = vmatprep.mubr.bf16.mxu0 0
      %3802 = vmatmul.mubr.bf16.gmra.mrb[0].mxu0 %v3608
      %v3803 = vpop.f32.mrb[0].mxu0
      %v3804 = vadd.f32 0.0, %v3803
      %v3805 = vpop.f32.mrb[0].mxu0
      %v3806 = vpop.f32.mrb[0].mxu0
      %v3807 = vadd.f32 0.0, %v3806
      %v3808 = vpop.f32.mrb[0].mxu0
      %3809 = vmatprep.mubr.bf16.mxu0 0
      %3810 = vmatmul.mubr.bf16.gmra.mrb[0].mxu0 %v3610
      %v3811 = vpop.f32.mrb[0].mxu0
      %v3812 = vadd.f32 0.0, %v3811
      %v3813 = vpop.f32.mrb[0].mxu0
      %v3814 = vpop.f32.mrb[0].mxu0
      %v3815 = vadd.f32 0.0, %v3814
      %v3816 = vpop.f32.mrb[0].mxu0
      %3817 = vmatprep.mubr.bf16.mxu0 0
      %3818 = vmatmul.mubr.bf16.gmra.mrb[0].mxu0 %v3612
      %v3819 = vpop.f32.mrb[0].mxu0
      %v3820 = vadd.f32 0.0, %v3819
      %v3821 = vpop.f32.mrb[0].mxu0
      %v3822 = vpop.f32.mrb[0].mxu0
      %v3823 = vadd.f32 0.0, %v3822
      %v3824 = vpop.f32.mrb[0].mxu0
      %3825 = vmatprep.mubr.bf16.mxu0 0
      %3826 = vmatmul.mubr.bf16.gmra.mrb[0].mxu0 %v3614
      %v3827 = vpop.f32.mrb[0].mxu0
      %v3828 = vadd.f32 0.0, %v3827
      %v3829 = vpop.f32.mrb[0].mxu0
      %v3830 = vpop.f32.mrb[0].mxu0
      %v3831 = vadd.f32 0.0, %v3830
      %v3832 = vpop.f32.mrb[0].mxu0
      %3833 = vmatprep.mubr.bf16.mxu0 0
      %3834 = vmatmul.mubr.bf16.gmra.mrb[0].mxu0 %v3616
      %v3835 = vpop.f32.mrb[0].mxu0
      %v3836 = vadd.f32 0.0, %v3835
      %v3837 = vpop.f32.mrb[0].mxu0
      %v3838 = vpop.f32.mrb[0].mxu0
      %v3839 = vadd.f32 0.0, %v3838
      %v3840 = vpop.f32.mrb[0].mxu0
      %3841 = vmatprep.mubr.bf16.mxu0 0
      %3842 = vmatmul.mubr.bf16.gmra.mrb[0].mxu0 %v3618
      %v3843 = vpop.f32.mrb[0].mxu0
      %v3844 = vadd.f32 0.0, %v3843
      %v3845 = vpop.f32.mrb[0].mxu0
      %v3846 = vpop.f32.mrb[0].mxu0
      %v3847 = vadd.f32 0.0, %v3846
      %v3848 = vpop.f32.mrb[0].mxu0
      %3849 = vmatprep.mubr.bf16.mxu0 0
      %3850 = vmatmul.mubr.bf16.gmra.mrb[0].mxu0 %v3620
      %v3851 = vpop.f32.mrb[0].mxu0
      %v3852 = vadd.f32 0.0, %v3851
      %v3853 = vpop.f32.mrb[0].mxu0
      %v3854 = vpop.f32.mrb[0].mxu0
      %v3855 = vadd.f32 0.0, %v3854
      %v3856 = vpop.f32.mrb[0].mxu0
      %3857 = vmatprep.mubr.bf16.mxu0 0
      %3858 = vmatmul.mubr.bf16.gmra.mrb[0].mxu0 %v3622
      %v3859 = vpop.f32.mrb[0].mxu0
      %v3860 = vadd.f32 0.0, %v3859
      %v3861 = vpop.f32.mrb[0].mxu0
      %v3862 = vpop.f32.mrb[0].mxu0
      %v3863 = vadd.f32 0.0, %v3862
      %v3864 = vpop.f32.mrb[0].mxu0
      %3865 = vdwg.mxu0
      %v3866 = vadd.f32 %v3531, %v3724
      %v3867 = vadd.f32 %v3532, %v3727
      %v3868 = vadd.f32 %v3533, %v3732
      %v3869 = vadd.f32 %v3534, %v3735
      %v3870 = vadd.f32 %v3535, %v3740
      %v3871 = vadd.f32 %v3536, %v3743
      %v3872 = vadd.f32 %v3537, %v3748
      %v3873 = vadd.f32 %v3538, %v3751
      %v3874 = vadd.f32 %v3539, %v3756
      %v3875 = vadd.f32 %v3540, %v3759
      %v3876 = vadd.f32 %v3541, %v3764
      %v3877 = vadd.f32 %v3542, %v3767
      %v3878 = vadd.f32 %v3543, %v3772
      %v3879 = vadd.f32 %v3544, %v3775
      %v3880 = vadd.f32 %v3545, %v3780
      %v3881 = vadd.f32 %v3546, %v3783
      %v3882 = vadd.f32 %v3547, %v3788
      %v3883 = vadd.f32 %v3548, %v3791
      %v3884 = vadd.f32 %v3549, %v3796
      %v3885 = vadd.f32 %v3550, %v3799
      %v3886 = vadd.f32 %v3551, %v3804
      %v3887 = vadd.f32 %v3552, %v3807
      %v3888 = vadd.f32 %v3553, %v3812
      %v3889 = vadd.f32 %v3554, %v3815
      %v3890 = vadd.f32 %v3555, %v3820
      %v3891 = vadd.f32 %v3556, %v3823
      %v3892 = vadd.f32 %v3557, %v3828
      %v3893 = vadd.f32 %v3558, %v3831
      %v3894 = vadd.f32 %v3559, %v3836
      %v3895 = vadd.f32 %v3560, %v3839
      %v3896 = vadd.f32 %v3561, %v3844
      %v3897 = vadd.f32 %v3562, %v3847
      %v3898 = vadd.f32 %v3563, %v3852
      %v3899 = vadd.f32 %v3564, %v3855
      %v3900 = vadd.f32 %v3565, %v3860
      %v3901 = vadd.f32 %v3566, %v3863
      %s3902 = scalar_lea.vmem %s4, 512
      %v3903 = vld [vmem:[%s3902] sm:$0xf]
      %v3904 = vld [vmem:[%s3902 + $0x4] sm:$0xf]
      %v3905 = vld [vmem:[%s3902 + $0x8] sm:$0xf]
      %v3906 = vld [vmem:[%s3902 + $0xc] sm:$0xf]
      %v3907 = vld [vmem:[%s3902 + $0x10] sm:$0xf]
      %v3908 = vld [vmem:[%s3902 + $0x14] sm:$0xf]
      %v3909 = vld [vmem:[%s3902 + $0x18] sm:$0xf]
      %v3910 = vld [vmem:[%s3902 + $0x1c] sm:$0xf]
      %v3911 = vld [vmem:[%s3902 + $0x20] sm:$0xf]
      %v3912 = vld [vmem:[%s3902 + $0x24] sm:$0xf]
      %v3913 = vld [vmem:[%s3902 + $0x28] sm:$0xf]
      %v3914 = vld [vmem:[%s3902 + $0x2c] sm:$0xf]
      %v3915 = vld [vmem:[%s3902 + $0x30] sm:$0xf]
      %v3916 = vld [vmem:[%s3902 + $0x34] sm:$0xf]
      %v3917 = vld [vmem:[%s3902 + $0x38] sm:$0xf]
      %v3918 = vld [vmem:[%s3902 + $0x3c] sm:$0xf]
      %vm3919 = vsmask.f32 1280
      %v3920 = vrot.slane %v1149, 6
      %v3921 = vrot.slane %v1152, 7
      %v3922 = vor.u32 %v3920, %v3921
      %v3923 = vrot.slane %v1158, 6
      %v3924 = vrot.slane %v1161, 7
      %v3925 = vor.u32 %v3923, %v3924
      %v3926 = vsel %vm3919, %v3922, %v3925
      %v3927 = vrot.slane %v1167, 6
      %v3928 = vrot.slane %v1170, 7
      %v3929 = vor.u32 %v3927, %v3928
      %v3930 = vsel %vm3919, %v3925, %v3929
      %v3931 = vrot.slane %v1176, 6
      %v3932 = vrot.slane %v1179, 7
      %v3933 = vor.u32 %v3931, %v3932
      %v3934 = vsel %vm3919, %v3929, %v3933
      %v3935 = vrot.slane %v1185, 6
      %v3936 = vrot.slane %v1188, 7
      %v3937 = vor.u32 %v3935, %v3936
      %v3938 = vsel %vm3919, %v3933, %v3937
      %v3939 = vrot.slane %v1194, 6
      %v3940 = vrot.slane %v1197, 7
      %v3941 = vor.u32 %v3939, %v3940
      %v3942 = vsel %vm3919, %v3937, %v3941
      %v3943 = vrot.slane %v1203, 6
      %v3944 = vrot.slane %v1206, 7
      %v3945 = vor.u32 %v3943, %v3944
      %v3946 = vsel %vm3919, %v3941, %v3945
      %v3947 = vrot.slane %v1212, 6
      %v3948 = vrot.slane %v1215, 7
      %v3949 = vor.u32 %v3947, %v3948
      %v3950 = vsel %vm3919, %v3945, %v3949
      %v3951 = vrot.slane %v1221, 6
      %v3952 = vrot.slane %v1224, 7
      %v3953 = vor.u32 %v3951, %v3952
      %v3954 = vsel %vm3919, %v3949, %v3953
      %v3955 = vrot.slane %v1230, 6
      %v3956 = vrot.slane %v1233, 7
      %v3957 = vor.u32 %v3955, %v3956
      %v3958 = vsel %vm3919, %v3953, %v3957
      %v3959 = vrot.slane %v1239, 6
      %v3960 = vrot.slane %v1242, 7
      %v3961 = vor.u32 %v3959, %v3960
      %v3962 = vsel %vm3919, %v3957, %v3961
      %v3963 = vrot.slane %v1248, 6
      %v3964 = vrot.slane %v1251, 7
      %v3965 = vor.u32 %v3963, %v3964
      %v3966 = vsel %vm3919, %v3961, %v3965
      %v3967 = vrot.slane %v1257, 6
      %v3968 = vrot.slane %v1260, 7
      %v3969 = vor.u32 %v3967, %v3968
      %v3970 = vsel %vm3919, %v3965, %v3969
      %v3971 = vrot.slane %v1266, 6
      %v3972 = vrot.slane %v1269, 7
      %v3973 = vor.u32 %v3971, %v3972
      %v3974 = vsel %vm3919, %v3969, %v3973
      %v3975 = vrot.slane %v1275, 6
      %v3976 = vrot.slane %v1278, 7
      %v3977 = vor.u32 %v3975, %v3976
      %v3978 = vsel %vm3919, %v3973, %v3977
      %v3979 = vrot.slane %v1284, 6
      %v3980 = vrot.slane %v1287, 7
      %v3981 = vor.u32 %v3979, %v3980
      %v3982 = vsel %vm3919, %v3977, %v3981
      %v3983 = vrot.slane %v1293, 6
      %v3984 = vrot.slane %v1296, 7
      %v3985 = vor.u32 %v3983, %v3984
      %v3986 = vsel %vm3919, %v3981, %v3985
      %v3987 = vrot.slane %v2304, 6
      %v3988 = vrot.slane %v2307, 7
      %v3989 = vor.u32 %v3987, %v3988
      %v3990 = vsel %vm3919, %v3985, %v3989
      %v3991 = vrot.slane %v3297, 6
      %v3992 = vrot.slane %v3300, 7
      %v3993 = vor.u32 %v3991, %v3992
      %v3994 = vsel %vm3919, %v3989, %v3993
      %v4029 = vunpack.c.l.b16 %v3903
      %v4030 = vunpack.c.l.b16 %v3904
      %v4031 = vunpack.c.l.b16 %v3905
      %v4032 = vunpack.c.l.b16 %v3906
      %v4033 = vunpack.c.l.b16 %v3907
      %v4034 = vunpack.c.l.b16 %v3908
      %v4035 = vunpack.c.l.b16 %v3909
      %v4036 = vunpack.c.l.b16 %v3910
      %v4037 = vunpack.c.l.b16 %v3911
      %v4038 = vunpack.c.l.b16 %v3912
      %v4039 = vunpack.c.l.b16 %v3913
      %v4040 = vunpack.c.l.b16 %v3914
      %v4041 = vunpack.c.l.b16 %v3915
      %v4042 = vunpack.c.l.b16 %v3916
      %v4043 = vunpack.c.l.b16 %v3917
      %v4044 = vunpack.c.l.b16 %v3918
      %v4045 = vpack.c.b16 %v4030, %v4029
      %v4046 = vpack.c.b16 %v4032, %v4031
      %v4047 = vpack.c.b16 %v4034, %v4033
      %v4048 = vpack.c.b16 %v4036, %v4035
      %v4049 = vpack.c.b16 %v4038, %v4037
      %v4050 = vpack.c.b16 %v4040, %v4039
      %v4051 = vpack.c.b16 %v4042, %v4041
      %v4052 = vpack.c.b16 %v4044, %v4043
      %4061 = vmatprep.subr.bf16.mxu0 0
      %4062 = vmatpush1.bf16.msra.mxu0 %v4045
      %4063 = vmatprep.subr.bf16.mxu0 0
      %4064 = vmatpush1.bf16.msra.mxu0 %v4046
      %4065 = vmatprep.subr.bf16.mxu0 0
      %4066 = vmatpush1.bf16.msra.mxu0 %v4047
      %4067 = vmatprep.subr.bf16.mxu0 0
      %4068 = vmatpush1.bf16.msra.mxu0 %v4048
      %4069 = vmatprep.subr.bf16.mxu0 0
      %4070 = vmatpush1.bf16.msra.mxu0 %v4049
      %4071 = vmatprep.subr.bf16.mxu0 0
      %4072 = vmatpush1.bf16.msra.mxu0 %v4050
      %4073 = vmatprep.subr.bf16.mxu0 0
      %4074 = vmatpush1.bf16.msra.mxu0 %v4051
      %4075 = vmatprep.subr.bf16.mxu0 0
      %4076 = vmatpush1.bf16.msra.mxu0 %v4052
      %4077 = vmatprep.subr.bf16.mxu0 0
      %4078 = vmatpush1.bf16.msra.mxu0 0
      %4079 = vmatprep.subr.bf16.mxu0 0
      %4080 = vmatpush1.bf16.msra.mxu0 0
      %4081 = vmatprep.subr.bf16.mxu0 0
      %4082 = vmatpush1.bf16.msra.mxu0 0
      %4083 = vmatprep.subr.bf16.mxu0 0
      %4084 = vmatpush1.bf16.msra.mxu0 0
      %4085 = vmatprep.subr.bf16.mxu0 0
      %4086 = vmatpush1.bf16.msra.mxu0 0
      %4087 = vmatprep.subr.bf16.mxu0 0
      %4088 = vmatpush1.bf16.msra.mxu0 0
      %4089 = vmatprep.subr.bf16.mxu0 0
      %4090 = vmatpush1.bf16.msra.mxu0 0
      %4091 = vmatprep.subr.bf16.mxu0 0
      %4092 = vmatpush1.bf16.msra.mxu0 0
      %4093 = vmatprep.mubr.bf16.mxu0 0
      %4094 = vmatmul.mubr.bf16.gmra.mrb[0].mxu0 %v3926
      %v4095 = vpop.f32.mrb[0].mxu0
      %v4096 = vadd.f32 0.0, %v4095
      %v4097 = vpop.f32.mrb[0].mxu0
      %v4098 = vpop.f32.mrb[0].mxu0
      %v4099 = vadd.f32 0.0, %v4098
      %v4100 = vpop.f32.mrb[0].mxu0
      %4101 = vmatprep.mubr.bf16.mxu0 0
      %4102 = vmatmul.mubr.bf16.gmra.mrb[0].mxu0 %v3930
      %v4103 = vpop.f32.mrb[0].mxu0
      %v4104 = vadd.f32 0.0, %v4103
      %v4105 = vpop.f32.mrb[0].mxu0
      %v4106 = vpop.f32.mrb[0].mxu0
      %v4107 = vadd.f32 0.0, %v4106
      %v4108 = vpop.f32.mrb[0].mxu0
      %4109 = vmatprep.mubr.bf16.mxu0 0
      %4110 = vmatmul.mubr.bf16.gmra.mrb[0].mxu0 %v3934
      %v4111 = vpop.f32.mrb[0].mxu0
      %v4112 = vadd.f32 0.0, %v4111
      %v4113 = vpop.f32.mrb[0].mxu0
      %v4114 = vpop.f32.mrb[0].mxu0
      %v4115 = vadd.f32 0.0, %v4114
      %v4116 = vpop.f32.mrb[0].mxu0
      %4117 = vmatprep.mubr.bf16.mxu0 0
      %4118 = vmatmul.mubr.bf16.gmra.mrb[0].mxu0 %v3938
      %v4119 = vpop.f32.mrb[0].mxu0
      %v4120 = vadd.f32 0.0, %v4119
      %v4121 = vpop.f32.mrb[0].mxu0
      %v4122 = vpop.f32.mrb[0].mxu0
      %v4123 = vadd.f32 0.0, %v4122
      %v4124 = vpop.f32.mrb[0].mxu0
      %4125 = vmatprep.mubr.bf16.mxu0 0
      %4126 = vmatmul.mubr.bf16.gmra.mrb[0].mxu0 %v3942
      %v4127 = vpop.f32.mrb[0].mxu0
      %v4128 = vadd.f32 0.0, %v4127
      %v4129 = vpop.f32.mrb[0].mxu0
      %v4130 = vpop.f32.mrb[0].mxu0
      %v4131 = vadd.f32 0.0, %v4130
      %v4132 = vpop.f32.mrb[0].mxu0
      %4133 = vmatprep.mubr.bf16.mxu0 0
      %4134 = vmatmul.mubr.bf16.gmra.mrb[0].mxu0 %v3946
      %v4135 = vpop.f32.mrb[0].mxu0
      %v4136 = vadd.f32 0.0, %v4135
      %v4137 = vpop.f32.mrb[0].mxu0
      %v4138 = vpop.f32.mrb[0].mxu0
      %v4139 = vadd.f32 0.0, %v4138
      %v4140 = vpop.f32.mrb[0].mxu0
      %4141 = vmatprep.mubr.bf16.mxu0 0
      %4142 = vmatmul.mubr.bf16.gmra.mrb[0].mxu0 %v3950
      %v4143 = vpop.f32.mrb[0].mxu0
      %v4144 = vadd.f32 0.0, %v4143
      %v4145 = vpop.f32.mrb[0].mxu0
      %v4146 = vpop.f32.mrb[0].mxu0
      %v4147 = vadd.f32 0.0, %v4146
      %v4148 = vpop.f32.mrb[0].mxu0
      %4149 = vmatprep.mubr.bf16.mxu0 0
      %4150 = vmatmul.mubr.bf16.gmra.mrb[0].mxu0 %v3954
      %v4151 = vpop.f32.mrb[0].mxu0
      %v4152 = vadd.f32 0.0, %v4151
      %v4153 = vpop.f32.mrb[0].mxu0
      %v4154 = vpop.f32.mrb[0].mxu0
      %v4155 = vadd.f32 0.0, %v4154
      %v4156 = vpop.f32.mrb[0].mxu0
      %4157 = vmatprep.mubr.bf16.mxu0 0
      %4158 = vmatmul.mubr.bf16.gmra.mrb[0].mxu0 %v3958
      %v4159 = vpop.f32.mrb[0].mxu0
      %v4160 = vadd.f32 0.0, %v4159
      %v4161 = vpop.f32.mrb[0].mxu0
      %v4162 = vpop.f32.mrb[0].mxu0
      %v4163 = vadd.f32 0.0, %v4162
      %v4164 = vpop.f32.mrb[0].mxu0
      %4165 = vmatprep.mubr.bf16.mxu0 0
      %4166 = vmatmul.mubr.bf16.gmra.mrb[0].mxu0 %v3962
      %v4167 = vpop.f32.mrb[0].mxu0
      %v4168 = vadd.f32 0.0, %v4167
      %v4169 = vpop.f32.mrb[0].mxu0
      %v4170 = vpop.f32.mrb[0].mxu0
      %v4171 = vadd.f32 0.0, %v4170
      %v4172 = vpop.f32.mrb[0].mxu0
      %4173 = vmatprep.mubr.bf16.mxu0 0
      %4174 = vmatmul.mubr.bf16.gmra.mrb[0].mxu0 %v3966
      %v4175 = vpop.f32.mrb[0].mxu0
      %v4176 = vadd.f32 0.0, %v4175
      %v4177 = vpop.f32.mrb[0].mxu0
      %v4178 = vpop.f32.mrb[0].mxu0
      %v4179 = vadd.f32 0.0, %v4178
      %v4180 = vpop.f32.mrb[0].mxu0
      %4181 = vmatprep.mubr.bf16.mxu0 0
      %4182 = vmatmul.mubr.bf16.gmra.mrb[0].mxu0 %v3970
      %v4183 = vpop.f32.mrb[0].mxu0
      %v4184 = vadd.f32 0.0, %v4183
      %v4185 = vpop.f32.mrb[0].mxu0
      %v4186 = vpop.f32.mrb[0].mxu0
      %v4187 = vadd.f32 0.0, %v4186
      %v4188 = vpop.f32.mrb[0].mxu0
      %4189 = vmatprep.mubr.bf16.mxu0 0
      %4190 = vmatmul.mubr.bf16.gmra.mrb[0].mxu0 %v3974
      %v4191 = vpop.f32.mrb[0].mxu0
      %v4192 = vadd.f32 0.0, %v4191
      %v4193 = vpop.f32.mrb[0].mxu0
      %v4194 = vpop.f32.mrb[0].mxu0
      %v4195 = vadd.f32 0.0, %v4194
      %v4196 = vpop.f32.mrb[0].mxu0
      %4197 = vmatprep.mubr.bf16.mxu0 0
      %4198 = vmatmul.mubr.bf16.gmra.mrb[0].mxu0 %v3978
      %v4199 = vpop.f32.mrb[0].mxu0
      %v4200 = vadd.f32 0.0, %v4199
      %v4201 = vpop.f32.mrb[0].mxu0
      %v4202 = vpop.f32.mrb[0].mxu0
      %v4203 = vadd.f32 0.0, %v4202
      %v4204 = vpop.f32.mrb[0].mxu0
      %4205 = vmatprep.mubr.bf16.mxu0 0
      %4206 = vmatmul.mubr.bf16.gmra.mrb[0].mxu0 %v3982
      %v4207 = vpop.f32.mrb[0].mxu0
      %v4208 = vadd.f32 0.0, %v4207
      %v4209 = vpop.f32.mrb[0].mxu0
      %v4210 = vpop.f32.mrb[0].mxu0
      %v4211 = vadd.f32 0.0, %v4210
      %v4212 = vpop.f32.mrb[0].mxu0
      %4213 = vmatprep.mubr.bf16.mxu0 0
      %4214 = vmatmul.mubr.bf16.gmra.mrb[0].mxu0 %v3986
      %v4215 = vpop.f32.mrb[0].mxu0
      %v4216 = vadd.f32 0.0, %v4215
      %v4217 = vpop.f32.mrb[0].mxu0
      %v4218 = vpop.f32.mrb[0].mxu0
      %v4219 = vadd.f32 0.0, %v4218
      %v4220 = vpop.f32.mrb[0].mxu0
      %4221 = vmatprep.mubr.bf16.mxu0 0
      %4222 = vmatmul.mubr.bf16.gmra.mrb[0].mxu0 %v3990
      %v4223 = vpop.f32.mrb[0].mxu0
      %v4224 = vadd.f32 0.0, %v4223
      %v4225 = vpop.f32.mrb[0].mxu0
      %v4226 = vpop.f32.mrb[0].mxu0
      %v4227 = vadd.f32 0.0, %v4226
      %v4228 = vpop.f32.mrb[0].mxu0
      %4229 = vmatprep.mubr.bf16.mxu0 0
      %4230 = vmatmul.mubr.bf16.gmra.mrb[0].mxu0 %v3994
      %v4231 = vpop.f32.mrb[0].mxu0
      %v4232 = vadd.f32 0.0, %v4231
      %v4233 = vpop.f32.mrb[0].mxu0
      %v4234 = vpop.f32.mrb[0].mxu0
      %v4235 = vadd.f32 0.0, %v4234
      %v4236 = vpop.f32.mrb[0].mxu0
      %4237 = vdwg.mxu0
      %v4238 = vadd.f32 %v3866, %v4096
      %v4239 = vadd.f32 %v3867, %v4099
      %v4240 = vadd.f32 %v3868, %v4104
      %v4241 = vadd.f32 %v3869, %v4107
      %v4242 = vadd.f32 %v3870, %v4112
      %v4243 = vadd.f32 %v3871, %v4115
      %v4244 = vadd.f32 %v3872, %v4120
      %v4245 = vadd.f32 %v3873, %v4123
      %v4246 = vadd.f32 %v3874, %v4128
      %v4247 = vadd.f32 %v3875, %v4131
      %v4248 = vadd.f32 %v3876, %v4136
      %v4249 = vadd.f32 %v3877, %v4139
      %v4250 = vadd.f32 %v3878, %v4144
      %v4251 = vadd.f32 %v3879, %v4147
      %v4252 = vadd.f32 %v3880, %v4152
      %v4253 = vadd.f32 %v3881, %v4155
      %v4254 = vadd.f32 %v3882, %v4160
      %v4255 = vadd.f32 %v3883, %v4163
      %v4256 = vadd.f32 %v3884, %v4168
      %v4257 = vadd.f32 %v3885, %v4171
      %v4258 = vadd.f32 %v3886, %v4176
      %v4259 = vadd.f32 %v3887, %v4179
      %v4260 = vadd.f32 %v3888, %v4184
      %v4261 = vadd.f32 %v3889, %v4187
      %v4262 = vadd.f32 %v3890, %v4192
      %v4263 = vadd.f32 %v3891, %v4195
      %v4264 = vadd.f32 %v3892, %v4200
      %v4265 = vadd.f32 %v3893, %v4203
      %v4266 = vadd.f32 %v3894, %v4208
      %v4267 = vadd.f32 %v3895, %v4211
      %v4268 = vadd.f32 %v3896, %v4216
      %v4269 = vadd.f32 %v3897, %v4219
      %v4270 = vadd.f32 %v3898, %v4224
      %v4271 = vadd.f32 %v3899, %v4227
      %v4272 = vadd.f32 %v3900, %v4232
      %v4273 = vadd.f32 %v3901, %v4235
      %v4274 = vmax.f32 %v4238, 0.0
      %v4275 = vmax.f32 %v4239, 0.0
      %v4276 = vmax.f32 %v4240, 0.0
      %v4277 = vmax.f32 %v4241, 0.0
      %v4278 = vmax.f32 %v4242, 0.0
      %v4279 = vmax.f32 %v4243, 0.0
      %v4280 = vmax.f32 %v4244, 0.0
      %v4281 = vmax.f32 %v4245, 0.0
      %v4282 = vmax.f32 %v4246, 0.0
      %v4283 = vmax.f32 %v4247, 0.0
      %v4284 = vmax.f32 %v4248, 0.0
      %v4285 = vmax.f32 %v4249, 0.0
      %v4286 = vmax.f32 %v4250, 0.0
      %v4287 = vmax.f32 %v4251, 0.0
      %v4288 = vmax.f32 %v4252, 0.0
      %v4289 = vmax.f32 %v4253, 0.0
      %v4290 = vmax.f32 %v4254, 0.0
      %v4291 = vmax.f32 %v4255, 0.0
      %v4292 = vmax.f32 %v4256, 0.0
      %v4293 = vmax.f32 %v4257, 0.0
      %v4294 = vmax.f32 %v4258, 0.0
      %v4295 = vmax.f32 %v4259, 0.0
      %v4296 = vmax.f32 %v4260, 0.0
      %v4297 = vmax.f32 %v4261, 0.0
      %v4298 = vmax.f32 %v4262, 0.0
      %v4299 = vmax.f32 %v4263, 0.0
      %v4300 = vmax.f32 %v4264, 0.0
      %v4301 = vmax.f32 %v4265, 0.0
      %v4302 = vmax.f32 %v4266, 0.0
      %v4303 = vmax.f32 %v4267, 0.0
      %v4304 = vmax.f32 %v4268, 0.0
      %v4305 = vmax.f32 %v4269, 0.0
      %v4306 = vmax.f32 %v4270, 0.0
      %v4307 = vmax.f32 %v4271, 0.0
      %v4308 = vmax.f32 %v4272, 0.0
      %v4309 = vmax.f32 %v4273, 0.0
      %vm4310 = vcmask 523264
      %4311 = vst.msk [vmem:[%s251] sm:$0xff] %vm4310, %v4274
      %4312 = vst.msk [vmem:[%s251 + $0x8] sm:$0xff] %vm4310, %v4275
      %4313 = vst.msk [vmem:[%s251 + $0x10] sm:$0xff] %vm4310, %v4276
      %4314 = vst.msk [vmem:[%s251 + $0x18] sm:$0xff] %vm4310, %v4277
      %4315 = vst.msk [vmem:[%s251 + $0x20] sm:$0xff] %vm4310, %v4278
      %4316 = vst.msk [vmem:[%s251 + $0x28] sm:$0xff] %vm4310, %v4279
      %4317 = vst.msk [vmem:[%s251 + $0x30] sm:$0xff] %vm4310, %v4280
      %4318 = vst.msk [vmem:[%s251 + $0x38] sm:$0xff] %vm4310, %v4281
      %4319 = vst.msk [vmem:[%s251 + $0x40] sm:$0xff] %vm4310, %v4282
      %4320 = vst.msk [vmem:[%s251 + $0x48] sm:$0xff] %vm4310, %v4283
      %4321 = vst.msk [vmem:[%s251 + $0x50] sm:$0xff] %vm4310, %v4284
      %4322 = vst.msk [vmem:[%s251 + $0x58] sm:$0xff] %vm4310, %v4285
      %4323 = vst.msk [vmem:[%s251 + $0x60] sm:$0xff] %vm4310, %v4286
      %4324 = vst.msk [vmem:[%s251 + $0x68] sm:$0xff] %vm4310, %v4287
      %4325 = vst.msk [vmem:[%s251 + $0x70] sm:$0xff] %vm4310, %v4288
      %4326 = vst.msk [vmem:[%s251 + $0x78] sm:$0xff] %vm4310, %v4289
      %4327 = vst.msk [vmem:[%s251 + $0x80] sm:$0xff] %vm4310, %v4290
      %4328 = vst.msk [vmem:[%s251 + $0x88] sm:$0xff] %vm4310, %v4291
      %4329 = vst.msk [vmem:[%s251 + $0x90] sm:$0xff] %vm4310, %v4292
      %4330 = vst.msk [vmem:[%s251 + $0x98] sm:$0xff] %vm4310, %v4293
      %4331 = vst.msk [vmem:[%s251 + $0xa0] sm:$0xff] %vm4310, %v4294
      %4332 = vst.msk [vmem:[%s251 + $0xa8] sm:$0xff] %vm4310, %v4295
      %4333 = vst.msk [vmem:[%s251 + $0xb0] sm:$0xff] %vm4310, %v4296
      %4334 = vst.msk [vmem:[%s251 + $0xb8] sm:$0xff] %vm4310, %v4297
      %4335 = vst.msk [vmem:[%s251 + $0xc0] sm:$0xff] %vm4310, %v4298
      %4336 = vst.msk [vmem:[%s251 + $0xc8] sm:$0xff] %vm4310, %v4299
      %4337 = vst.msk [vmem:[%s251 + $0xd0] sm:$0xff] %vm4310, %v4300
      %4338 = vst.msk [vmem:[%s251 + $0xd8] sm:$0xff] %vm4310, %v4301
      %4339 = vst.msk [vmem:[%s251 + $0xe0] sm:$0xff] %vm4310, %v4302
      %4340 = vst.msk [vmem:[%s251 + $0xe8] sm:$0xff] %vm4310, %v4303
      %4341 = vst.msk [vmem:[%s251 + $0xf0] sm:$0xff] %vm4310, %v4304
      %4342 = vst.msk [vmem:[%s251 + $0xf8] sm:$0xff] %vm4310, %v4305
      %4343 = vst.msk [vmem:[%s251 + $0x100] sm:$0xff] %vm4310, %v4306
      %4344 = vst.msk [vmem:[%s251 + $0x108] sm:$0xff] %vm4310, %v4307
      %4345 = vst.msk [vmem:[%s251 + $0x110] sm:$0xff] %vm4310, %v4308
      %4346 = vst.msk [vmem:[%s251 + $0x118] sm:$0xff] %vm4310, %v4309
      %p4347 = scmp.lt.s32.totalorder %s17, 1
      %s4348 = scalar_select %p4347, %s17, 1
      %s4349 = smul.addr %s4348, 36
      %s4350 = smul.addr %s4349, 8
      %s4351 = scalar_lea.vmem %s6, %s4350
      // Predicated region
      $region45: #{double_conv.1} parent=43 // pred_check
        %p4352 = pneg %p166
      $region46: #{double_conv.1} parent=43 // pred_check_branch
        %4354 = sbr.rel (%p4352) target = $region48
      $region47: #{double_conv.1} parent=43 // pred_region
        _
      $region48: #{double_conv.1} parent=43 // pred_fallthru
        _
    $region44: #{double_conv.1} parent=5 // pred_fallthru
      _
    %p4355 = scmp.le.s32.totalorder 2, %s12
    // Predicated region
    $region49: #{double_conv.1} parent=5 // pred_check
      %p4356 = pneg %p4355
    $region50: #{double_conv.1} parent=5 // pred_check_branch
      %4358 = sbr.rel (%p4356) target = $region52
    $region51: #{double_conv.1} parent=5 // pred_region
      %s4359 = ssub.s32 %s12, 2
      // Predicated region
      $region53: #{double_conv.1} parent=51 // pred_check
        %p4360 = pneg %p172
      $region54: #{double_conv.1} parent=51 // pred_check_branch
        %4362 = sbr.rel (%p4360) target = $region56
      $region55: #{double_conv.1} parent=51 // pred_region
        %p4363 = scmp.lt.s32.totalorder %s18, 1
        %s4364 = scalar_select %p4363, %s18, 1
        %s4365 = smul.addr %s4364, 36
        %s4366 = smul.addr %s4365, 8
        %s4367 = scalar_lea.vmem %s6, %s4366
      $region56: #{double_conv.1} parent=51 // pred_fallthru
        _
    $region52: #{double_conv.1} parent=5 // pred_fallthru
      _
  $region6: #{double_conv.1} parent=0 // loop_footer
    %s16 = sadd.s32 1, %s12
  $region7: #{double_conv.1} parent=0 // loop_footer_branch
    %11 = sbr.rel target = $region3
  $region8: #{double_conv.1} parent=0 // loop_exit
    _

</llo_original>
